<compile_context>
chip_gen: v6e
topology: v6e:2x2x1
jax: 0.10.0
libtpu: 0.0.40
codegen_flags: <defaults>
</compile_context>

<pallas_src>
import jax
import jax.numpy as jnp
from jax.experimental import pallas as pl
from jax.experimental.pallas import tpu as pltpu

LANE = 128


def _round_up(x, m):
    return (x + m - 1) // m * m


def _conv3x3(xpad, w, H, W):
    """One 3x3 'same' conv as a single MXU matmul.

    xpad: (Nb, H+2, W+2, C) zero-padded activations (C is a multiple of 128)
    w   : (9*C, Cout_p)     tap-major weights (BN scale already folded in)
    returns (Nb*H*W, Cout_p) float32
    """
    Nb = xpad.shape[0]
    C = xpad.shape[-1]
    # Each tap is a full lane-group slice (C is a multiple of 128) -> the concat just
    # places vregs side by side; the reshape only collapses leading (major) dims.
    taps = [xpad[:, kh:kh + H, kw:kw + W, :] for kh in range(3) for kw in range(3)]
    patches = jnp.concatenate(taps, axis=-1)          # (Nb, H, W, 9*C)
    patches = patches.reshape(Nb * H * W, 9 * C)      # (M, K) im2col matrix
    return jnp.dot(patches.astype(w.dtype), w, preferred_element_type=jnp.float32)


def _conv_twice_kernel(xp_ref, w1_ref, b1_ref, w2_ref, b2_ref, out_ref):
    """xp_ref : (Nb, H+2, W+2, Cin_p)   zero-padded NHWC input block
       w1_ref : (9*Cin_p, Cout_p)       conv1 weights, tap-major, BN scale folded
       b1_ref : (1, Cout_p)             fused BN+conv bias (conv1)
       w2_ref : (9*Cout_p, Cout_p)      conv2 weights
       b2_ref : (1, Cout_p)
       out_ref: (Nb, H, W, Cout_p)
    """
    Nb, H, W, Cp = out_ref.shape

    xp = xp_ref[...]                                                       # (Nb, H+2, W+2, Cin_p)

    # ---- conv1 (single matmul) + fused bias + ReLU ---------------------------------
    h = jnp.maximum(_conv3x3(xp, w1_ref[...], H, W) + b1_ref[...], 0.0)    # (M, Cp) f32

    # ---- re-pad the intermediate in registers (no VMEM scratch round-trip) ---------
    h = h.reshape(Nb, H, W, Cp)
    zrow = jnp.zeros((Nb, 1, W, Cp), h.dtype)
    h = jnp.concatenate([zrow, h, zrow], axis=1)                           # (Nb, H+2, W, Cp)
    zcol = jnp.zeros((Nb, H + 2, 1, Cp), h.dtype)
    hpad = jnp.concatenate([zcol, h, zcol], axis=2)                        # (Nb, H+2, W+2, Cp)

    # ---- conv2 (single matmul) + fused bias + ReLU ---------------------------------
    y = jnp.maximum(_conv3x3(hpad, w2_ref[...], H, W) + b2_ref[...], 0.0)  # (M, Cp) f32
    out_ref[...] = y.reshape(Nb, H, W, Cp).astype(out_ref.dtype)


def _pick_batch_block(N, H, W, Cin_p, Cout_p, vmem_budget_bytes):
    """Images per grid step: target ~512-1024 matmul rows, capped by a rough VMEM budget."""
    rows_target = 1024
    nb = max(1, min(N, max(1, rows_target // (H * W))))
    # Dominant in-kernel f32 buffers per step: the two im2col matrices + padded input +
    # intermediate + output block (ignore the small weight tiles).
    def footprint(nb):
        m = nb * H * W
        return 4 * (m * 9 * Cin_p + m * 9 * Cout_p          # patches1 + patches2
                    + nb * (H + 2) * (W + 2) * (Cin_p + Cout_p)  # xp + hpad
                    + 2 * m * Cout_p)                        # h + out block
    while nb > 1 and footprint(nb) > vmem_budget_bytes:
        nb -= 1
    while N % nb:                                            # grid must divide the batch
        nb -= 1
    return nb


def conv_twice_pallas(x_nchw, params, eps=1e-5, use_bf16=False):
    """Runs ConvTwice. x_nchw: (N, Cin, H, W) float32. Returns (N, Cout, H, W) float32."""
    (w1, bc1, g1, be1, m1, v1, w2, bc2, g2, be2, m2, v2) = params
    N, Cin, H, W = x_nchw.shape
    Cout = w1.shape[0]
    Cin_p = _round_up(Cin, LANE)       # lane-dense channel padding
    Cout_p = _round_up(Cout, LANE)
    # bf16 matmul inputs (f32 accumulation) double effective MXU throughput on v6e/v7x;
    # keep f32 on v5e / when tight accuracy is required.
    mm_dtype = jnp.bfloat16 if use_bf16 else jnp.float32

    # --- layout glue + parameter folding (plain JAX, touches only tiny tensors) -----
    x = jnp.transpose(x_nchw, (0, 2, 3, 1))                                   # NHWC
    xp = jnp.pad(x, ((0, 0), (1, 1), (1, 1), (0, Cin_p - Cin))).astype(mm_dtype)

    def fold(w, conv_bias, gamma, beta, mean, var, cin, cin_p):
        scale = gamma / jnp.sqrt(var + eps)                                   # (Cout,)
        bias = beta + (conv_bias - mean) * scale                              # (Cout,)
        # OIHW -> HWIO, fold BN scale into the output-channel axis of the weights.
        w_hwio = jnp.transpose(w, (2, 3, 1, 0)) * scale[None, None, None, :]
        w_pad = jnp.zeros((3, 3, cin_p, Cout_p), jnp.float32)
        w_pad = w_pad.at[:, :, :cin, :Cout].set(w_hwio)
        w_tap = w_pad.reshape(9 * cin_p, Cout_p).astype(mm_dtype)             # tap-major K
        b_pad = jnp.zeros((1, Cout_p), jnp.float32).at[0, :Cout].set(bias)
        return w_tap, b_pad

    w1r, b1 = fold(w1, bc1, g1, be1, m1, v1, Cin, Cin_p)
    w2r, b2 = fold(w2, bc2, g2, be2, m2, v2, Cout, Cout_p)

    vmem_limit = 32 * 1024 * 1024
    nb = _pick_batch_block(N, H, W, Cin_p, Cout_p, vmem_budget_bytes=vmem_limit // 2)

    # Advisory cost estimate so XLA schedules around the custom call sensibly.
    m_total = N * H * W
    flops = 2 * m_total * (9 * Cin_p + 9 * Cout_p) * Cout_p
    bytes_accessed = (xp.size * xp.dtype.itemsize
                      + w1r.size * w1r.dtype.itemsize + w2r.size * w2r.dtype.itemsize
                      + (b1.size + b2.size) * 4
                      + N * H * W * Cout_p * 4)
    cost = pl.CostEstimate(flops=flops, transcendentals=0, bytes_accessed=bytes_accessed)

    out_nhwc = pl.pallas_call(
        _conv_twice_kernel,
        out_shape=jax.ShapeDtypeStruct((N, H, W, Cout_p), jnp.float32),
        grid_spec=pltpu.PrefetchScalarGridSpec(
            num_scalar_prefetch=0,
            grid=(N // nb,),
            in_specs=[
                pl.BlockSpec((nb, H + 2, W + 2, Cin_p), lambda n: (n, 0, 0, 0)),
                # Constant index_map -> weights/biases stay resident in VMEM across steps.
                pl.BlockSpec((9 * Cin_p, Cout_p), lambda n: (0, 0)),
                pl.BlockSpec((1, Cout_p), lambda n: (0, 0)),
                pl.BlockSpec((9 * Cout_p, Cout_p), lambda n: (0, 0)),
                pl.BlockSpec((1, Cout_p), lambda n: (0, 0)),
            ],
            out_specs=pl.BlockSpec((nb, H, W, Cout_p), lambda n: (n, 0, 0, 0)),
        ),
        compiler_params=pltpu.CompilerParams(
            # Independent batch blocks -> shardable across v7x's 2 TensorCores.
            dimension_semantics=("parallel",),
            # Raise the scoped VMEM limit (v5e default is 16 MiB); 32 MiB is safe on v7x too.
            vmem_limit_bytes=vmem_limit,
        ),
        cost_estimate=cost,
    )(xp, w1r, b1, w2r, b2)

    # Drop the channel padding and go back to NCHW.
    return jnp.transpose(out_nhwc[..., :Cout], (0, 3, 1, 2))


def conv_twice_reference(x, params, eps=1e-5):
    """Pure-JAX reference (NCHW), mirrors the PyTorch module in eval mode."""
    (w1, bc1, g1, be1, m1, v1, w2, bc2, g2, be2, m2, v2) = params

    def conv(x, w, b):
        y = jax.lax.conv_general_dilated(
            x, w, window_strides=(1, 1), padding=((1, 1), (1, 1)),
            dimension_numbers=("NCHW", "OIHW", "NCHW"))
        return y + b[None, :, None, None]

    def bn(y, g, be, m, v):
        return (y - m[None, :, None, None]) / jnp.sqrt(v[None, :, None, None] + eps) \
            * g[None, :, None, None] + be[None, :, None, None]

    h = jnp.maximum(bn(conv(x, w1, bc1), g1, be1, m1, v1), 0.0)
    return jnp.maximum(bn(conv(h, w2, bc2), g2, be2, m2, v2), 0.0)


def init_params(key, ch_in, ch_out):
    ks = jax.random.split(key, 12)
    w1 = 0.1 * jax.random.normal(ks[0], (ch_out, ch_in, 3, 3), jnp.float32)
    bc1 = 0.1 * jax.random.normal(ks[1], (ch_out,), jnp.float32)
    g1 = 1.0 + 0.1 * jax.random.normal(ks[2], (ch_out,), jnp.float32)
    be1 = 0.1 * jax.random.normal(ks[3], (ch_out,), jnp.float32)
    m1 = 0.1 * jax.random.normal(ks[4], (ch_out,), jnp.float32)
    v1 = 0.5 + jnp.abs(jax.random.normal(ks[5], (ch_out,), jnp.float32))
    w2 = 0.1 * jax.random.normal(ks[6], (ch_out, ch_out, 3, 3), jnp.float32)
    bc2 = 0.1 * jax.random.normal(ks[7], (ch_out,), jnp.float32)
    g2 = 1.0 + 0.1 * jax.random.normal(ks[8], (ch_out,), jnp.float32)
    be2 = 0.1 * jax.random.normal(ks[9], (ch_out,), jnp.float32)
    m2 = 0.1 * jax.random.normal(ks[10], (ch_out,), jnp.float32)
    v2 = 0.5 + jnp.abs(jax.random.normal(ks[11], (ch_out,), jnp.float32))
    return (w1, bc1, g1, be1, m1, v1, w2, bc2, g2, be2, m2, v2)


if __name__ == "__main__":
    key = jax.random.PRNGKey(0)
    k_x, k_p = jax.random.split(key)

    N, CH_IN, CH_OUT, H, W = 2, 4, 8, 16, 16
    x = jax.random.normal(k_x, (N, CH_IN, H, W), jnp.float32)   # NCHW, like PyTorch
    params = init_params(k_p, CH_IN, CH_OUT)

    out = jax.block_until_ready(conv_twice_pallas(x, params))
    ref = jax.block_until_ready(conv_twice_reference(x, params))

    assert out.shape == (N, CH_OUT, H, W), out.shape
    assert jnp.allclose(out, ref, atol=1e-4, rtol=1e-4), \
        f"max abs err {jnp.max(jnp.abs(out - ref))}"
    print("KERNEL_OK")
</pallas_src>

<mosaic_0001>
module attributes {stable_mosaic.version = 11 : i64} {
  func.func @_conv_twice_kernel(%arg0: i32, %arg1: memref<2x18x18x128xf32, #tpu.memory_space<vmem>>, %arg2: memref<1152x128xf32, #tpu.memory_space<vmem>>, %arg3: memref<1x128xf32, #tpu.memory_space<vmem>>, %arg4: memref<1152x128xf32, #tpu.memory_space<vmem>>, %arg5: memref<1x128xf32, #tpu.memory_space<vmem>>, %arg6: memref<2x16x16x128xf32, #tpu.memory_space<vmem>>) attributes {dimension_semantics = [#tpu.dimension_semantics<parallel>], iteration_bounds = array<i64: 1>, scalar_prefetch = 0 : i64, scratch_operands = 0 : i64, tpu.core_type = #tpu.core_type<tc>, window_params = [{transform_indices = @transform_0, window_bounds = array<i64: 2, 18, 18, 128>}, {pipeline_mode = #tpu.pipeline_mode<synchronous>, transform_indices = @transform_1, window_bounds = array<i64: 1152, 128>}, {pipeline_mode = #tpu.pipeline_mode<synchronous>, transform_indices = @transform_2, window_bounds = array<i64: 1, 128>}, {pipeline_mode = #tpu.pipeline_mode<synchronous>, transform_indices = @transform_3, window_bounds = array<i64: 1152, 128>}, {pipeline_mode = #tpu.pipeline_mode<synchronous>, transform_indices = @transform_4, window_bounds = array<i64: 1, 128>}, {transform_indices = @transform_5, window_bounds = array<i64: 2, 16, 16, 128>}]} {
    %c0 = arith.constant 0 : index
    %c0_0 = arith.constant 0 : index
    %c0_1 = arith.constant 0 : index
    %c0_2 = arith.constant 0 : index
    %0 = vector.load %arg1[%c0, %c0_0, %c0_1, %c0_2] : memref<2x18x18x128xf32, #tpu.memory_space<vmem>>, vector<2x18x18x128xf32>
    %c0_3 = arith.constant 0 : index
    %c0_4 = arith.constant 0 : index
    %1 = vector.load %arg2[%c0_3, %c0_4] : memref<1152x128xf32, #tpu.memory_space<vmem>>, vector<1152x128xf32>
    %2 = vector.extract_strided_slice %0 {offsets = [0, 0, 0, 0], sizes = [2, 16, 16, 128], strides = [1, 1, 1, 1]} : vector<2x18x18x128xf32> to vector<2x16x16x128xf32>
    %3 = vector.extract_strided_slice %0 {offsets = [0, 0, 1, 0], sizes = [2, 16, 16, 128], strides = [1, 1, 1, 1]} : vector<2x18x18x128xf32> to vector<2x16x16x128xf32>
    %4 = vector.extract_strided_slice %0 {offsets = [0, 0, 2, 0], sizes = [2, 16, 16, 128], strides = [1, 1, 1, 1]} : vector<2x18x18x128xf32> to vector<2x16x16x128xf32>
    %5 = vector.extract_strided_slice %0 {offsets = [0, 1, 0, 0], sizes = [2, 16, 16, 128], strides = [1, 1, 1, 1]} : vector<2x18x18x128xf32> to vector<2x16x16x128xf32>
    %6 = vector.extract_strided_slice %0 {offsets = [0, 1, 1, 0], sizes = [2, 16, 16, 128], strides = [1, 1, 1, 1]} : vector<2x18x18x128xf32> to vector<2x16x16x128xf32>
    %7 = vector.extract_strided_slice %0 {offsets = [0, 1, 2, 0], sizes = [2, 16, 16, 128], strides = [1, 1, 1, 1]} : vector<2x18x18x128xf32> to vector<2x16x16x128xf32>
    %8 = vector.extract_strided_slice %0 {offsets = [0, 2, 0, 0], sizes = [2, 16, 16, 128], strides = [1, 1, 1, 1]} : vector<2x18x18x128xf32> to vector<2x16x16x128xf32>
    %9 = vector.extract_strided_slice %0 {offsets = [0, 2, 1, 0], sizes = [2, 16, 16, 128], strides = [1, 1, 1, 1]} : vector<2x18x18x128xf32> to vector<2x16x16x128xf32>
    %10 = vector.extract_strided_slice %0 {offsets = [0, 2, 2, 0], sizes = [2, 16, 16, 128], strides = [1, 1, 1, 1]} : vector<2x18x18x128xf32> to vector<2x16x16x128xf32>
    %11 = tpu.concatenate %2, %3, %4, %5, %6, %7, %8, %9, %10 in 3 : vector<2x16x16x128xf32>, vector<2x16x16x128xf32>, vector<2x16x16x128xf32>, vector<2x16x16x128xf32>, vector<2x16x16x128xf32>, vector<2x16x16x128xf32>, vector<2x16x16x128xf32>, vector<2x16x16x128xf32>, vector<2x16x16x128xf32> -> vector<2x16x16x1152xf32>
    %12 = vector.shape_cast %11 : vector<2x16x16x1152xf32> to vector<512x1152xf32>
    %cst = arith.constant dense<0.000000e+00> : vector<512x128xf32>
    %13 = tpu.matmul %12, %1, %cst {dimension_numbers = #tpu.dot_dimension_numbers<[1], [0], [0], [1], [0, 0, 1, 1], [], []>} : vector<512x1152xf32>, vector<1152x128xf32>, vector<512x128xf32> -> vector<512x128xf32>
    %c0_5 = arith.constant 0 : index
    %c0_6 = arith.constant 0 : index
    %14 = vector.load %arg3[%c0_5, %c0_6] : memref<1x128xf32, #tpu.memory_space<vmem>>, vector<1x128xf32>
    %15 = vector.broadcast %14 : vector<1x128xf32> to vector<512x128xf32>
    %16 = arith.addf %13, %15 : vector<512x128xf32>
    %cst_7 = arith.constant 0.000000e+00 : f32
    %17 = vector.broadcast %cst_7 : f32 to vector<512x128xf32>
    %18 = arith.maximumf %16, %17 : vector<512x128xf32>
    %19 = vector.shape_cast %18 : vector<512x128xf32> to vector<2x16x16x128xf32>
    %cst_8 = arith.constant 0.000000e+00 : f32
    %20 = vector.broadcast %cst_8 : f32 to vector<2x1x16x128xf32>
    %21 = tpu.concatenate %20, %19, %20 in 1 : vector<2x1x16x128xf32>, vector<2x16x16x128xf32>, vector<2x1x16x128xf32> -> vector<2x18x16x128xf32>
    %cst_9 = arith.constant 0.000000e+00 : f32
    %22 = vector.broadcast %cst_9 : f32 to vector<2x18x1x128xf32>
    %23 = tpu.concatenate %22, %21, %22 in 2 : vector<2x18x1x128xf32>, vector<2x18x16x128xf32>, vector<2x18x1x128xf32> -> vector<2x18x18x128xf32>
    %c0_10 = arith.constant 0 : index
    %c0_11 = arith.constant 0 : index
    %24 = vector.load %arg4[%c0_10, %c0_11] : memref<1152x128xf32, #tpu.memory_space<vmem>>, vector<1152x128xf32>
    %25 = vector.extract_strided_slice %23 {offsets = [0, 0, 0, 0], sizes = [2, 16, 16, 128], strides = [1, 1, 1, 1]} : vector<2x18x18x128xf32> to vector<2x16x16x128xf32>
    %26 = vector.extract_strided_slice %23 {offsets = [0, 0, 1, 0], sizes = [2, 16, 16, 128], strides = [1, 1, 1, 1]} : vector<2x18x18x128xf32> to vector<2x16x16x128xf32>
    %27 = vector.extract_strided_slice %23 {offsets = [0, 0, 2, 0], sizes = [2, 16, 16, 128], strides = [1, 1, 1, 1]} : vector<2x18x18x128xf32> to vector<2x16x16x128xf32>
    %28 = vector.extract_strided_slice %23 {offsets = [0, 1, 0, 0], sizes = [2, 16, 16, 128], strides = [1, 1, 1, 1]} : vector<2x18x18x128xf32> to vector<2x16x16x128xf32>
    %29 = vector.extract_strided_slice %23 {offsets = [0, 1, 1, 0], sizes = [2, 16, 16, 128], strides = [1, 1, 1, 1]} : vector<2x18x18x128xf32> to vector<2x16x16x128xf32>
    %30 = vector.extract_strided_slice %23 {offsets = [0, 1, 2, 0], sizes = [2, 16, 16, 128], strides = [1, 1, 1, 1]} : vector<2x18x18x128xf32> to vector<2x16x16x128xf32>
    %31 = vector.extract_strided_slice %23 {offsets = [0, 2, 0, 0], sizes = [2, 16, 16, 128], strides = [1, 1, 1, 1]} : vector<2x18x18x128xf32> to vector<2x16x16x128xf32>
    %32 = vector.extract_strided_slice %23 {offsets = [0, 2, 1, 0], sizes = [2, 16, 16, 128], strides = [1, 1, 1, 1]} : vector<2x18x18x128xf32> to vector<2x16x16x128xf32>
    %33 = vector.extract_strided_slice %23 {offsets = [0, 2, 2, 0], sizes = [2, 16, 16, 128], strides = [1, 1, 1, 1]} : vector<2x18x18x128xf32> to vector<2x16x16x128xf32>
    %34 = tpu.concatenate %25, %26, %27, %28, %29, %30, %31, %32, %33 in 3 : vector<2x16x16x128xf32>, vector<2x16x16x128xf32>, vector<2x16x16x128xf32>, vector<2x16x16x128xf32>, vector<2x16x16x128xf32>, vector<2x16x16x128xf32>, vector<2x16x16x128xf32>, vector<2x16x16x128xf32>, vector<2x16x16x128xf32> -> vector<2x16x16x1152xf32>
    %35 = vector.shape_cast %34 : vector<2x16x16x1152xf32> to vector<512x1152xf32>
    %cst_12 = arith.constant dense<0.000000e+00> : vector<512x128xf32>
    %36 = tpu.matmul %35, %24, %cst_12 {dimension_numbers = #tpu.dot_dimension_numbers<[1], [0], [0], [1], [0, 0, 1, 1], [], []>} : vector<512x1152xf32>, vector<1152x128xf32>, vector<512x128xf32> -> vector<512x128xf32>
    %c0_13 = arith.constant 0 : index
    %c0_14 = arith.constant 0 : index
    %37 = vector.load %arg5[%c0_13, %c0_14] : memref<1x128xf32, #tpu.memory_space<vmem>>, vector<1x128xf32>
    %38 = vector.broadcast %37 : vector<1x128xf32> to vector<512x128xf32>
    %39 = arith.addf %36, %38 : vector<512x128xf32>
    %cst_15 = arith.constant 0.000000e+00 : f32
    %40 = vector.broadcast %cst_15 : f32 to vector<512x128xf32>
    %41 = arith.maximumf %39, %40 : vector<512x128xf32>
    %42 = vector.shape_cast %41 : vector<512x128xf32> to vector<2x16x16x128xf32>
    %c0_16 = arith.constant 0 : index
    %c0_17 = arith.constant 0 : index
    %c0_18 = arith.constant 0 : index
    %c0_19 = arith.constant 0 : index
    %43 = vector.load %arg6[%c0_16, %c0_17, %c0_18, %c0_19] : memref<2x16x16x128xf32, #tpu.memory_space<vmem>>, vector<2x16x16x128xf32>
    tpu.vector_store %arg6[%c0_16, %c0_17, %c0_18, %c0_19], %42 {strides = array<i32>} : memref<2x16x16x128xf32, #tpu.memory_space<vmem>>, vector<2x16x16x128xf32>,
    return
  }
  func.func @transform_0(%arg0: i32) -> (i32, i32, i32, i32) {
    %c0_i32 = arith.constant 0 : i32
    %c0_i32_0 = arith.constant 0 : i32
    %c0_i32_1 = arith.constant 0 : i32
    %c0_i32_2 = arith.constant 0 : i32
    return %arg0, %c0_i32, %c0_i32_0, %c0_i32_1 : i32, i32, i32, i32
  }
  func.func @transform_1(%arg0: i32) -> (i32, i32) {
    %c0_i32 = arith.constant 0 : i32
    %c0_i32_0 = arith.constant 0 : i32
    %c0_i32_1 = arith.constant 0 : i32
    return %c0_i32, %c0_i32_0 : i32, i32
  }
  func.func @transform_2(%arg0: i32) -> (i32, i32) {
    %c0_i32 = arith.constant 0 : i32
    %c0_i32_0 = arith.constant 0 : i32
    %c0_i32_1 = arith.constant 0 : i32
    return %c0_i32, %c0_i32_0 : i32, i32
  }
  func.func @transform_3(%arg0: i32) -> (i32, i32) {
    %c0_i32 = arith.constant 0 : i32
    %c0_i32_0 = arith.constant 0 : i32
    %c0_i32_1 = arith.constant 0 : i32
    return %c0_i32, %c0_i32_0 : i32, i32
  }
  func.func @transform_4(%arg0: i32) -> (i32, i32) {
    %c0_i32 = arith.constant 0 : i32
    %c0_i32_0 = arith.constant 0 : i32
    %c0_i32_1 = arith.constant 0 : i32
    return %c0_i32, %c0_i32_0 : i32, i32
  }
  func.func @transform_5(%arg0: i32) -> (i32, i32, i32, i32) {
    %c0_i32 = arith.constant 0 : i32
    %c0_i32_0 = arith.constant 0 : i32
    %c0_i32_1 = arith.constant 0 : i32
    %c0_i32_2 = arith.constant 0 : i32
    return %arg0, %c0_i32, %c0_i32_0, %c0_i32_1 : i32, i32, i32, i32
  }
}

</mosaic_0001>

<llo_original>
// kernel: tpu_custom_call.1
$region0: #{tpu_custom_call.1}
  #allocation0 [shape = 'u32[]', space=smem, size = 0x4, offset = 0x4, fixed_abs, tag = 'smem constant byte address 0x4 - core index']
  #allocation1 [shape = 'u32[144,128]{1,0:T(1,128)}', space=vmem, size = 0x12000, scoped, tag = 'internal scratch']
  %s0 = inlined_call_operand.vmem [shape: f32[2,18,18,128], index: 0, kind: input, shape index: {}]
  %s1 = inlined_call_operand.vmem [shape: f32[1152,128], index: 1, kind: input, shape index: {}]
  %s2 = inlined_call_operand.vmem [shape: f32[1,128], index: 2, kind: input, shape index: {}]
  %s3 = inlined_call_operand.hbm [shape: f32[1152,128], index: 3, kind: input, shape index: {}]
  %s4 = inlined_call_operand.vmem [shape: f32[1,128], index: 4, kind: input, shape index: {}]
  %s5 = inlined_call_operand.hbm [shape: f32[2,16,16,128], index: 5, kind: output, shape index: {}]
  %s6 = sld [smem:[#allocation0]]
  $region34: #{tpu_custom_call.1} parent=0
    _
  %s8 = ssub.s32 1, %s6
  %s9 = scalar_select 0, %s8, %s6
  $region1: #{tpu_custom_call.1} parent=0
    #allocation2 [shape = 'u8[589824]{0}', space=vmem, size = 0x90000, scoped, tag = 'input window, operand 3, single buffered']
    #allocation3 [shape = 's32[1]{0}', space=sflag, size = 0x4, scoped, tag = 'scoped memory for tpu_custom_call.1']
    #allocation4 [shape = 's32[1]{0}', space=sflag, size = 0x4, scoped, tag = 'scoped memory for tpu_custom_call.1']
    #allocation5 [shape = 'u8[262144]{0}', space=vmem, size = 0x40000, scoped, tag = 'output window, operand 0, single buffered']
    %10 = vsyncpa [#allocation3], 0
    %11 = vsyncpa [#allocation4], 0
    // Predicated region
    $region2: #{tpu_custom_call.1} parent=1 // pred_check
      _
    $region3: #{tpu_custom_call.1} parent=1 // pred_check_branch
      %13 = sbr.rel (0) target = $region5
    $region4: #{tpu_custom_call.1} parent=1 // pred_region
      _
    $region5: #{tpu_custom_call.1} parent=1 // pred_fallthru
      _
    // Predicated region
    $region6: #{tpu_custom_call.1} parent=1 // pred_check
      _
    $region7: #{tpu_custom_call.1} parent=1 // pred_check_branch
      %15 = sbr.rel (0) target = $region9
    $region8: #{tpu_custom_call.1} parent=1 // pred_region
      _
    $region9: #{tpu_custom_call.1} parent=1 // pred_fallthru
      _
    // Predicated region
    $region10: #{tpu_custom_call.1} parent=1 // pred_check
      _
    $region11: #{tpu_custom_call.1} parent=1 // pred_check_branch
      %17 = sbr.rel (0) target = $region13
    $region12: #{tpu_custom_call.1} parent=1 // pred_region
      _
    $region13: #{tpu_custom_call.1} parent=1 // pred_fallthru
      _
    // Predicated region
    $region14: #{tpu_custom_call.1} parent=1 // pred_check
      _
    $region15: #{tpu_custom_call.1} parent=1 // pred_check_branch
      %19 = sbr.rel (0) target = $region17
    $region16: #{tpu_custom_call.1} parent=1 // pred_region
      %s21 = ssub.s32 18432, 18432
      %22 = vsyncadd [#allocation3], %s21
      %s23 = sshll.u32 [#allocation2], 4
      %s24 = int_to_ptr.vmem [resolvable:$true] %s23
      %29 = dma.hbm_to_vmem [thread:$0]  %s3, 18432, %s24, [#allocation3], 128, 128, 8
    $region17: #{tpu_custom_call.1} parent=1 // pred_fallthru
      _
    // Predicated region
    $region18: #{tpu_custom_call.1} parent=1 // pred_check
      _
    $region19: #{tpu_custom_call.1} parent=1 // pred_check_branch
      %31 = sbr.rel (0) target = $region21
    $region20: #{tpu_custom_call.1} parent=1 // pred_region
      _
    $region21: #{tpu_custom_call.1} parent=1 // pred_fallthru
      _
    // Predicated region
    $region22: #{tpu_custom_call.1} parent=1 // pred_check
      _
    $region23: #{tpu_custom_call.1} parent=1 // pred_check_branch
      %33 = sbr.rel (0) target = $region25
    $region24: #{tpu_custom_call.1} parent=1 // pred_region
      %34 = dma.done [#allocation3], 18432
    $region25: #{tpu_custom_call.1} parent=1 // pred_fallthru
      _
    %v35 = vld [vmem:[%s0] sm:$0xff]
    %v36 = vld [vmem:[%s0 + $0x8] sm:$0xff]
    %v37 = vld [vmem:[%s0 + $0x10] sm:$0x3]
    %v38 = vld [vmem:[%s0 + $0x18] sm:$0xff]
    %v39 = vld [vmem:[%s0 + $0x20] sm:$0xff]
    %v40 = vld [vmem:[%s0 + $0x28] sm:$0x3]
    %v41 = vld [vmem:[%s0 + $0x30] sm:$0xff]
    %v42 = vld [vmem:[%s0 + $0x38] sm:$0xff]
    %v43 = vld [vmem:[%s0 + $0x40] sm:$0x3]
    %v44 = vld [vmem:[%s0 + $0x48] sm:$0xff]
    %v45 = vld [vmem:[%s0 + $0x50] sm:$0xff]
    %v46 = vld [vmem:[%s0 + $0x58] sm:$0x3]
    %v47 = vld [vmem:[%s0 + $0x60] sm:$0xff]
    %v48 = vld [vmem:[%s0 + $0x68] sm:$0xff]
    %v49 = vld [vmem:[%s0 + $0x70] sm:$0x3]
    %v50 = vld [vmem:[%s0 + $0x78] sm:$0xff]
    %v51 = vld [vmem:[%s0 + $0x80] sm:$0xff]
    %v52 = vld [vmem:[%s0 + $0x88] sm:$0x3]
    %v53 = vld [vmem:[%s0 + $0x90] sm:$0xff]
    %v54 = vld [vmem:[%s0 + $0x98] sm:$0xff]
    %v55 = vld [vmem:[%s0 + $0xa0] sm:$0x3]
    %v56 = vld [vmem:[%s0 + $0xa8] sm:$0xff]
    %v57 = vld [vmem:[%s0 + $0xb0] sm:$0xff]
    %v58 = vld [vmem:[%s0 + $0xb8] sm:$0x3]
    %v59 = vld [vmem:[%s0 + $0xc0] sm:$0xff]
    %v60 = vld [vmem:[%s0 + $0xc8] sm:$0xff]
    %v61 = vld [vmem:[%s0 + $0xd0] sm:$0x3]
    %v62 = vld [vmem:[%s0 + $0xd8] sm:$0xff]
    %v63 = vld [vmem:[%s0 + $0xe0] sm:$0xff]
    %v64 = vld [vmem:[%s0 + $0xe8] sm:$0x3]
    %v65 = vld [vmem:[%s0 + $0xf0] sm:$0xff]
    %v66 = vld [vmem:[%s0 + $0xf8] sm:$0xff]
    %v67 = vld [vmem:[%s0 + $0x100] sm:$0x3]
    %v68 = vld [vmem:[%s0 + $0x108] sm:$0xff]
    %v69 = vld [vmem:[%s0 + $0x110] sm:$0xff]
    %v70 = vld [vmem:[%s0 + $0x118] sm:$0x3]
    %v71 = vld [vmem:[%s0 + $0x120] sm:$0xff]
    %v72 = vld [vmem:[%s0 + $0x128] sm:$0xff]
    %v73 = vld [vmem:[%s0 + $0x130] sm:$0x3]
    %v74 = vld [vmem:[%s0 + $0x138] sm:$0xff]
    %v75 = vld [vmem:[%s0 + $0x140] sm:$0xff]
    %v76 = vld [vmem:[%s0 + $0x148] sm:$0x3]
    %v77 = vld [vmem:[%s0 + $0x150] sm:$0xff]
    %v78 = vld [vmem:[%s0 + $0x158] sm:$0xff]
    %v79 = vld [vmem:[%s0 + $0x160] sm:$0x3]
    %v80 = vld [vmem:[%s0 + $0x168] sm:$0xff]
    %v81 = vld [vmem:[%s0 + $0x170] sm:$0xff]
    %v82 = vld [vmem:[%s0 + $0x178] sm:$0x3]
    %v83 = vld [vmem:[%s0 + $0x180] sm:$0xff]
    %v84 = vld [vmem:[%s0 + $0x188] sm:$0xff]
    %v85 = vld [vmem:[%s0 + $0x190] sm:$0x3]
    %v86 = vld [vmem:[%s0 + $0x198] sm:$0xff]
    %v87 = vld [vmem:[%s0 + $0x1a0] sm:$0xff]
    %v88 = vld [vmem:[%s0 + $0x1a8] sm:$0x3]
    %v89 = vld [vmem:[%s0 + $0x1b0] sm:$0xff]
    %v90 = vld [vmem:[%s0 + $0x1b8] sm:$0xff]
    %v91 = vld [vmem:[%s0 + $0x1c0] sm:$0x3]
    %v92 = vld [vmem:[%s0 + $0x1c8] sm:$0xff]
    %v93 = vld [vmem:[%s0 + $0x1d0] sm:$0xff]
    %v94 = vld [vmem:[%s0 + $0x1d8] sm:$0x3]
    %v95 = vld [vmem:[%s0 + $0x1e0] sm:$0xff]
    %v96 = vld [vmem:[%s0 + $0x1e8] sm:$0xff]
    %v97 = vld [vmem:[%s0 + $0x1f0] sm:$0x3]
    %v98 = vld [vmem:[%s0 + $0x1f8] sm:$0xff]
    %v99 = vld [vmem:[%s0 + $0x200] sm:$0xff]
    %v100 = vld [vmem:[%s0 + $0x208] sm:$0x3]
    %v101 = vld [vmem:[%s0 + $0x210] sm:$0xff]
    %v102 = vld [vmem:[%s0 + $0x218] sm:$0xff]
    %v103 = vld [vmem:[%s0 + $0x220] sm:$0x3]
    %v104 = vld [vmem:[%s0 + $0x228] sm:$0xff]
    %v105 = vld [vmem:[%s0 + $0x230] sm:$0xff]
    %v106 = vld [vmem:[%s0 + $0x238] sm:$0x3]
    %v107 = vld [vmem:[%s0 + $0x240] sm:$0xff]
    %v108 = vld [vmem:[%s0 + $0x248] sm:$0xff]
    %v109 = vld [vmem:[%s0 + $0x250] sm:$0x3]
    %v110 = vld [vmem:[%s0 + $0x258] sm:$0xff]
    %v111 = vld [vmem:[%s0 + $0x260] sm:$0xff]
    %v112 = vld [vmem:[%s0 + $0x268] sm:$0x3]
    %v113 = vld [vmem:[%s0 + $0x270] sm:$0xff]
    %v114 = vld [vmem:[%s0 + $0x278] sm:$0xff]
    %v115 = vld [vmem:[%s0 + $0x280] sm:$0x3]
    %v116 = vld [vmem:[%s0 + $0x288] sm:$0xff]
    %v117 = vld [vmem:[%s0 + $0x290] sm:$0xff]
    %v118 = vld [vmem:[%s0 + $0x298] sm:$0x3]
    %v119 = vld [vmem:[%s0 + $0x2a0] sm:$0xff]
    %v120 = vld [vmem:[%s0 + $0x2a8] sm:$0xff]
    %v121 = vld [vmem:[%s0 + $0x2b0] sm:$0x3]
    %v122 = vld [vmem:[%s0 + $0x2b8] sm:$0xff]
    %v123 = vld [vmem:[%s0 + $0x2c0] sm:$0xff]
    %v124 = vld [vmem:[%s0 + $0x2c8] sm:$0x3]
    %v125 = vld [vmem:[%s0 + $0x2d0] sm:$0xff]
    %v126 = vld [vmem:[%s0 + $0x2d8] sm:$0xff]
    %v127 = vld [vmem:[%s0 + $0x2e0] sm:$0x3]
    %v128 = vld [vmem:[%s0 + $0x2e8] sm:$0xff]
    %v129 = vld [vmem:[%s0 + $0x2f0] sm:$0xff]
    %v130 = vld [vmem:[%s0 + $0x2f8] sm:$0x3]
    %v131 = vld [vmem:[%s0 + $0x300] sm:$0xff]
    %v132 = vld [vmem:[%s0 + $0x308] sm:$0xff]
    %v133 = vld [vmem:[%s0 + $0x310] sm:$0x3]
    %v134 = vld [vmem:[%s0 + $0x318] sm:$0xff]
    %v135 = vld [vmem:[%s0 + $0x320] sm:$0xff]
    %v136 = vld [vmem:[%s0 + $0x328] sm:$0x3]
    %v137 = vld [vmem:[%s0 + $0x330] sm:$0xff]
    %v138 = vld [vmem:[%s0 + $0x338] sm:$0xff]
    %v139 = vld [vmem:[%s0 + $0x340] sm:$0x3]
    %v140 = vld [vmem:[%s0 + $0x348] sm:$0xff]
    %v141 = vld [vmem:[%s0 + $0x350] sm:$0xff]
    %v142 = vld [vmem:[%s0 + $0x358] sm:$0x3]
    %v143 = vld [vmem:[%s1] sm:$0xff]
    %v144 = vld [vmem:[%s1 + $0x8] sm:$0xff]
    %v145 = vld [vmem:[%s1 + $0x10] sm:$0xff]
    %v146 = vld [vmem:[%s1 + $0x18] sm:$0xff]
    %v147 = vld [vmem:[%s1 + $0x20] sm:$0xff]
    %v148 = vld [vmem:[%s1 + $0x28] sm:$0xff]
    %v149 = vld [vmem:[%s1 + $0x30] sm:$0xff]
    %v150 = vld [vmem:[%s1 + $0x38] sm:$0xff]
    %v151 = vld [vmem:[%s1 + $0x40] sm:$0xff]
    %v152 = vld [vmem:[%s1 + $0x48] sm:$0xff]
    %v153 = vld [vmem:[%s1 + $0x50] sm:$0xff]
    %v154 = vld [vmem:[%s1 + $0x58] sm:$0xff]
    %v155 = vld [vmem:[%s1 + $0x60] sm:$0xff]
    %v156 = vld [vmem:[%s1 + $0x68] sm:$0xff]
    %v157 = vld [vmem:[%s1 + $0x70] sm:$0xff]
    %v158 = vld [vmem:[%s1 + $0x78] sm:$0xff]
    %v159 = vld [vmem:[%s1 + $0x80] sm:$0xff]
    %v160 = vld [vmem:[%s1 + $0x88] sm:$0xff]
    %v161 = vld [vmem:[%s1 + $0x90] sm:$0xff]
    %v162 = vld [vmem:[%s1 + $0x98] sm:$0xff]
    %v163 = vld [vmem:[%s1 + $0xa0] sm:$0xff]
    %v164 = vld [vmem:[%s1 + $0xa8] sm:$0xff]
    %v165 = vld [vmem:[%s1 + $0xb0] sm:$0xff]
    %v166 = vld [vmem:[%s1 + $0xb8] sm:$0xff]
    %v167 = vld [vmem:[%s1 + $0xc0] sm:$0xff]
    %v168 = vld [vmem:[%s1 + $0xc8] sm:$0xff]
    %v169 = vld [vmem:[%s1 + $0xd0] sm:$0xff]
    %v170 = vld [vmem:[%s1 + $0xd8] sm:$0xff]
    %v171 = vld [vmem:[%s1 + $0xe0] sm:$0xff]
    %v172 = vld [vmem:[%s1 + $0xe8] sm:$0xff]
    %v173 = vld [vmem:[%s1 + $0xf0] sm:$0xff]
    %v174 = vld [vmem:[%s1 + $0xf8] sm:$0xff]
    %v175 = vld [vmem:[%s1 + $0x100] sm:$0xff]
    %v176 = vld [vmem:[%s1 + $0x108] sm:$0xff]
    %v177 = vld [vmem:[%s1 + $0x110] sm:$0xff]
    %v178 = vld [vmem:[%s1 + $0x118] sm:$0xff]
    %v179 = vld [vmem:[%s1 + $0x120] sm:$0xff]
    %v180 = vld [vmem:[%s1 + $0x128] sm:$0xff]
    %v181 = vld [vmem:[%s1 + $0x130] sm:$0xff]
    %v182 = vld [vmem:[%s1 + $0x138] sm:$0xff]
    %v183 = vld [vmem:[%s1 + $0x140] sm:$0xff]
    %v184 = vld [vmem:[%s1 + $0x148] sm:$0xff]
    %v185 = vld [vmem:[%s1 + $0x150] sm:$0xff]
    %v186 = vld [vmem:[%s1 + $0x158] sm:$0xff]
    %v187 = vld [vmem:[%s1 + $0x160] sm:$0xff]
    %v188 = vld [vmem:[%s1 + $0x168] sm:$0xff]
    %v189 = vld [vmem:[%s1 + $0x170] sm:$0xff]
    %v190 = vld [vmem:[%s1 + $0x178] sm:$0xff]
    %v191 = vld [vmem:[%s1 + $0x180] sm:$0xff]
    %v192 = vld [vmem:[%s1 + $0x188] sm:$0xff]
    %v193 = vld [vmem:[%s1 + $0x190] sm:$0xff]
    %v194 = vld [vmem:[%s1 + $0x198] sm:$0xff]
    %v195 = vld [vmem:[%s1 + $0x1a0] sm:$0xff]
    %v196 = vld [vmem:[%s1 + $0x1a8] sm:$0xff]
    %v197 = vld [vmem:[%s1 + $0x1b0] sm:$0xff]
    %v198 = vld [vmem:[%s1 + $0x1b8] sm:$0xff]
    %v199 = vld [vmem:[%s1 + $0x1c0] sm:$0xff]
    %v200 = vld [vmem:[%s1 + $0x1c8] sm:$0xff]
    %v201 = vld [vmem:[%s1 + $0x1d0] sm:$0xff]
    %v202 = vld [vmem:[%s1 + $0x1d8] sm:$0xff]
    %v203 = vld [vmem:[%s1 + $0x1e0] sm:$0xff]
    %v204 = vld [vmem:[%s1 + $0x1e8] sm:$0xff]
    %v205 = vld [vmem:[%s1 + $0x1f0] sm:$0xff]
    %v206 = vld [vmem:[%s1 + $0x1f8] sm:$0xff]
    %v207 = vld [vmem:[%s1 + $0x200] sm:$0xff]
    %v208 = vld [vmem:[%s1 + $0x208] sm:$0xff]
    %v209 = vld [vmem:[%s1 + $0x210] sm:$0xff]
    %v210 = vld [vmem:[%s1 + $0x218] sm:$0xff]
    %v211 = vld [vmem:[%s1 + $0x220] sm:$0xff]
    %v212 = vld [vmem:[%s1 + $0x228] sm:$0xff]
    %v213 = vld [vmem:[%s1 + $0x230] sm:$0xff]
    %v214 = vld [vmem:[%s1 + $0x238] sm:$0xff]
    %v215 = vld [vmem:[%s1 + $0x240] sm:$0xff]
    %v216 = vld [vmem:[%s1 + $0x248] sm:$0xff]
    %v217 = vld [vmem:[%s1 + $0x250] sm:$0xff]
    %v218 = vld [vmem:[%s1 + $0x258] sm:$0xff]
    %v219 = vld [vmem:[%s1 + $0x260] sm:$0xff]
    %v220 = vld [vmem:[%s1 + $0x268] sm:$0xff]
    %v221 = vld [vmem:[%s1 + $0x270] sm:$0xff]
    %v222 = vld [vmem:[%s1 + $0x278] sm:$0xff]
    %v223 = vld [vmem:[%s1 + $0x280] sm:$0xff]
    %v224 = vld [vmem:[%s1 + $0x288] sm:$0xff]
    %v225 = vld [vmem:[%s1 + $0x290] sm:$0xff]
    %v226 = vld [vmem:[%s1 + $0x298] sm:$0xff]
    %v227 = vld [vmem:[%s1 + $0x2a0] sm:$0xff]
    %v228 = vld [vmem:[%s1 + $0x2a8] sm:$0xff]
    %v229 = vld [vmem:[%s1 + $0x2b0] sm:$0xff]
    %v230 = vld [vmem:[%s1 + $0x2b8] sm:$0xff]
    %v231 = vld [vmem:[%s1 + $0x2c0] sm:$0xff]
    %v232 = vld [vmem:[%s1 + $0x2c8] sm:$0xff]
    %v233 = vld [vmem:[%s1 + $0x2d0] sm:$0xff]
    %v234 = vld [vmem:[%s1 + $0x2d8] sm:$0xff]
    %v235 = vld [vmem:[%s1 + $0x2e0] sm:$0xff]
    %v236 = vld [vmem:[%s1 + $0x2e8] sm:$0xff]
    %v237 = vld [vmem:[%s1 + $0x2f0] sm:$0xff]
    %v238 = vld [vmem:[%s1 + $0x2f8] sm:$0xff]
    %v239 = vld [vmem:[%s1 + $0x300] sm:$0xff]
    %v240 = vld [vmem:[%s1 + $0x308] sm:$0xff]
    %v241 = vld [vmem:[%s1 + $0x310] sm:$0xff]
    %v242 = vld [vmem:[%s1 + $0x318] sm:$0xff]
    %v243 = vld [vmem:[%s1 + $0x320] sm:$0xff]
    %v244 = vld [vmem:[%s1 + $0x328] sm:$0xff]
    %v245 = vld [vmem:[%s1 + $0x330] sm:$0xff]
    %v246 = vld [vmem:[%s1 + $0x338] sm:$0xff]
    %v247 = vld [vmem:[%s1 + $0x340] sm:$0xff]
    %v248 = vld [vmem:[%s1 + $0x348] sm:$0xff]
    %v249 = vld [vmem:[%s1 + $0x350] sm:$0xff]
    %v250 = vld [vmem:[%s1 + $0x358] sm:$0xff]
    %v251 = vld [vmem:[%s1 + $0x360] sm:$0xff]
    %v252 = vld [vmem:[%s1 + $0x368] sm:$0xff]
    %v253 = vld [vmem:[%s1 + $0x370] sm:$0xff]
    %v254 = vld [vmem:[%s1 + $0x378] sm:$0xff]
    %v255 = vld [vmem:[%s1 + $0x380] sm:$0xff]
    %v256 = vld [vmem:[%s1 + $0x388] sm:$0xff]
    %v257 = vld [vmem:[%s1 + $0x390] sm:$0xff]
    %v258 = vld [vmem:[%s1 + $0x398] sm:$0xff]
    %v259 = vld [vmem:[%s1 + $0x3a0] sm:$0xff]
    %v260 = vld [vmem:[%s1 + $0x3a8] sm:$0xff]
    %v261 = vld [vmem:[%s1 + $0x3b0] sm:$0xff]
    %v262 = vld [vmem:[%s1 + $0x3b8] sm:$0xff]
    %v263 = vld [vmem:[%s1 + $0x3c0] sm:$0xff]
    %v264 = vld [vmem:[%s1 + $0x3c8] sm:$0xff]
    %v265 = vld [vmem:[%s1 + $0x3d0] sm:$0xff]
    %v266 = vld [vmem:[%s1 + $0x3d8] sm:$0xff]
    %v267 = vld [vmem:[%s1 + $0x3e0] sm:$0xff]
    %v268 = vld [vmem:[%s1 + $0x3e8] sm:$0xff]
    %v269 = vld [vmem:[%s1 + $0x3f0] sm:$0xff]
    %v270 = vld [vmem:[%s1 + $0x3f8] sm:$0xff]
    %v271 = vld [vmem:[%s1 + $0x400] sm:$0xff]
    %v272 = vld [vmem:[%s1 + $0x408] sm:$0xff]
    %v273 = vld [vmem:[%s1 + $0x410] sm:$0xff]
    %v274 = vld [vmem:[%s1 + $0x418] sm:$0xff]
    %v275 = vld [vmem:[%s1 + $0x420] sm:$0xff]
    %v276 = vld [vmem:[%s1 + $0x428] sm:$0xff]
    %v277 = vld [vmem:[%s1 + $0x430] sm:$0xff]
    %v278 = vld [vmem:[%s1 + $0x438] sm:$0xff]
    %v279 = vld [vmem:[%s1 + $0x440] sm:$0xff]
    %v280 = vld [vmem:[%s1 + $0x448] sm:$0xff]
    %v281 = vld [vmem:[%s1 + $0x450] sm:$0xff]
    %v282 = vld [vmem:[%s1 + $0x458] sm:$0xff]
    %v283 = vld [vmem:[%s1 + $0x460] sm:$0xff]
    %v284 = vld [vmem:[%s1 + $0x468] sm:$0xff]
    %v285 = vld [vmem:[%s1 + $0x470] sm:$0xff]
    %v286 = vld [vmem:[%s1 + $0x478] sm:$0xff]
    %vm383 = vcmask 1046528
    %v384 = vrot.slane %v35, 1
    %v385 = vrot.slane %v36, 1
    %v386 = vsel %vm383, %v384, %v385
    %v387 = vrot.slane %v37, 1
    %v388 = vsel %vm383, %v385, %v387
    %v389 = vrot.slane %v38, 1
    %v390 = vrot.slane %v39, 1
    %v391 = vsel %vm383, %v389, %v390
    %v392 = vrot.slane %v40, 1
    %v393 = vsel %vm383, %v390, %v392
    %v394 = vrot.slane %v41, 1
    %v395 = vrot.slane %v42, 1
    %v396 = vsel %vm383, %v394, %v395
    %v397 = vrot.slane %v43, 1
    %v398 = vsel %vm383, %v395, %v397
    %v399 = vrot.slane %v44, 1
    %v400 = vrot.slane %v45, 1
    %v401 = vsel %vm383, %v399, %v400
    %v402 = vrot.slane %v46, 1
    %v403 = vsel %vm383, %v400, %v402
    %v404 = vrot.slane %v47, 1
    %v405 = vrot.slane %v48, 1
    %v406 = vsel %vm383, %v404, %v405
    %v407 = vrot.slane %v49, 1
    %v408 = vsel %vm383, %v405, %v407
    %v409 = vrot.slane %v50, 1
    %v410 = vrot.slane %v51, 1
    %v411 = vsel %vm383, %v409, %v410
    %v412 = vrot.slane %v52, 1
    %v413 = vsel %vm383, %v410, %v412
    %v414 = vrot.slane %v53, 1
    %v415 = vrot.slane %v54, 1
    %v416 = vsel %vm383, %v414, %v415
    %v417 = vrot.slane %v55, 1
    %v418 = vsel %vm383, %v415, %v417
    %v419 = vrot.slane %v56, 1
    %v420 = vrot.slane %v57, 1
    %v421 = vsel %vm383, %v419, %v420
    %v422 = vrot.slane %v58, 1
    %v423 = vsel %vm383, %v420, %v422
    %v424 = vrot.slane %v59, 1
    %v425 = vrot.slane %v60, 1
    %v426 = vsel %vm383, %v424, %v425
    %v427 = vrot.slane %v61, 1
    %v428 = vsel %vm383, %v425, %v427
    %v429 = vrot.slane %v62, 1
    %v430 = vrot.slane %v63, 1
    %v431 = vsel %vm383, %v429, %v430
    %v432 = vrot.slane %v64, 1
    %v433 = vsel %vm383, %v430, %v432
    %v434 = vrot.slane %v65, 1
    %v435 = vrot.slane %v66, 1
    %v436 = vsel %vm383, %v434, %v435
    %v437 = vrot.slane %v67, 1
    %v438 = vsel %vm383, %v435, %v437
    %v439 = vrot.slane %v68, 1
    %v440 = vrot.slane %v69, 1
    %v441 = vsel %vm383, %v439, %v440
    %v442 = vrot.slane %v70, 1
    %v443 = vsel %vm383, %v440, %v442
    %v444 = vrot.slane %v71, 1
    %v445 = vrot.slane %v72, 1
    %v446 = vsel %vm383, %v444, %v445
    %v447 = vrot.slane %v73, 1
    %v448 = vsel %vm383, %v445, %v447
    %v449 = vrot.slane %v74, 1
    %v450 = vrot.slane %v75, 1
    %v451 = vsel %vm383, %v449, %v450
    %v452 = vrot.slane %v76, 1
    %v453 = vsel %vm383, %v450, %v452
    %v454 = vrot.slane %v77, 1
    %v455 = vrot.slane %v78, 1
    %v456 = vsel %vm383, %v454, %v455
    %v457 = vrot.slane %v79, 1
    %v458 = vsel %vm383, %v455, %v457
    %v459 = vrot.slane %v80, 1
    %v460 = vrot.slane %v81, 1
    %v461 = vsel %vm383, %v459, %v460
    %v462 = vrot.slane %v82, 1
    %v463 = vsel %vm383, %v460, %v462
    %v464 = vrot.slane %v89, 1
    %v465 = vrot.slane %v90, 1
    %v466 = vsel %vm383, %v464, %v465
    %v467 = vrot.slane %v91, 1
    %v468 = vsel %vm383, %v465, %v467
    %v469 = vrot.slane %v92, 1
    %v470 = vrot.slane %v93, 1
    %v471 = vsel %vm383, %v469, %v470
    %v472 = vrot.slane %v94, 1
    %v473 = vsel %vm383, %v470, %v472
    %v474 = vrot.slane %v95, 1
    %v475 = vrot.slane %v96, 1
    %v476 = vsel %vm383, %v474, %v475
    %v477 = vrot.slane %v97, 1
    %v478 = vsel %vm383, %v475, %v477
    %v479 = vrot.slane %v98, 1
    %v480 = vrot.slane %v99, 1
    %v481 = vsel %vm383, %v479, %v480
    %v482 = vrot.slane %v100, 1
    %v483 = vsel %vm383, %v480, %v482
    %v484 = vrot.slane %v101, 1
    %v485 = vrot.slane %v102, 1
    %v486 = vsel %vm383, %v484, %v485
    %v487 = vrot.slane %v103, 1
    %v488 = vsel %vm383, %v485, %v487
    %v489 = vrot.slane %v104, 1
    %v490 = vrot.slane %v105, 1
    %v491 = vsel %vm383, %v489, %v490
    %v492 = vrot.slane %v106, 1
    %v493 = vsel %vm383, %v490, %v492
    %v494 = vrot.slane %v107, 1
    %v495 = vrot.slane %v108, 1
    %v496 = vsel %vm383, %v494, %v495
    %v497 = vrot.slane %v109, 1
    %v498 = vsel %vm383, %v495, %v497
    %v499 = vrot.slane %v110, 1
    %v500 = vrot.slane %v111, 1
    %v501 = vsel %vm383, %v499, %v500
    %v502 = vrot.slane %v112, 1
    %v503 = vsel %vm383, %v500, %v502
    %v504 = vrot.slane %v113, 1
    %v505 = vrot.slane %v114, 1
    %v506 = vsel %vm383, %v504, %v505
    %v507 = vrot.slane %v115, 1
    %v508 = vsel %vm383, %v505, %v507
    %v509 = vrot.slane %v116, 1
    %v510 = vrot.slane %v117, 1
    %v511 = vsel %vm383, %v509, %v510
    %v512 = vrot.slane %v118, 1
    %v513 = vsel %vm383, %v510, %v512
    %v514 = vrot.slane %v119, 1
    %v515 = vrot.slane %v120, 1
    %v516 = vsel %vm383, %v514, %v515
    %v517 = vrot.slane %v121, 1
    %v518 = vsel %vm383, %v515, %v517
    %v519 = vrot.slane %v122, 1
    %v520 = vrot.slane %v123, 1
    %v521 = vsel %vm383, %v519, %v520
    %v522 = vrot.slane %v124, 1
    %v523 = vsel %vm383, %v520, %v522
    %v524 = vrot.slane %v125, 1
    %v525 = vrot.slane %v126, 1
    %v526 = vsel %vm383, %v524, %v525
    %v527 = vrot.slane %v127, 1
    %v528 = vsel %vm383, %v525, %v527
    %v529 = vrot.slane %v128, 1
    %v530 = vrot.slane %v129, 1
    %v531 = vsel %vm383, %v529, %v530
    %v532 = vrot.slane %v130, 1
    %v533 = vsel %vm383, %v530, %v532
    %v534 = vrot.slane %v131, 1
    %v535 = vrot.slane %v132, 1
    %v536 = vsel %vm383, %v534, %v535
    %v537 = vrot.slane %v133, 1
    %v538 = vsel %vm383, %v535, %v537
    %v539 = vrot.slane %v134, 1
    %v540 = vrot.slane %v135, 1
    %v541 = vsel %vm383, %v539, %v540
    %v542 = vrot.slane %v136, 1
    %v543 = vsel %vm383, %v540, %v542
    %vm608 = vcmask 1045504
    %v609 = vrot.slane %v35, 2
    %v610 = vrot.slane %v36, 2
    %v611 = vsel %vm608, %v609, %v610
    %v612 = vrot.slane %v37, 2
    %v613 = vsel %vm608, %v610, %v612
    %v614 = vrot.slane %v38, 2
    %v615 = vrot.slane %v39, 2
    %v616 = vsel %vm608, %v614, %v615
    %v617 = vrot.slane %v40, 2
    %v618 = vsel %vm608, %v615, %v617
    %v619 = vrot.slane %v41, 2
    %v620 = vrot.slane %v42, 2
    %v621 = vsel %vm608, %v619, %v620
    %v622 = vrot.slane %v43, 2
    %v623 = vsel %vm608, %v620, %v622
    %v624 = vrot.slane %v44, 2
    %v625 = vrot.slane %v45, 2
    %v626 = vsel %vm608, %v624, %v625
    %v627 = vrot.slane %v46, 2
    %v628 = vsel %vm608, %v625, %v627
    %v629 = vrot.slane %v47, 2
    %v630 = vrot.slane %v48, 2
    %v631 = vsel %vm608, %v629, %v630
    %v632 = vrot.slane %v49, 2
    %v633 = vsel %vm608, %v630, %v632
    %v634 = vrot.slane %v50, 2
    %v635 = vrot.slane %v51, 2
    %v636 = vsel %vm608, %v634, %v635
    %v637 = vrot.slane %v52, 2
    %v638 = vsel %vm608, %v635, %v637
    %v639 = vrot.slane %v53, 2
    %v640 = vrot.slane %v54, 2
    %v641 = vsel %vm608, %v639, %v640
    %v642 = vrot.slane %v55, 2
    %v643 = vsel %vm608, %v640, %v642
    %v644 = vrot.slane %v56, 2
    %v645 = vrot.slane %v57, 2
    %v646 = vsel %vm608, %v644, %v645
    %v647 = vrot.slane %v58, 2
    %v648 = vsel %vm608, %v645, %v647
    %v649 = vrot.slane %v59, 2
    %v650 = vrot.slane %v60, 2
    %v651 = vsel %vm608, %v649, %v650
    %v652 = vrot.slane %v61, 2
    %v653 = vsel %vm608, %v650, %v652
    %v654 = vrot.slane %v62, 2
    %v655 = vrot.slane %v63, 2
    %v656 = vsel %vm608, %v654, %v655
    %v657 = vrot.slane %v64, 2
    %v658 = vsel %vm608, %v655, %v657
    %v659 = vrot.slane %v65, 2
    %v660 = vrot.slane %v66, 2
    %v661 = vsel %vm608, %v659, %v660
    %v662 = vrot.slane %v67, 2
    %v663 = vsel %vm608, %v660, %v662
    %v664 = vrot.slane %v68, 2
    %v665 = vrot.slane %v69, 2
    %v666 = vsel %vm608, %v664, %v665
    %v667 = vrot.slane %v70, 2
    %v668 = vsel %vm608, %v665, %v667
    %v669 = vrot.slane %v71, 2
    %v670 = vrot.slane %v72, 2
    %v671 = vsel %vm608, %v669, %v670
    %v672 = vrot.slane %v73, 2
    %v673 = vsel %vm608, %v670, %v672
    %v674 = vrot.slane %v74, 2
    %v675 = vrot.slane %v75, 2
    %v676 = vsel %vm608, %v674, %v675
    %v677 = vrot.slane %v76, 2
    %v678 = vsel %vm608, %v675, %v677
    %v679 = vrot.slane %v77, 2
    %v680 = vrot.slane %v78, 2
    %v681 = vsel %vm608, %v679, %v680
    %v682 = vrot.slane %v79, 2
    %v683 = vsel %vm608, %v680, %v682
    %v684 = vrot.slane %v80, 2
    %v685 = vrot.slane %v81, 2
    %v686 = vsel %vm608, %v684, %v685
    %v687 = vrot.slane %v82, 2
    %v688 = vsel %vm608, %v685, %v687
    %v689 = vrot.slane %v89, 2
    %v690 = vrot.slane %v90, 2
    %v691 = vsel %vm608, %v689, %v690
    %v692 = vrot.slane %v91, 2
    %v693 = vsel %vm608, %v690, %v692
    %v694 = vrot.slane %v92, 2
    %v695 = vrot.slane %v93, 2
    %v696 = vsel %vm608, %v694, %v695
    %v697 = vrot.slane %v94, 2
    %v698 = vsel %vm608, %v695, %v697
    %v699 = vrot.slane %v95, 2
    %v700 = vrot.slane %v96, 2
    %v701 = vsel %vm608, %v699, %v700
    %v702 = vrot.slane %v97, 2
    %v703 = vsel %vm608, %v700, %v702
    %v704 = vrot.slane %v98, 2
    %v705 = vrot.slane %v99, 2
    %v706 = vsel %vm608, %v704, %v705
    %v707 = vrot.slane %v100, 2
    %v708 = vsel %vm608, %v705, %v707
    %v709 = vrot.slane %v101, 2
    %v710 = vrot.slane %v102, 2
    %v711 = vsel %vm608, %v709, %v710
    %v712 = vrot.slane %v103, 2
    %v713 = vsel %vm608, %v710, %v712
    %v714 = vrot.slane %v104, 2
    %v715 = vrot.slane %v105, 2
    %v716 = vsel %vm608, %v714, %v715
    %v717 = vrot.slane %v106, 2
    %v718 = vsel %vm608, %v715, %v717
    %v719 = vrot.slane %v107, 2
    %v720 = vrot.slane %v108, 2
    %v721 = vsel %vm608, %v719, %v720
    %v722 = vrot.slane %v109, 2
    %v723 = vsel %vm608, %v720, %v722
    %v724 = vrot.slane %v110, 2
    %v725 = vrot.slane %v111, 2
    %v726 = vsel %vm608, %v724, %v725
    %v727 = vrot.slane %v112, 2
    %v728 = vsel %vm608, %v725, %v727
    %v729 = vrot.slane %v113, 2
    %v730 = vrot.slane %v114, 2
    %v731 = vsel %vm608, %v729, %v730
    %v732 = vrot.slane %v115, 2
    %v733 = vsel %vm608, %v730, %v732
    %v734 = vrot.slane %v116, 2
    %v735 = vrot.slane %v117, 2
    %v736 = vsel %vm608, %v734, %v735
    %v737 = vrot.slane %v118, 2
    %v738 = vsel %vm608, %v735, %v737
    %v739 = vrot.slane %v119, 2
    %v740 = vrot.slane %v120, 2
    %v741 = vsel %vm608, %v739, %v740
    %v742 = vrot.slane %v121, 2
    %v743 = vsel %vm608, %v740, %v742
    %v744 = vrot.slane %v122, 2
    %v745 = vrot.slane %v123, 2
    %v746 = vsel %vm608, %v744, %v745
    %v747 = vrot.slane %v124, 2
    %v748 = vsel %vm608, %v745, %v747
    %v749 = vrot.slane %v125, 2
    %v750 = vrot.slane %v126, 2
    %v751 = vsel %vm608, %v749, %v750
    %v752 = vrot.slane %v127, 2
    %v753 = vsel %vm608, %v750, %v752
    %v754 = vrot.slane %v128, 2
    %v755 = vrot.slane %v129, 2
    %v756 = vsel %vm608, %v754, %v755
    %v757 = vrot.slane %v130, 2
    %v758 = vsel %vm608, %v755, %v757
    %v759 = vrot.slane %v131, 2
    %v760 = vrot.slane %v132, 2
    %v761 = vsel %vm608, %v759, %v760
    %v762 = vrot.slane %v133, 2
    %v763 = vsel %vm608, %v760, %v762
    %v764 = vrot.slane %v134, 2
    %v765 = vrot.slane %v135, 2
    %v766 = vsel %vm608, %v764, %v765
    %v767 = vrot.slane %v136, 2
    %v768 = vsel %vm608, %v765, %v767
    %v839 = vrot.slane %v83, 1
    %v840 = vrot.slane %v84, 1
    %v841 = vsel %vm383, %v839, %v840
    %v842 = vrot.slane %v85, 1
    %v843 = vsel %vm383, %v840, %v842
    %v844 = vrot.slane %v137, 1
    %v845 = vrot.slane %v138, 1
    %v846 = vsel %vm383, %v844, %v845
    %v847 = vrot.slane %v139, 1
    %v848 = vsel %vm383, %v845, %v847
    %v853 = vrot.slane %v83, 2
    %v854 = vrot.slane %v84, 2
    %v855 = vsel %vm608, %v853, %v854
    %v856 = vrot.slane %v85, 2
    %v857 = vsel %vm608, %v854, %v856
    %v858 = vrot.slane %v137, 2
    %v859 = vrot.slane %v138, 2
    %v860 = vsel %vm608, %v858, %v859
    %v861 = vrot.slane %v139, 2
    %v862 = vsel %vm608, %v859, %v861
    %v873 = vrot.slane %v86, 1
    %v874 = vrot.slane %v87, 1
    %v875 = vsel %vm383, %v873, %v874
    %v876 = vrot.slane %v88, 1
    %v877 = vsel %vm383, %v874, %v876
    %v878 = vrot.slane %v140, 1
    %v879 = vrot.slane %v141, 1
    %v880 = vsel %vm383, %v878, %v879
    %v881 = vrot.slane %v142, 1
    %v882 = vsel %vm383, %v879, %v881
    %v887 = vrot.slane %v86, 2
    %v888 = vrot.slane %v87, 2
    %v889 = vsel %vm608, %v887, %v888
    %v890 = vrot.slane %v88, 2
    %v891 = vsel %vm608, %v888, %v890
    %v892 = vrot.slane %v140, 2
    %v893 = vrot.slane %v141, 2
    %v894 = vsel %vm608, %v892, %v893
    %v895 = vrot.slane %v142, 2
    %v896 = vsel %vm608, %v893, %v895
    %v901 = vld [vmem:[%s2] sm:$0x1]
    %v903 = vlaneseq
    %v904 = vshrl.u32 %v903, 7
    %v905 = vsub.s32 0, %v904
    %v906 = vrot.slane %v901, %v905
    %908 = vmatprep.subr.mxu0 0.0
    %909 = vmatpush1.msra.mxu0 %v158
    %910 = vmatprep.subr.mxu0 0.0
    %911 = vmatpush1.msra.mxu0 %v157
    %912 = vmatprep.subr.mxu0 0.0
    %913 = vmatpush1.msra.mxu0 %v156
    %914 = vmatprep.subr.mxu0 0.0
    %915 = vmatpush1.msra.mxu0 %v155
    %916 = vmatprep.subr.mxu0 0.0
    %917 = vmatpush1.msra.mxu0 %v154
    %918 = vmatprep.subr.mxu0 0.0
    %919 = vmatpush1.msra.mxu0 %v153
    %920 = vmatprep.subr.mxu0 0.0
    %921 = vmatpush1.msra.mxu0 %v152
    %922 = vmatprep.subr.mxu0 0.0
    %923 = vmatpush1.msra.mxu0 %v151
    %924 = vmatprep.subr.mxu0 0.0
    %925 = vmatpush1.msra.mxu0 %v150
    %926 = vmatprep.subr.mxu0 0.0
    %927 = vmatpush1.msra.mxu0 %v149
    %928 = vmatprep.subr.mxu0 0.0
    %929 = vmatpush1.msra.mxu0 %v148
    %930 = vmatprep.subr.mxu0 0.0
    %931 = vmatpush1.msra.mxu0 %v147
    %932 = vmatprep.subr.mxu0 0.0
    %933 = vmatpush1.msra.mxu0 %v146
    %934 = vmatprep.subr.mxu0 0.0
    %935 = vmatpush1.msra.mxu0 %v145
    %936 = vmatprep.subr.mxu0 0.0
    %937 = vmatpush1.msra.mxu0 %v144
    %938 = vmatprep.subr.mxu0 0.0
    %939 = vmatpush1.msra.mxu0 %v143
    %940 = vmatprep.subr.mxu0 0.0
    %941 = vmatpush2.msra.mxu0 %v174
    %942 = vmatprep.subr.mxu0 0.0
    %943 = vmatpush2.msra.mxu0 %v173
    %944 = vmatprep.subr.mxu0 0.0
    %945 = vmatpush2.msra.mxu0 %v172
    %946 = vmatprep.subr.mxu0 0.0
    %947 = vmatpush2.msra.mxu0 %v171
    %948 = vmatprep.subr.mxu0 0.0
    %949 = vmatpush2.msra.mxu0 %v170
    %950 = vmatprep.subr.mxu0 0.0
    %951 = vmatpush2.msra.mxu0 %v169
    %952 = vmatprep.subr.mxu0 0.0
    %953 = vmatpush2.msra.mxu0 %v168
    %954 = vmatprep.subr.mxu0 0.0
    %955 = vmatpush2.msra.mxu0 %v167
    %956 = vmatprep.subr.mxu0 0.0
    %957 = vmatpush2.msra.mxu0 %v166
    %958 = vmatprep.subr.mxu0 0.0
    %959 = vmatpush2.msra.mxu0 %v165
    %960 = vmatprep.subr.mxu0 0.0
    %961 = vmatpush2.msra.mxu0 %v164
    %962 = vmatprep.subr.mxu0 0.0
    %963 = vmatpush2.msra.mxu0 %v163
    %964 = vmatprep.subr.mxu0 0.0
    %965 = vmatpush2.msra.mxu0 %v162
    %966 = vmatprep.subr.mxu0 0.0
    %967 = vmatpush2.msra.mxu0 %v161
    %968 = vmatprep.subr.mxu0 0.0
    %969 = vmatpush2.msra.mxu0 %v160
    %970 = vmatprep.subr.mxu0 0.0
    %971 = vmatpush2.msra.mxu0 %v159
    %972 = vmatprep.mubr.f32.mxu0 %v386
    %973 = vmatmul.mubr.f32.gmra.mxu0 %v35
    %v974 = vpop.f32.mrf.mxu0
    %v975 = vadd.f32 %v906, %v974
    %v976 = vpop.f32.mrf.mxu0
    %977 = vmatprep.mubr.f32.mxu0 %v388
    %978 = vmatmul.mubr.f32.gmra.mxu0 %v36
    %v979 = vpop.f32.mrf.mxu0
    %v980 = vadd.f32 %v906, %v979
    %v981 = vpop.f32.mrf.mxu0
    %982 = vmatprep.mubr.f32.mxu0 %v391
    %983 = vmatmul.mubr.f32.gmra.mxu0 %v38
    %v984 = vpop.f32.mrf.mxu0
    %v985 = vadd.f32 %v906, %v984
    %v986 = vpop.f32.mrf.mxu0
    %987 = vmatprep.mubr.f32.mxu0 %v393
    %988 = vmatmul.mubr.f32.gmra.mxu0 %v39
    %v989 = vpop.f32.mrf.mxu0
    %v990 = vadd.f32 %v906, %v989
    %v991 = vpop.f32.mrf.mxu0
    %992 = vmatprep.mubr.f32.mxu0 %v396
    %993 = vmatmul.mubr.f32.gmra.mxu0 %v41
    %v994 = vpop.f32.mrf.mxu0
    %v995 = vadd.f32 %v906, %v994
    %v996 = vpop.f32.mrf.mxu0
    %997 = vmatprep.mubr.f32.mxu0 %v398
    %998 = vmatmul.mubr.f32.gmra.mxu0 %v42
    %v999 = vpop.f32.mrf.mxu0
    %v1000 = vadd.f32 %v906, %v999
    %v1001 = vpop.f32.mrf.mxu0
    %1002 = vmatprep.mubr.f32.mxu0 %v401
    %1003 = vmatmul.mubr.f32.gmra.mxu0 %v44
    %v1004 = vpop.f32.mrf.mxu0
    %v1005 = vadd.f32 %v906, %v1004
    %v1006 = vpop.f32.mrf.mxu0
    %1007 = vmatprep.mubr.f32.mxu0 %v403
    %1008 = vmatmul.mubr.f32.gmra.mxu0 %v45
    %v1009 = vpop.f32.mrf.mxu0
    %v1010 = vadd.f32 %v906, %v1009
    %v1011 = vpop.f32.mrf.mxu0
    %1012 = vmatprep.mubr.f32.mxu0 %v406
    %1013 = vmatmul.mubr.f32.gmra.mxu0 %v47
    %v1014 = vpop.f32.mrf.mxu0
    %v1015 = vadd.f32 %v906, %v1014
    %v1016 = vpop.f32.mrf.mxu0
    %1017 = vmatprep.mubr.f32.mxu0 %v408
    %1018 = vmatmul.mubr.f32.gmra.mxu0 %v48
    %v1019 = vpop.f32.mrf.mxu0
    %v1020 = vadd.f32 %v906, %v1019
    %v1021 = vpop.f32.mrf.mxu0
    %1022 = vmatprep.mubr.f32.mxu0 %v411
    %1023 = vmatmul.mubr.f32.gmra.mxu0 %v50
    %v1024 = vpop.f32.mrf.mxu0
    %v1025 = vadd.f32 %v906, %v1024
    %v1026 = vpop.f32.mrf.mxu0
    %1027 = vmatprep.mubr.f32.mxu0 %v413
    %1028 = vmatmul.mubr.f32.gmra.mxu0 %v51
    %v1029 = vpop.f32.mrf.mxu0
    %v1030 = vadd.f32 %v906, %v1029
    %v1031 = vpop.f32.mrf.mxu0
    %1032 = vmatprep.mubr.f32.mxu0 %v416
    %1033 = vmatmul.mubr.f32.gmra.mxu0 %v53
    %v1034 = vpop.f32.mrf.mxu0
    %v1035 = vadd.f32 %v906, %v1034
    %v1036 = vpop.f32.mrf.mxu0
    %1037 = vmatprep.mubr.f32.mxu0 %v418
    %1038 = vmatmul.mubr.f32.gmra.mxu0 %v54
    %v1039 = vpop.f32.mrf.mxu0
    %v1040 = vadd.f32 %v906, %v1039
    %v1041 = vpop.f32.mrf.mxu0
    %1042 = vmatprep.mubr.f32.mxu0 %v421
    %1043 = vmatmul.mubr.f32.gmra.mxu0 %v56
    %v1044 = vpop.f32.mrf.mxu0
    %v1045 = vadd.f32 %v906, %v1044
    %v1046 = vpop.f32.mrf.mxu0
    %1047 = vmatprep.mubr.f32.mxu0 %v423
    %1048 = vmatmul.mubr.f32.gmra.mxu0 %v57
    %v1049 = vpop.f32.mrf.mxu0
    %v1050 = vadd.f32 %v906, %v1049
    %v1051 = vpop.f32.mrf.mxu0
    %1052 = vmatprep.mubr.f32.mxu0 %v426
    %1053 = vmatmul.mubr.f32.gmra.mxu0 %v59
    %v1054 = vpop.f32.mrf.mxu0
    %v1055 = vadd.f32 %v906, %v1054
    %v1056 = vpop.f32.mrf.mxu0
    %1057 = vmatprep.mubr.f32.mxu0 %v428
    %1058 = vmatmul.mubr.f32.gmra.mxu0 %v60
    %v1059 = vpop.f32.mrf.mxu0
    %v1060 = vadd.f32 %v906, %v1059
    %v1061 = vpop.f32.mrf.mxu0
    %1062 = vmatprep.mubr.f32.mxu0 %v431
    %1063 = vmatmul.mubr.f32.gmra.mxu0 %v62
    %v1064 = vpop.f32.mrf.mxu0
    %v1065 = vadd.f32 %v906, %v1064
    %v1066 = vpop.f32.mrf.mxu0
    %1067 = vmatprep.mubr.f32.mxu0 %v433
    %1068 = vmatmul.mubr.f32.gmra.mxu0 %v63
    %v1069 = vpop.f32.mrf.mxu0
    %v1070 = vadd.f32 %v906, %v1069
    %v1071 = vpop.f32.mrf.mxu0
    %1072 = vmatprep.mubr.f32.mxu0 %v436
    %1073 = vmatmul.mubr.f32.gmra.mxu0 %v65
    %v1074 = vpop.f32.mrf.mxu0
    %v1075 = vadd.f32 %v906, %v1074
    %v1076 = vpop.f32.mrf.mxu0
    %1077 = vmatprep.mubr.f32.mxu0 %v438
    %1078 = vmatmul.mubr.f32.gmra.mxu0 %v66
    %v1079 = vpop.f32.mrf.mxu0
    %v1080 = vadd.f32 %v906, %v1079
    %v1081 = vpop.f32.mrf.mxu0
    %1082 = vmatprep.mubr.f32.mxu0 %v441
    %1083 = vmatmul.mubr.f32.gmra.mxu0 %v68
    %v1084 = vpop.f32.mrf.mxu0
    %v1085 = vadd.f32 %v906, %v1084
    %v1086 = vpop.f32.mrf.mxu0
    %1087 = vmatprep.mubr.f32.mxu0 %v443
    %1088 = vmatmul.mubr.f32.gmra.mxu0 %v69
    %v1089 = vpop.f32.mrf.mxu0
    %v1090 = vadd.f32 %v906, %v1089
    %v1091 = vpop.f32.mrf.mxu0
    %1092 = vmatprep.mubr.f32.mxu0 %v446
    %1093 = vmatmul.mubr.f32.gmra.mxu0 %v71
    %v1094 = vpop.f32.mrf.mxu0
    %v1095 = vadd.f32 %v906, %v1094
    %v1096 = vpop.f32.mrf.mxu0
    %1097 = vmatprep.mubr.f32.mxu0 %v448
    %1098 = vmatmul.mubr.f32.gmra.mxu0 %v72
    %v1099 = vpop.f32.mrf.mxu0
    %v1100 = vadd.f32 %v906, %v1099
    %v1101 = vpop.f32.mrf.mxu0
    %1102 = vmatprep.mubr.f32.mxu0 %v451
    %1103 = vmatmul.mubr.f32.gmra.mxu0 %v74
    %v1104 = vpop.f32.mrf.mxu0
    %v1105 = vadd.f32 %v906, %v1104
    %v1106 = vpop.f32.mrf.mxu0
    %1107 = vmatprep.mubr.f32.mxu0 %v453
    %1108 = vmatmul.mubr.f32.gmra.mxu0 %v75
    %v1109 = vpop.f32.mrf.mxu0
    %v1110 = vadd.f32 %v906, %v1109
    %v1111 = vpop.f32.mrf.mxu0
    %1112 = vmatprep.mubr.f32.mxu0 %v456
    %1113 = vmatmul.mubr.f32.gmra.mxu0 %v77
    %v1114 = vpop.f32.mrf.mxu0
    %v1115 = vadd.f32 %v906, %v1114
    %v1116 = vpop.f32.mrf.mxu0
    %1117 = vmatprep.mubr.f32.mxu0 %v458
    %1118 = vmatmul.mubr.f32.gmra.mxu0 %v78
    %v1119 = vpop.f32.mrf.mxu0
    %v1120 = vadd.f32 %v906, %v1119
    %v1121 = vpop.f32.mrf.mxu0
    %1122 = vmatprep.mubr.f32.mxu0 %v461
    %1123 = vmatmul.mubr.f32.gmra.mxu0 %v80
    %v1124 = vpop.f32.mrf.mxu0
    %v1125 = vadd.f32 %v906, %v1124
    %v1126 = vpop.f32.mrf.mxu0
    %1127 = vmatprep.mubr.f32.mxu0 %v463
    %1128 = vmatmul.mubr.f32.gmra.mxu0 %v81
    %v1129 = vpop.f32.mrf.mxu0
    %v1130 = vadd.f32 %v906, %v1129
    %v1131 = vpop.f32.mrf.mxu0
    %1132 = vmatprep.mubr.f32.mxu0 %v466
    %1133 = vmatmul.mubr.f32.gmra.mxu0 %v89
    %v1134 = vpop.f32.mrf.mxu0
    %v1135 = vadd.f32 %v906, %v1134
    %v1136 = vpop.f32.mrf.mxu0
    %1137 = vmatprep.mubr.f32.mxu0 %v468
    %1138 = vmatmul.mubr.f32.gmra.mxu0 %v90
    %v1139 = vpop.f32.mrf.mxu0
    %v1140 = vadd.f32 %v906, %v1139
    %v1141 = vpop.f32.mrf.mxu0
    %1142 = vmatprep.mubr.f32.mxu0 %v471
    %1143 = vmatmul.mubr.f32.gmra.mxu0 %v92
    %v1144 = vpop.f32.mrf.mxu0
    %v1145 = vadd.f32 %v906, %v1144
    %v1146 = vpop.f32.mrf.mxu0
    %1147 = vmatprep.mubr.f32.mxu0 %v473
    %1148 = vmatmul.mubr.f32.gmra.mxu0 %v93
    %v1149 = vpop.f32.mrf.mxu0
    %v1150 = vadd.f32 %v906, %v1149
    %v1151 = vpop.f32.mrf.mxu0
    %1152 = vmatprep.mubr.f32.mxu0 %v476
    %1153 = vmatmul.mubr.f32.gmra.mxu0 %v95
    %v1154 = vpop.f32.mrf.mxu0
    %v1155 = vadd.f32 %v906, %v1154
    %v1156 = vpop.f32.mrf.mxu0
    %1157 = vmatprep.mubr.f32.mxu0 %v478
    %1158 = vmatmul.mubr.f32.gmra.mxu0 %v96
    %v1159 = vpop.f32.mrf.mxu0
    %v1160 = vadd.f32 %v906, %v1159
    %v1161 = vpop.f32.mrf.mxu0
    %1162 = vmatprep.mubr.f32.mxu0 %v481
    %1163 = vmatmul.mubr.f32.gmra.mxu0 %v98
    %v1164 = vpop.f32.mrf.mxu0
    %v1165 = vadd.f32 %v906, %v1164
    %v1166 = vpop.f32.mrf.mxu0
    %1167 = vmatprep.mubr.f32.mxu0 %v483
    %1168 = vmatmul.mubr.f32.gmra.mxu0 %v99
    %v1169 = vpop.f32.mrf.mxu0
    %v1170 = vadd.f32 %v906, %v1169
    %v1171 = vpop.f32.mrf.mxu0
    %1172 = vmatprep.mubr.f32.mxu0 %v486
    %1173 = vmatmul.mubr.f32.gmra.mxu0 %v101
    %v1174 = vpop.f32.mrf.mxu0
    %v1175 = vadd.f32 %v906, %v1174
    %v1176 = vpop.f32.mrf.mxu0
    %1177 = vmatprep.mubr.f32.mxu0 %v488
    %1178 = vmatmul.mubr.f32.gmra.mxu0 %v102
    %v1179 = vpop.f32.mrf.mxu0
    %v1180 = vadd.f32 %v906, %v1179
    %v1181 = vpop.f32.mrf.mxu0
    %1182 = vmatprep.mubr.f32.mxu0 %v491
    %1183 = vmatmul.mubr.f32.gmra.mxu0 %v104
    %v1184 = vpop.f32.mrf.mxu0
    %v1185 = vadd.f32 %v906, %v1184
    %v1186 = vpop.f32.mrf.mxu0
    %1187 = vmatprep.mubr.f32.mxu0 %v493
    %1188 = vmatmul.mubr.f32.gmra.mxu0 %v105
    %v1189 = vpop.f32.mrf.mxu0
    %v1190 = vadd.f32 %v906, %v1189
    %v1191 = vpop.f32.mrf.mxu0
    %1192 = vmatprep.mubr.f32.mxu0 %v496
    %1193 = vmatmul.mubr.f32.gmra.mxu0 %v107
    %v1194 = vpop.f32.mrf.mxu0
    %v1195 = vadd.f32 %v906, %v1194
    %v1196 = vpop.f32.mrf.mxu0
    %1197 = vmatprep.mubr.f32.mxu0 %v498
    %1198 = vmatmul.mubr.f32.gmra.mxu0 %v108
    %v1199 = vpop.f32.mrf.mxu0
    %v1200 = vadd.f32 %v906, %v1199
    %v1201 = vpop.f32.mrf.mxu0
    %1202 = vmatprep.mubr.f32.mxu0 %v501
    %1203 = vmatmul.mubr.f32.gmra.mxu0 %v110
    %v1204 = vpop.f32.mrf.mxu0
    %v1205 = vadd.f32 %v906, %v1204
    %v1206 = vpop.f32.mrf.mxu0
    %1207 = vmatprep.mubr.f32.mxu0 %v503
    %1208 = vmatmul.mubr.f32.gmra.mxu0 %v111
    %v1209 = vpop.f32.mrf.mxu0
    %v1210 = vadd.f32 %v906, %v1209
    %v1211 = vpop.f32.mrf.mxu0
    %1212 = vmatprep.mubr.f32.mxu0 %v506
    %1213 = vmatmul.mubr.f32.gmra.mxu0 %v113
    %v1214 = vpop.f32.mrf.mxu0
    %v1215 = vadd.f32 %v906, %v1214
    %v1216 = vpop.f32.mrf.mxu0
    %1217 = vmatprep.mubr.f32.mxu0 %v508
    %1218 = vmatmul.mubr.f32.gmra.mxu0 %v114
    %v1219 = vpop.f32.mrf.mxu0
    %v1220 = vadd.f32 %v906, %v1219
    %v1221 = vpop.f32.mrf.mxu0
    %1222 = vmatprep.mubr.f32.mxu0 %v511
    %1223 = vmatmul.mubr.f32.gmra.mxu0 %v116
    %v1224 = vpop.f32.mrf.mxu0
    %v1225 = vadd.f32 %v906, %v1224
    %v1226 = vpop.f32.mrf.mxu0
    %1227 = vmatprep.mubr.f32.mxu0 %v513
    %1228 = vmatmul.mubr.f32.gmra.mxu0 %v117
    %v1229 = vpop.f32.mrf.mxu0
    %v1230 = vadd.f32 %v906, %v1229
    %v1231 = vpop.f32.mrf.mxu0
    %1232 = vmatprep.mubr.f32.mxu0 %v516
    %1233 = vmatmul.mubr.f32.gmra.mxu0 %v119
    %v1234 = vpop.f32.mrf.mxu0
    %v1235 = vadd.f32 %v906, %v1234
    %v1236 = vpop.f32.mrf.mxu0
    %1237 = vmatprep.mubr.f32.mxu0 %v518
    %1238 = vmatmul.mubr.f32.gmra.mxu0 %v120
    %v1239 = vpop.f32.mrf.mxu0
    %v1240 = vadd.f32 %v906, %v1239
    %v1241 = vpop.f32.mrf.mxu0
    %1242 = vmatprep.mubr.f32.mxu0 %v521
    %1243 = vmatmul.mubr.f32.gmra.mxu0 %v122
    %v1244 = vpop.f32.mrf.mxu0
    %v1245 = vadd.f32 %v906, %v1244
    %v1246 = vpop.f32.mrf.mxu0
    %1247 = vmatprep.mubr.f32.mxu0 %v523
    %1248 = vmatmul.mubr.f32.gmra.mxu0 %v123
    %v1249 = vpop.f32.mrf.mxu0
    %v1250 = vadd.f32 %v906, %v1249
    %v1251 = vpop.f32.mrf.mxu0
    %1252 = vmatprep.mubr.f32.mxu0 %v526
    %1253 = vmatmul.mubr.f32.gmra.mxu0 %v125
    %v1254 = vpop.f32.mrf.mxu0
    %v1255 = vadd.f32 %v906, %v1254
    %v1256 = vpop.f32.mrf.mxu0
    %1257 = vmatprep.mubr.f32.mxu0 %v528
    %1258 = vmatmul.mubr.f32.gmra.mxu0 %v126
    %v1259 = vpop.f32.mrf.mxu0
    %v1260 = vadd.f32 %v906, %v1259
    %v1261 = vpop.f32.mrf.mxu0
    %1262 = vmatprep.mubr.f32.mxu0 %v531
    %1263 = vmatmul.mubr.f32.gmra.mxu0 %v128
    %v1264 = vpop.f32.mrf.mxu0
    %v1265 = vadd.f32 %v906, %v1264
    %v1266 = vpop.f32.mrf.mxu0
    %1267 = vmatprep.mubr.f32.mxu0 %v533
    %1268 = vmatmul.mubr.f32.gmra.mxu0 %v129
    %v1269 = vpop.f32.mrf.mxu0
    %v1270 = vadd.f32 %v906, %v1269
    %v1271 = vpop.f32.mrf.mxu0
    %1272 = vmatprep.mubr.f32.mxu0 %v536
    %1273 = vmatmul.mubr.f32.gmra.mxu0 %v131
    %v1274 = vpop.f32.mrf.mxu0
    %v1275 = vadd.f32 %v906, %v1274
    %v1276 = vpop.f32.mrf.mxu0
    %1277 = vmatprep.mubr.f32.mxu0 %v538
    %1278 = vmatmul.mubr.f32.gmra.mxu0 %v132
    %v1279 = vpop.f32.mrf.mxu0
    %v1280 = vadd.f32 %v906, %v1279
    %v1281 = vpop.f32.mrf.mxu0
    %1282 = vmatprep.mubr.f32.mxu0 %v541
    %1283 = vmatmul.mubr.f32.gmra.mxu0 %v134
    %v1284 = vpop.f32.mrf.mxu0
    %v1285 = vadd.f32 %v906, %v1284
    %v1286 = vpop.f32.mrf.mxu0
    %1287 = vmatprep.mubr.f32.mxu0 %v543
    %1288 = vmatmul.mubr.f32.gmra.mxu0 %v135
    %v1289 = vpop.f32.mrf.mxu0
    %v1290 = vadd.f32 %v906, %v1289
    %v1291 = vpop.f32.mrf.mxu0
    %1292 = vdwg.mxu0
    %1293 = vmatprep.subr.mxu0 0.0
    %1294 = vmatpush1.msra.mxu0 %v190
    %1295 = vmatprep.subr.mxu0 0.0
    %1296 = vmatpush1.msra.mxu0 %v189
    %1297 = vmatprep.subr.mxu0 0.0
    %1298 = vmatpush1.msra.mxu0 %v188
    %1299 = vmatprep.subr.mxu0 0.0
    %1300 = vmatpush1.msra.mxu0 %v187
    %1301 = vmatprep.subr.mxu0 0.0
    %1302 = vmatpush1.msra.mxu0 %v186
    %1303 = vmatprep.subr.mxu0 0.0
    %1304 = vmatpush1.msra.mxu0 %v185
    %1305 = vmatprep.subr.mxu0 0.0
    %1306 = vmatpush1.msra.mxu0 %v184
    %1307 = vmatprep.subr.mxu0 0.0
    %1308 = vmatpush1.msra.mxu0 %v183
    %1309 = vmatprep.subr.mxu0 0.0
    %1310 = vmatpush1.msra.mxu0 %v182
    %1311 = vmatprep.subr.mxu0 0.0
    %1312 = vmatpush1.msra.mxu0 %v181
    %1313 = vmatprep.subr.mxu0 0.0
    %1314 = vmatpush1.msra.mxu0 %v180
    %1315 = vmatprep.subr.mxu0 0.0
    %1316 = vmatpush1.msra.mxu0 %v179
    %1317 = vmatprep.subr.mxu0 0.0
    %1318 = vmatpush1.msra.mxu0 %v178
    %1319 = vmatprep.subr.mxu0 0.0
    %1320 = vmatpush1.msra.mxu0 %v177
    %1321 = vmatprep.subr.mxu0 0.0
    %1322 = vmatpush1.msra.mxu0 %v176
    %1323 = vmatprep.subr.mxu0 0.0
    %1324 = vmatpush1.msra.mxu0 %v175
    %1325 = vmatprep.subr.mxu0 0.0
    %1326 = vmatpush2.msra.mxu0 %v206
    %1327 = vmatprep.subr.mxu0 0.0
    %1328 = vmatpush2.msra.mxu0 %v205
    %1329 = vmatprep.subr.mxu0 0.0
    %1330 = vmatpush2.msra.mxu0 %v204
    %1331 = vmatprep.subr.mxu0 0.0
    %1332 = vmatpush2.msra.mxu0 %v203
    %1333 = vmatprep.subr.mxu0 0.0
    %1334 = vmatpush2.msra.mxu0 %v202
    %1335 = vmatprep.subr.mxu0 0.0
    %1336 = vmatpush2.msra.mxu0 %v201
    %1337 = vmatprep.subr.mxu0 0.0
    %1338 = vmatpush2.msra.mxu0 %v200
    %1339 = vmatprep.subr.mxu0 0.0
    %1340 = vmatpush2.msra.mxu0 %v199
    %1341 = vmatprep.subr.mxu0 0.0
    %1342 = vmatpush2.msra.mxu0 %v198
    %1343 = vmatprep.subr.mxu0 0.0
    %1344 = vmatpush2.msra.mxu0 %v197
    %1345 = vmatprep.subr.mxu0 0.0
    %1346 = vmatpush2.msra.mxu0 %v196
    %1347 = vmatprep.subr.mxu0 0.0
    %1348 = vmatpush2.msra.mxu0 %v195
    %1349 = vmatprep.subr.mxu0 0.0
    %1350 = vmatpush2.msra.mxu0 %v194
    %1351 = vmatprep.subr.mxu0 0.0
    %1352 = vmatpush2.msra.mxu0 %v193
    %1353 = vmatprep.subr.mxu0 0.0
    %1354 = vmatpush2.msra.mxu0 %v192
    %1355 = vmatprep.subr.mxu0 0.0
    %1356 = vmatpush2.msra.mxu0 %v191
    %1357 = vmatprep.mubr.f32.mxu0 %v38
    %1358 = vmatmul.mubr.f32.gmra.mxu0 %v611
    %v1359 = vpop.f32.mrf.mxu0
    %v1360 = vadd.f32 %v975, %v1359
    %v1361 = vpop.f32.mrf.mxu0
    %1362 = vmatprep.mubr.f32.mxu0 %v39
    %1363 = vmatmul.mubr.f32.gmra.mxu0 %v613
    %v1364 = vpop.f32.mrf.mxu0
    %v1365 = vadd.f32 %v980, %v1364
    %v1366 = vpop.f32.mrf.mxu0
    %1367 = vmatprep.mubr.f32.mxu0 %v41
    %1368 = vmatmul.mubr.f32.gmra.mxu0 %v616
    %v1369 = vpop.f32.mrf.mxu0
    %v1370 = vadd.f32 %v985, %v1369
    %v1371 = vpop.f32.mrf.mxu0
    %1372 = vmatprep.mubr.f32.mxu0 %v42
    %1373 = vmatmul.mubr.f32.gmra.mxu0 %v618
    %v1374 = vpop.f32.mrf.mxu0
    %v1375 = vadd.f32 %v990, %v1374
    %v1376 = vpop.f32.mrf.mxu0
    %1377 = vmatprep.mubr.f32.mxu0 %v44
    %1378 = vmatmul.mubr.f32.gmra.mxu0 %v621
    %v1379 = vpop.f32.mrf.mxu0
    %v1380 = vadd.f32 %v995, %v1379
    %v1381 = vpop.f32.mrf.mxu0
    %1382 = vmatprep.mubr.f32.mxu0 %v45
    %1383 = vmatmul.mubr.f32.gmra.mxu0 %v623
    %v1384 = vpop.f32.mrf.mxu0
    %v1385 = vadd.f32 %v1000, %v1384
    %v1386 = vpop.f32.mrf.mxu0
    %1387 = vmatprep.mubr.f32.mxu0 %v47
    %1388 = vmatmul.mubr.f32.gmra.mxu0 %v626
    %v1389 = vpop.f32.mrf.mxu0
    %v1390 = vadd.f32 %v1005, %v1389
    %v1391 = vpop.f32.mrf.mxu0
    %1392 = vmatprep.mubr.f32.mxu0 %v48
    %1393 = vmatmul.mubr.f32.gmra.mxu0 %v628
    %v1394 = vpop.f32.mrf.mxu0
    %v1395 = vadd.f32 %v1010, %v1394
    %v1396 = vpop.f32.mrf.mxu0
    %1397 = vmatprep.mubr.f32.mxu0 %v50
    %1398 = vmatmul.mubr.f32.gmra.mxu0 %v631
    %v1399 = vpop.f32.mrf.mxu0
    %v1400 = vadd.f32 %v1015, %v1399
    %v1401 = vpop.f32.mrf.mxu0
    %1402 = vmatprep.mubr.f32.mxu0 %v51
    %1403 = vmatmul.mubr.f32.gmra.mxu0 %v633
    %v1404 = vpop.f32.mrf.mxu0
    %v1405 = vadd.f32 %v1020, %v1404
    %v1406 = vpop.f32.mrf.mxu0
    %1407 = vmatprep.mubr.f32.mxu0 %v53
    %1408 = vmatmul.mubr.f32.gmra.mxu0 %v636
    %v1409 = vpop.f32.mrf.mxu0
    %v1410 = vadd.f32 %v1025, %v1409
    %v1411 = vpop.f32.mrf.mxu0
    %1412 = vmatprep.mubr.f32.mxu0 %v54
    %1413 = vmatmul.mubr.f32.gmra.mxu0 %v638
    %v1414 = vpop.f32.mrf.mxu0
    %v1415 = vadd.f32 %v1030, %v1414
    %v1416 = vpop.f32.mrf.mxu0
    %1417 = vmatprep.mubr.f32.mxu0 %v56
    %1418 = vmatmul.mubr.f32.gmra.mxu0 %v641
    %v1419 = vpop.f32.mrf.mxu0
    %v1420 = vadd.f32 %v1035, %v1419
    %v1421 = vpop.f32.mrf.mxu0
    %1422 = vmatprep.mubr.f32.mxu0 %v57
    %1423 = vmatmul.mubr.f32.gmra.mxu0 %v643
    %v1424 = vpop.f32.mrf.mxu0
    %v1425 = vadd.f32 %v1040, %v1424
    %v1426 = vpop.f32.mrf.mxu0
    %1427 = vmatprep.mubr.f32.mxu0 %v59
    %1428 = vmatmul.mubr.f32.gmra.mxu0 %v646
    %v1429 = vpop.f32.mrf.mxu0
    %v1430 = vadd.f32 %v1045, %v1429
    %v1431 = vpop.f32.mrf.mxu0
    %1432 = vmatprep.mubr.f32.mxu0 %v60
    %1433 = vmatmul.mubr.f32.gmra.mxu0 %v648
    %v1434 = vpop.f32.mrf.mxu0
    %v1435 = vadd.f32 %v1050, %v1434
    %v1436 = vpop.f32.mrf.mxu0
    %1437 = vmatprep.mubr.f32.mxu0 %v62
    %1438 = vmatmul.mubr.f32.gmra.mxu0 %v651
    %v1439 = vpop.f32.mrf.mxu0
    %v1440 = vadd.f32 %v1055, %v1439
    %v1441 = vpop.f32.mrf.mxu0
    %1442 = vmatprep.mubr.f32.mxu0 %v63
    %1443 = vmatmul.mubr.f32.gmra.mxu0 %v653
    %v1444 = vpop.f32.mrf.mxu0
    %v1445 = vadd.f32 %v1060, %v1444
    %v1446 = vpop.f32.mrf.mxu0
    %1447 = vmatprep.mubr.f32.mxu0 %v65
    %1448 = vmatmul.mubr.f32.gmra.mxu0 %v656
    %v1449 = vpop.f32.mrf.mxu0
    %v1450 = vadd.f32 %v1065, %v1449
    %v1451 = vpop.f32.mrf.mxu0
    %1452 = vmatprep.mubr.f32.mxu0 %v66
    %1453 = vmatmul.mubr.f32.gmra.mxu0 %v658
    %v1454 = vpop.f32.mrf.mxu0
    %v1455 = vadd.f32 %v1070, %v1454
    %v1456 = vpop.f32.mrf.mxu0
    %1457 = vmatprep.mubr.f32.mxu0 %v68
    %1458 = vmatmul.mubr.f32.gmra.mxu0 %v661
    %v1459 = vpop.f32.mrf.mxu0
    %v1460 = vadd.f32 %v1075, %v1459
    %v1461 = vpop.f32.mrf.mxu0
    %1462 = vmatprep.mubr.f32.mxu0 %v69
    %1463 = vmatmul.mubr.f32.gmra.mxu0 %v663
    %v1464 = vpop.f32.mrf.mxu0
    %v1465 = vadd.f32 %v1080, %v1464
    %v1466 = vpop.f32.mrf.mxu0
    %1467 = vmatprep.mubr.f32.mxu0 %v71
    %1468 = vmatmul.mubr.f32.gmra.mxu0 %v666
    %v1469 = vpop.f32.mrf.mxu0
    %v1470 = vadd.f32 %v1085, %v1469
    %v1471 = vpop.f32.mrf.mxu0
    %1472 = vmatprep.mubr.f32.mxu0 %v72
    %1473 = vmatmul.mubr.f32.gmra.mxu0 %v668
    %v1474 = vpop.f32.mrf.mxu0
    %v1475 = vadd.f32 %v1090, %v1474
    %v1476 = vpop.f32.mrf.mxu0
    %1477 = vmatprep.mubr.f32.mxu0 %v74
    %1478 = vmatmul.mubr.f32.gmra.mxu0 %v671
    %v1479 = vpop.f32.mrf.mxu0
    %v1480 = vadd.f32 %v1095, %v1479
    %v1481 = vpop.f32.mrf.mxu0
    %1482 = vmatprep.mubr.f32.mxu0 %v75
    %1483 = vmatmul.mubr.f32.gmra.mxu0 %v673
    %v1484 = vpop.f32.mrf.mxu0
    %v1485 = vadd.f32 %v1100, %v1484
    %v1486 = vpop.f32.mrf.mxu0
    %1487 = vmatprep.mubr.f32.mxu0 %v77
    %1488 = vmatmul.mubr.f32.gmra.mxu0 %v676
    %v1489 = vpop.f32.mrf.mxu0
    %v1490 = vadd.f32 %v1105, %v1489
    %v1491 = vpop.f32.mrf.mxu0
    %1492 = vmatprep.mubr.f32.mxu0 %v78
    %1493 = vmatmul.mubr.f32.gmra.mxu0 %v678
    %v1494 = vpop.f32.mrf.mxu0
    %v1495 = vadd.f32 %v1110, %v1494
    %v1496 = vpop.f32.mrf.mxu0
    %1497 = vmatprep.mubr.f32.mxu0 %v80
    %1498 = vmatmul.mubr.f32.gmra.mxu0 %v681
    %v1499 = vpop.f32.mrf.mxu0
    %v1500 = vadd.f32 %v1115, %v1499
    %v1501 = vpop.f32.mrf.mxu0
    %1502 = vmatprep.mubr.f32.mxu0 %v81
    %1503 = vmatmul.mubr.f32.gmra.mxu0 %v683
    %v1504 = vpop.f32.mrf.mxu0
    %v1505 = vadd.f32 %v1120, %v1504
    %v1506 = vpop.f32.mrf.mxu0
    %1507 = vmatprep.mubr.f32.mxu0 %v83
    %1508 = vmatmul.mubr.f32.gmra.mxu0 %v686
    %v1509 = vpop.f32.mrf.mxu0
    %v1510 = vadd.f32 %v1125, %v1509
    %v1511 = vpop.f32.mrf.mxu0
    %1512 = vmatprep.mubr.f32.mxu0 %v84
    %1513 = vmatmul.mubr.f32.gmra.mxu0 %v688
    %v1514 = vpop.f32.mrf.mxu0
    %v1515 = vadd.f32 %v1130, %v1514
    %v1516 = vpop.f32.mrf.mxu0
    %1517 = vmatprep.mubr.f32.mxu0 %v92
    %1518 = vmatmul.mubr.f32.gmra.mxu0 %v691
    %v1519 = vpop.f32.mrf.mxu0
    %v1520 = vadd.f32 %v1135, %v1519
    %v1521 = vpop.f32.mrf.mxu0
    %1522 = vmatprep.mubr.f32.mxu0 %v93
    %1523 = vmatmul.mubr.f32.gmra.mxu0 %v693
    %v1524 = vpop.f32.mrf.mxu0
    %v1525 = vadd.f32 %v1140, %v1524
    %v1526 = vpop.f32.mrf.mxu0
    %1527 = vmatprep.mubr.f32.mxu0 %v95
    %1528 = vmatmul.mubr.f32.gmra.mxu0 %v696
    %v1529 = vpop.f32.mrf.mxu0
    %v1530 = vadd.f32 %v1145, %v1529
    %v1531 = vpop.f32.mrf.mxu0
    %1532 = vmatprep.mubr.f32.mxu0 %v96
    %1533 = vmatmul.mubr.f32.gmra.mxu0 %v698
    %v1534 = vpop.f32.mrf.mxu0
    %v1535 = vadd.f32 %v1150, %v1534
    %v1536 = vpop.f32.mrf.mxu0
    %1537 = vmatprep.mubr.f32.mxu0 %v98
    %1538 = vmatmul.mubr.f32.gmra.mxu0 %v701
    %v1539 = vpop.f32.mrf.mxu0
    %v1540 = vadd.f32 %v1155, %v1539
    %v1541 = vpop.f32.mrf.mxu0
    %1542 = vmatprep.mubr.f32.mxu0 %v99
    %1543 = vmatmul.mubr.f32.gmra.mxu0 %v703
    %v1544 = vpop.f32.mrf.mxu0
    %v1545 = vadd.f32 %v1160, %v1544
    %v1546 = vpop.f32.mrf.mxu0
    %1547 = vmatprep.mubr.f32.mxu0 %v101
    %1548 = vmatmul.mubr.f32.gmra.mxu0 %v706
    %v1549 = vpop.f32.mrf.mxu0
    %v1550 = vadd.f32 %v1165, %v1549
    %v1551 = vpop.f32.mrf.mxu0
    %1552 = vmatprep.mubr.f32.mxu0 %v102
    %1553 = vmatmul.mubr.f32.gmra.mxu0 %v708
    %v1554 = vpop.f32.mrf.mxu0
    %v1555 = vadd.f32 %v1170, %v1554
    %v1556 = vpop.f32.mrf.mxu0
    %1557 = vmatprep.mubr.f32.mxu0 %v104
    %1558 = vmatmul.mubr.f32.gmra.mxu0 %v711
    %v1559 = vpop.f32.mrf.mxu0
    %v1560 = vadd.f32 %v1175, %v1559
    %v1561 = vpop.f32.mrf.mxu0
    %1562 = vmatprep.mubr.f32.mxu0 %v105
    %1563 = vmatmul.mubr.f32.gmra.mxu0 %v713
    %v1564 = vpop.f32.mrf.mxu0
    %v1565 = vadd.f32 %v1180, %v1564
    %v1566 = vpop.f32.mrf.mxu0
    %1567 = vmatprep.mubr.f32.mxu0 %v107
    %1568 = vmatmul.mubr.f32.gmra.mxu0 %v716
    %v1569 = vpop.f32.mrf.mxu0
    %v1570 = vadd.f32 %v1185, %v1569
    %v1571 = vpop.f32.mrf.mxu0
    %1572 = vmatprep.mubr.f32.mxu0 %v108
    %1573 = vmatmul.mubr.f32.gmra.mxu0 %v718
    %v1574 = vpop.f32.mrf.mxu0
    %v1575 = vadd.f32 %v1190, %v1574
    %v1576 = vpop.f32.mrf.mxu0
    %1577 = vmatprep.mubr.f32.mxu0 %v110
    %1578 = vmatmul.mubr.f32.gmra.mxu0 %v721
    %v1579 = vpop.f32.mrf.mxu0
    %v1580 = vadd.f32 %v1195, %v1579
    %v1581 = vpop.f32.mrf.mxu0
    %1582 = vmatprep.mubr.f32.mxu0 %v111
    %1583 = vmatmul.mubr.f32.gmra.mxu0 %v723
    %v1584 = vpop.f32.mrf.mxu0
    %v1585 = vadd.f32 %v1200, %v1584
    %v1586 = vpop.f32.mrf.mxu0
    %1587 = vmatprep.mubr.f32.mxu0 %v113
    %1588 = vmatmul.mubr.f32.gmra.mxu0 %v726
    %v1589 = vpop.f32.mrf.mxu0
    %v1590 = vadd.f32 %v1205, %v1589
    %v1591 = vpop.f32.mrf.mxu0
    %1592 = vmatprep.mubr.f32.mxu0 %v114
    %1593 = vmatmul.mubr.f32.gmra.mxu0 %v728
    %v1594 = vpop.f32.mrf.mxu0
    %v1595 = vadd.f32 %v1210, %v1594
    %v1596 = vpop.f32.mrf.mxu0
    %1597 = vmatprep.mubr.f32.mxu0 %v116
    %1598 = vmatmul.mubr.f32.gmra.mxu0 %v731
    %v1599 = vpop.f32.mrf.mxu0
    %v1600 = vadd.f32 %v1215, %v1599
    %v1601 = vpop.f32.mrf.mxu0
    %1602 = vmatprep.mubr.f32.mxu0 %v117
    %1603 = vmatmul.mubr.f32.gmra.mxu0 %v733
    %v1604 = vpop.f32.mrf.mxu0
    %v1605 = vadd.f32 %v1220, %v1604
    %v1606 = vpop.f32.mrf.mxu0
    %1607 = vmatprep.mubr.f32.mxu0 %v119
    %1608 = vmatmul.mubr.f32.gmra.mxu0 %v736
    %v1609 = vpop.f32.mrf.mxu0
    %v1610 = vadd.f32 %v1225, %v1609
    %v1611 = vpop.f32.mrf.mxu0
    %1612 = vmatprep.mubr.f32.mxu0 %v120
    %1613 = vmatmul.mubr.f32.gmra.mxu0 %v738
    %v1614 = vpop.f32.mrf.mxu0
    %v1615 = vadd.f32 %v1230, %v1614
    %v1616 = vpop.f32.mrf.mxu0
    %1617 = vmatprep.mubr.f32.mxu0 %v122
    %1618 = vmatmul.mubr.f32.gmra.mxu0 %v741
    %v1619 = vpop.f32.mrf.mxu0
    %v1620 = vadd.f32 %v1235, %v1619
    %v1621 = vpop.f32.mrf.mxu0
    %1622 = vmatprep.mubr.f32.mxu0 %v123
    %1623 = vmatmul.mubr.f32.gmra.mxu0 %v743
    %v1624 = vpop.f32.mrf.mxu0
    %v1625 = vadd.f32 %v1240, %v1624
    %v1626 = vpop.f32.mrf.mxu0
    %1627 = vmatprep.mubr.f32.mxu0 %v125
    %1628 = vmatmul.mubr.f32.gmra.mxu0 %v746
    %v1629 = vpop.f32.mrf.mxu0
    %v1630 = vadd.f32 %v1245, %v1629
    %v1631 = vpop.f32.mrf.mxu0
    %1632 = vmatprep.mubr.f32.mxu0 %v126
    %1633 = vmatmul.mubr.f32.gmra.mxu0 %v748
    %v1634 = vpop.f32.mrf.mxu0
    %v1635 = vadd.f32 %v1250, %v1634
    %v1636 = vpop.f32.mrf.mxu0
    %1637 = vmatprep.mubr.f32.mxu0 %v128
    %1638 = vmatmul.mubr.f32.gmra.mxu0 %v751
    %v1639 = vpop.f32.mrf.mxu0
    %v1640 = vadd.f32 %v1255, %v1639
    %v1641 = vpop.f32.mrf.mxu0
    %1642 = vmatprep.mubr.f32.mxu0 %v129
    %1643 = vmatmul.mubr.f32.gmra.mxu0 %v753
    %v1644 = vpop.f32.mrf.mxu0
    %v1645 = vadd.f32 %v1260, %v1644
    %v1646 = vpop.f32.mrf.mxu0
    %1647 = vmatprep.mubr.f32.mxu0 %v131
    %1648 = vmatmul.mubr.f32.gmra.mxu0 %v756
    %v1649 = vpop.f32.mrf.mxu0
    %v1650 = vadd.f32 %v1265, %v1649
    %v1651 = vpop.f32.mrf.mxu0
    %1652 = vmatprep.mubr.f32.mxu0 %v132
    %1653 = vmatmul.mubr.f32.gmra.mxu0 %v758
    %v1654 = vpop.f32.mrf.mxu0
    %v1655 = vadd.f32 %v1270, %v1654
    %v1656 = vpop.f32.mrf.mxu0
    %1657 = vmatprep.mubr.f32.mxu0 %v134
    %1658 = vmatmul.mubr.f32.gmra.mxu0 %v761
    %v1659 = vpop.f32.mrf.mxu0
    %v1660 = vadd.f32 %v1275, %v1659
    %v1661 = vpop.f32.mrf.mxu0
    %1662 = vmatprep.mubr.f32.mxu0 %v135
    %1663 = vmatmul.mubr.f32.gmra.mxu0 %v763
    %v1664 = vpop.f32.mrf.mxu0
    %v1665 = vadd.f32 %v1280, %v1664
    %v1666 = vpop.f32.mrf.mxu0
    %1667 = vmatprep.mubr.f32.mxu0 %v137
    %1668 = vmatmul.mubr.f32.gmra.mxu0 %v766
    %v1669 = vpop.f32.mrf.mxu0
    %v1670 = vadd.f32 %v1285, %v1669
    %v1671 = vpop.f32.mrf.mxu0
    %1672 = vmatprep.mubr.f32.mxu0 %v138
    %1673 = vmatmul.mubr.f32.gmra.mxu0 %v768
    %v1674 = vpop.f32.mrf.mxu0
    %v1675 = vadd.f32 %v1290, %v1674
    %v1676 = vpop.f32.mrf.mxu0
    %1677 = vdwg.mxu0
    %1678 = vmatprep.subr.mxu0 0.0
    %1679 = vmatpush1.msra.mxu0 %v222
    %1680 = vmatprep.subr.mxu0 0.0
    %1681 = vmatpush1.msra.mxu0 %v221
    %1682 = vmatprep.subr.mxu0 0.0
    %1683 = vmatpush1.msra.mxu0 %v220
    %1684 = vmatprep.subr.mxu0 0.0
    %1685 = vmatpush1.msra.mxu0 %v219
    %1686 = vmatprep.subr.mxu0 0.0
    %1687 = vmatpush1.msra.mxu0 %v218
    %1688 = vmatprep.subr.mxu0 0.0
    %1689 = vmatpush1.msra.mxu0 %v217
    %1690 = vmatprep.subr.mxu0 0.0
    %1691 = vmatpush1.msra.mxu0 %v216
    %1692 = vmatprep.subr.mxu0 0.0
    %1693 = vmatpush1.msra.mxu0 %v215
    %1694 = vmatprep.subr.mxu0 0.0
    %1695 = vmatpush1.msra.mxu0 %v214
    %1696 = vmatprep.subr.mxu0 0.0
    %1697 = vmatpush1.msra.mxu0 %v213
    %1698 = vmatprep.subr.mxu0 0.0
    %1699 = vmatpush1.msra.mxu0 %v212
    %1700 = vmatprep.subr.mxu0 0.0
    %1701 = vmatpush1.msra.mxu0 %v211
    %1702 = vmatprep.subr.mxu0 0.0
    %1703 = vmatpush1.msra.mxu0 %v210
    %1704 = vmatprep.subr.mxu0 0.0
    %1705 = vmatpush1.msra.mxu0 %v209
    %1706 = vmatprep.subr.mxu0 0.0
    %1707 = vmatpush1.msra.mxu0 %v208
    %1708 = vmatprep.subr.mxu0 0.0
    %1709 = vmatpush1.msra.mxu0 %v207
    %1710 = vmatprep.subr.mxu0 0.0
    %1711 = vmatpush2.msra.mxu0 %v238
    %1712 = vmatprep.subr.mxu0 0.0
    %1713 = vmatpush2.msra.mxu0 %v237
    %1714 = vmatprep.subr.mxu0 0.0
    %1715 = vmatpush2.msra.mxu0 %v236
    %1716 = vmatprep.subr.mxu0 0.0
    %1717 = vmatpush2.msra.mxu0 %v235
    %1718 = vmatprep.subr.mxu0 0.0
    %1719 = vmatpush2.msra.mxu0 %v234
    %1720 = vmatprep.subr.mxu0 0.0
    %1721 = vmatpush2.msra.mxu0 %v233
    %1722 = vmatprep.subr.mxu0 0.0
    %1723 = vmatpush2.msra.mxu0 %v232
    %1724 = vmatprep.subr.mxu0 0.0
    %1725 = vmatpush2.msra.mxu0 %v231
    %1726 = vmatprep.subr.mxu0 0.0
    %1727 = vmatpush2.msra.mxu0 %v230
    %1728 = vmatprep.subr.mxu0 0.0
    %1729 = vmatpush2.msra.mxu0 %v229
    %1730 = vmatprep.subr.mxu0 0.0
    %1731 = vmatpush2.msra.mxu0 %v228
    %1732 = vmatprep.subr.mxu0 0.0
    %1733 = vmatpush2.msra.mxu0 %v227
    %1734 = vmatprep.subr.mxu0 0.0
    %1735 = vmatpush2.msra.mxu0 %v226
    %1736 = vmatprep.subr.mxu0 0.0
    %1737 = vmatpush2.msra.mxu0 %v225
    %1738 = vmatprep.subr.mxu0 0.0
    %1739 = vmatpush2.msra.mxu0 %v224
    %1740 = vmatprep.subr.mxu0 0.0
    %1741 = vmatpush2.msra.mxu0 %v223
    %1742 = vmatprep.mubr.f32.mxu0 %v616
    %1743 = vmatmul.mubr.f32.gmra.mxu0 %v391
    %v1744 = vpop.f32.mrf.mxu0
    %v1745 = vadd.f32 %v1360, %v1744
    %v1746 = vpop.f32.mrf.mxu0
    %1747 = vmatprep.mubr.f32.mxu0 %v618
    %1748 = vmatmul.mubr.f32.gmra.mxu0 %v393
    %v1749 = vpop.f32.mrf.mxu0
    %v1750 = vadd.f32 %v1365, %v1749
    %v1751 = vpop.f32.mrf.mxu0
    %1752 = vmatprep.mubr.f32.mxu0 %v621
    %1753 = vmatmul.mubr.f32.gmra.mxu0 %v396
    %v1754 = vpop.f32.mrf.mxu0
    %v1755 = vadd.f32 %v1370, %v1754
    %v1756 = vpop.f32.mrf.mxu0
    %1757 = vmatprep.mubr.f32.mxu0 %v623
    %1758 = vmatmul.mubr.f32.gmra.mxu0 %v398
    %v1759 = vpop.f32.mrf.mxu0
    %v1760 = vadd.f32 %v1375, %v1759
    %v1761 = vpop.f32.mrf.mxu0
    %1762 = vmatprep.mubr.f32.mxu0 %v626
    %1763 = vmatmul.mubr.f32.gmra.mxu0 %v401
    %v1764 = vpop.f32.mrf.mxu0
    %v1765 = vadd.f32 %v1380, %v1764
    %v1766 = vpop.f32.mrf.mxu0
    %1767 = vmatprep.mubr.f32.mxu0 %v628
    %1768 = vmatmul.mubr.f32.gmra.mxu0 %v403
    %v1769 = vpop.f32.mrf.mxu0
    %v1770 = vadd.f32 %v1385, %v1769
    %v1771 = vpop.f32.mrf.mxu0
    %1772 = vmatprep.mubr.f32.mxu0 %v631
    %1773 = vmatmul.mubr.f32.gmra.mxu0 %v406
    %v1774 = vpop.f32.mrf.mxu0
    %v1775 = vadd.f32 %v1390, %v1774
    %v1776 = vpop.f32.mrf.mxu0
    %1777 = vmatprep.mubr.f32.mxu0 %v633
    %1778 = vmatmul.mubr.f32.gmra.mxu0 %v408
    %v1779 = vpop.f32.mrf.mxu0
    %v1780 = vadd.f32 %v1395, %v1779
    %v1781 = vpop.f32.mrf.mxu0
    %1782 = vmatprep.mubr.f32.mxu0 %v636
    %1783 = vmatmul.mubr.f32.gmra.mxu0 %v411
    %v1784 = vpop.f32.mrf.mxu0
    %v1785 = vadd.f32 %v1400, %v1784
    %v1786 = vpop.f32.mrf.mxu0
    %1787 = vmatprep.mubr.f32.mxu0 %v638
    %1788 = vmatmul.mubr.f32.gmra.mxu0 %v413
    %v1789 = vpop.f32.mrf.mxu0
    %v1790 = vadd.f32 %v1405, %v1789
    %v1791 = vpop.f32.mrf.mxu0
    %1792 = vmatprep.mubr.f32.mxu0 %v641
    %1793 = vmatmul.mubr.f32.gmra.mxu0 %v416
    %v1794 = vpop.f32.mrf.mxu0
    %v1795 = vadd.f32 %v1410, %v1794
    %v1796 = vpop.f32.mrf.mxu0
    %1797 = vmatprep.mubr.f32.mxu0 %v643
    %1798 = vmatmul.mubr.f32.gmra.mxu0 %v418
    %v1799 = vpop.f32.mrf.mxu0
    %v1800 = vadd.f32 %v1415, %v1799
    %v1801 = vpop.f32.mrf.mxu0
    %1802 = vmatprep.mubr.f32.mxu0 %v646
    %1803 = vmatmul.mubr.f32.gmra.mxu0 %v421
    %v1804 = vpop.f32.mrf.mxu0
    %v1805 = vadd.f32 %v1420, %v1804
    %v1806 = vpop.f32.mrf.mxu0
    %1807 = vmatprep.mubr.f32.mxu0 %v648
    %1808 = vmatmul.mubr.f32.gmra.mxu0 %v423
    %v1809 = vpop.f32.mrf.mxu0
    %v1810 = vadd.f32 %v1425, %v1809
    %v1811 = vpop.f32.mrf.mxu0
    %1812 = vmatprep.mubr.f32.mxu0 %v651
    %1813 = vmatmul.mubr.f32.gmra.mxu0 %v426
    %v1814 = vpop.f32.mrf.mxu0
    %v1815 = vadd.f32 %v1430, %v1814
    %v1816 = vpop.f32.mrf.mxu0
    %1817 = vmatprep.mubr.f32.mxu0 %v653
    %1818 = vmatmul.mubr.f32.gmra.mxu0 %v428
    %v1819 = vpop.f32.mrf.mxu0
    %v1820 = vadd.f32 %v1435, %v1819
    %v1821 = vpop.f32.mrf.mxu0
    %1822 = vmatprep.mubr.f32.mxu0 %v656
    %1823 = vmatmul.mubr.f32.gmra.mxu0 %v431
    %v1824 = vpop.f32.mrf.mxu0
    %v1825 = vadd.f32 %v1440, %v1824
    %v1826 = vpop.f32.mrf.mxu0
    %1827 = vmatprep.mubr.f32.mxu0 %v658
    %1828 = vmatmul.mubr.f32.gmra.mxu0 %v433
    %v1829 = vpop.f32.mrf.mxu0
    %v1830 = vadd.f32 %v1445, %v1829
    %v1831 = vpop.f32.mrf.mxu0
    %1832 = vmatprep.mubr.f32.mxu0 %v661
    %1833 = vmatmul.mubr.f32.gmra.mxu0 %v436
    %v1834 = vpop.f32.mrf.mxu0
    %v1835 = vadd.f32 %v1450, %v1834
    %v1836 = vpop.f32.mrf.mxu0
    %1837 = vmatprep.mubr.f32.mxu0 %v663
    %1838 = vmatmul.mubr.f32.gmra.mxu0 %v438
    %v1839 = vpop.f32.mrf.mxu0
    %v1840 = vadd.f32 %v1455, %v1839
    %v1841 = vpop.f32.mrf.mxu0
    %1842 = vmatprep.mubr.f32.mxu0 %v666
    %1843 = vmatmul.mubr.f32.gmra.mxu0 %v441
    %v1844 = vpop.f32.mrf.mxu0
    %v1845 = vadd.f32 %v1460, %v1844
    %v1846 = vpop.f32.mrf.mxu0
    %1847 = vmatprep.mubr.f32.mxu0 %v668
    %1848 = vmatmul.mubr.f32.gmra.mxu0 %v443
    %v1849 = vpop.f32.mrf.mxu0
    %v1850 = vadd.f32 %v1465, %v1849
    %v1851 = vpop.f32.mrf.mxu0
    %1852 = vmatprep.mubr.f32.mxu0 %v671
    %1853 = vmatmul.mubr.f32.gmra.mxu0 %v446
    %v1854 = vpop.f32.mrf.mxu0
    %v1855 = vadd.f32 %v1470, %v1854
    %v1856 = vpop.f32.mrf.mxu0
    %1857 = vmatprep.mubr.f32.mxu0 %v673
    %1858 = vmatmul.mubr.f32.gmra.mxu0 %v448
    %v1859 = vpop.f32.mrf.mxu0
    %v1860 = vadd.f32 %v1475, %v1859
    %v1861 = vpop.f32.mrf.mxu0
    %1862 = vmatprep.mubr.f32.mxu0 %v676
    %1863 = vmatmul.mubr.f32.gmra.mxu0 %v451
    %v1864 = vpop.f32.mrf.mxu0
    %v1865 = vadd.f32 %v1480, %v1864
    %v1866 = vpop.f32.mrf.mxu0
    %1867 = vmatprep.mubr.f32.mxu0 %v678
    %1868 = vmatmul.mubr.f32.gmra.mxu0 %v453
    %v1869 = vpop.f32.mrf.mxu0
    %v1870 = vadd.f32 %v1485, %v1869
    %v1871 = vpop.f32.mrf.mxu0
    %1872 = vmatprep.mubr.f32.mxu0 %v681
    %1873 = vmatmul.mubr.f32.gmra.mxu0 %v456
    %v1874 = vpop.f32.mrf.mxu0
    %v1875 = vadd.f32 %v1490, %v1874
    %v1876 = vpop.f32.mrf.mxu0
    %1877 = vmatprep.mubr.f32.mxu0 %v683
    %1878 = vmatmul.mubr.f32.gmra.mxu0 %v458
    %v1879 = vpop.f32.mrf.mxu0
    %v1880 = vadd.f32 %v1495, %v1879
    %v1881 = vpop.f32.mrf.mxu0
    %1882 = vmatprep.mubr.f32.mxu0 %v686
    %1883 = vmatmul.mubr.f32.gmra.mxu0 %v461
    %v1884 = vpop.f32.mrf.mxu0
    %v1885 = vadd.f32 %v1500, %v1884
    %v1886 = vpop.f32.mrf.mxu0
    %1887 = vmatprep.mubr.f32.mxu0 %v688
    %1888 = vmatmul.mubr.f32.gmra.mxu0 %v463
    %v1889 = vpop.f32.mrf.mxu0
    %v1890 = vadd.f32 %v1505, %v1889
    %v1891 = vpop.f32.mrf.mxu0
    %1892 = vmatprep.mubr.f32.mxu0 %v855
    %1893 = vmatmul.mubr.f32.gmra.mxu0 %v841
    %v1894 = vpop.f32.mrf.mxu0
    %v1895 = vadd.f32 %v1510, %v1894
    %v1896 = vpop.f32.mrf.mxu0
    %1897 = vmatprep.mubr.f32.mxu0 %v857
    %1898 = vmatmul.mubr.f32.gmra.mxu0 %v843
    %v1899 = vpop.f32.mrf.mxu0
    %v1900 = vadd.f32 %v1515, %v1899
    %v1901 = vpop.f32.mrf.mxu0
    %1902 = vmatprep.mubr.f32.mxu0 %v696
    %1903 = vmatmul.mubr.f32.gmra.mxu0 %v471
    %v1904 = vpop.f32.mrf.mxu0
    %v1905 = vadd.f32 %v1520, %v1904
    %v1906 = vpop.f32.mrf.mxu0
    %1907 = vmatprep.mubr.f32.mxu0 %v698
    %1908 = vmatmul.mubr.f32.gmra.mxu0 %v473
    %v1909 = vpop.f32.mrf.mxu0
    %v1910 = vadd.f32 %v1525, %v1909
    %v1911 = vpop.f32.mrf.mxu0
    %1912 = vmatprep.mubr.f32.mxu0 %v701
    %1913 = vmatmul.mubr.f32.gmra.mxu0 %v476
    %v1914 = vpop.f32.mrf.mxu0
    %v1915 = vadd.f32 %v1530, %v1914
    %v1916 = vpop.f32.mrf.mxu0
    %1917 = vmatprep.mubr.f32.mxu0 %v703
    %1918 = vmatmul.mubr.f32.gmra.mxu0 %v478
    %v1919 = vpop.f32.mrf.mxu0
    %v1920 = vadd.f32 %v1535, %v1919
    %v1921 = vpop.f32.mrf.mxu0
    %1922 = vmatprep.mubr.f32.mxu0 %v706
    %1923 = vmatmul.mubr.f32.gmra.mxu0 %v481
    %v1924 = vpop.f32.mrf.mxu0
    %v1925 = vadd.f32 %v1540, %v1924
    %v1926 = vpop.f32.mrf.mxu0
    %1927 = vmatprep.mubr.f32.mxu0 %v708
    %1928 = vmatmul.mubr.f32.gmra.mxu0 %v483
    %v1929 = vpop.f32.mrf.mxu0
    %v1930 = vadd.f32 %v1545, %v1929
    %v1931 = vpop.f32.mrf.mxu0
    %1932 = vmatprep.mubr.f32.mxu0 %v711
    %1933 = vmatmul.mubr.f32.gmra.mxu0 %v486
    %v1934 = vpop.f32.mrf.mxu0
    %v1935 = vadd.f32 %v1550, %v1934
    %v1936 = vpop.f32.mrf.mxu0
    %1937 = vmatprep.mubr.f32.mxu0 %v713
    %1938 = vmatmul.mubr.f32.gmra.mxu0 %v488
    %v1939 = vpop.f32.mrf.mxu0
    %v1940 = vadd.f32 %v1555, %v1939
    %v1941 = vpop.f32.mrf.mxu0
    %1942 = vmatprep.mubr.f32.mxu0 %v716
    %1943 = vmatmul.mubr.f32.gmra.mxu0 %v491
    %v1944 = vpop.f32.mrf.mxu0
    %v1945 = vadd.f32 %v1560, %v1944
    %v1946 = vpop.f32.mrf.mxu0
    %1947 = vmatprep.mubr.f32.mxu0 %v718
    %1948 = vmatmul.mubr.f32.gmra.mxu0 %v493
    %v1949 = vpop.f32.mrf.mxu0
    %v1950 = vadd.f32 %v1565, %v1949
    %v1951 = vpop.f32.mrf.mxu0
    %1952 = vmatprep.mubr.f32.mxu0 %v721
    %1953 = vmatmul.mubr.f32.gmra.mxu0 %v496
    %v1954 = vpop.f32.mrf.mxu0
    %v1955 = vadd.f32 %v1570, %v1954
    %v1956 = vpop.f32.mrf.mxu0
    %1957 = vmatprep.mubr.f32.mxu0 %v723
    %1958 = vmatmul.mubr.f32.gmra.mxu0 %v498
    %v1959 = vpop.f32.mrf.mxu0
    %v1960 = vadd.f32 %v1575, %v1959
    %v1961 = vpop.f32.mrf.mxu0
    %1962 = vmatprep.mubr.f32.mxu0 %v726
    %1963 = vmatmul.mubr.f32.gmra.mxu0 %v501
    %v1964 = vpop.f32.mrf.mxu0
    %v1965 = vadd.f32 %v1580, %v1964
    %v1966 = vpop.f32.mrf.mxu0
    %1967 = vmatprep.mubr.f32.mxu0 %v728
    %1968 = vmatmul.mubr.f32.gmra.mxu0 %v503
    %v1969 = vpop.f32.mrf.mxu0
    %v1970 = vadd.f32 %v1585, %v1969
    %v1971 = vpop.f32.mrf.mxu0
    %1972 = vmatprep.mubr.f32.mxu0 %v731
    %1973 = vmatmul.mubr.f32.gmra.mxu0 %v506
    %v1974 = vpop.f32.mrf.mxu0
    %v1975 = vadd.f32 %v1590, %v1974
    %v1976 = vpop.f32.mrf.mxu0
    %1977 = vmatprep.mubr.f32.mxu0 %v733
    %1978 = vmatmul.mubr.f32.gmra.mxu0 %v508
    %v1979 = vpop.f32.mrf.mxu0
    %v1980 = vadd.f32 %v1595, %v1979
    %v1981 = vpop.f32.mrf.mxu0
    %1982 = vmatprep.mubr.f32.mxu0 %v736
    %1983 = vmatmul.mubr.f32.gmra.mxu0 %v511
    %v1984 = vpop.f32.mrf.mxu0
    %v1985 = vadd.f32 %v1600, %v1984
    %v1986 = vpop.f32.mrf.mxu0
    %1987 = vmatprep.mubr.f32.mxu0 %v738
    %1988 = vmatmul.mubr.f32.gmra.mxu0 %v513
    %v1989 = vpop.f32.mrf.mxu0
    %v1990 = vadd.f32 %v1605, %v1989
    %v1991 = vpop.f32.mrf.mxu0
    %1992 = vmatprep.mubr.f32.mxu0 %v741
    %1993 = vmatmul.mubr.f32.gmra.mxu0 %v516
    %v1994 = vpop.f32.mrf.mxu0
    %v1995 = vadd.f32 %v1610, %v1994
    %v1996 = vpop.f32.mrf.mxu0
    %1997 = vmatprep.mubr.f32.mxu0 %v743
    %1998 = vmatmul.mubr.f32.gmra.mxu0 %v518
    %v1999 = vpop.f32.mrf.mxu0
    %v2000 = vadd.f32 %v1615, %v1999
    %v2001 = vpop.f32.mrf.mxu0
    %2002 = vmatprep.mubr.f32.mxu0 %v746
    %2003 = vmatmul.mubr.f32.gmra.mxu0 %v521
    %v2004 = vpop.f32.mrf.mxu0
    %v2005 = vadd.f32 %v1620, %v2004
    %v2006 = vpop.f32.mrf.mxu0
    %2007 = vmatprep.mubr.f32.mxu0 %v748
    %2008 = vmatmul.mubr.f32.gmra.mxu0 %v523
    %v2009 = vpop.f32.mrf.mxu0
    %v2010 = vadd.f32 %v1625, %v2009
    %v2011 = vpop.f32.mrf.mxu0
    %2012 = vmatprep.mubr.f32.mxu0 %v751
    %2013 = vmatmul.mubr.f32.gmra.mxu0 %v526
    %v2014 = vpop.f32.mrf.mxu0
    %v2015 = vadd.f32 %v1630, %v2014
    %v2016 = vpop.f32.mrf.mxu0
    %2017 = vmatprep.mubr.f32.mxu0 %v753
    %2018 = vmatmul.mubr.f32.gmra.mxu0 %v528
    %v2019 = vpop.f32.mrf.mxu0
    %v2020 = vadd.f32 %v1635, %v2019
    %v2021 = vpop.f32.mrf.mxu0
    %2022 = vmatprep.mubr.f32.mxu0 %v756
    %2023 = vmatmul.mubr.f32.gmra.mxu0 %v531
    %v2024 = vpop.f32.mrf.mxu0
    %v2025 = vadd.f32 %v1640, %v2024
    %v2026 = vpop.f32.mrf.mxu0
    %2027 = vmatprep.mubr.f32.mxu0 %v758
    %2028 = vmatmul.mubr.f32.gmra.mxu0 %v533
    %v2029 = vpop.f32.mrf.mxu0
    %v2030 = vadd.f32 %v1645, %v2029
    %v2031 = vpop.f32.mrf.mxu0
    %2032 = vmatprep.mubr.f32.mxu0 %v761
    %2033 = vmatmul.mubr.f32.gmra.mxu0 %v536
    %v2034 = vpop.f32.mrf.mxu0
    %v2035 = vadd.f32 %v1650, %v2034
    %v2036 = vpop.f32.mrf.mxu0
    %2037 = vmatprep.mubr.f32.mxu0 %v763
    %2038 = vmatmul.mubr.f32.gmra.mxu0 %v538
    %v2039 = vpop.f32.mrf.mxu0
    %v2040 = vadd.f32 %v1655, %v2039
    %v2041 = vpop.f32.mrf.mxu0
    %2042 = vmatprep.mubr.f32.mxu0 %v766
    %2043 = vmatmul.mubr.f32.gmra.mxu0 %v541
    %v2044 = vpop.f32.mrf.mxu0
    %v2045 = vadd.f32 %v1660, %v2044
    %v2046 = vpop.f32.mrf.mxu0
    %2047 = vmatprep.mubr.f32.mxu0 %v768
    %2048 = vmatmul.mubr.f32.gmra.mxu0 %v543
    %v2049 = vpop.f32.mrf.mxu0
    %v2050 = vadd.f32 %v1665, %v2049
    %v2051 = vpop.f32.mrf.mxu0
    %2052 = vmatprep.mubr.f32.mxu0 %v860
    %2053 = vmatmul.mubr.f32.gmra.mxu0 %v846
    %v2054 = vpop.f32.mrf.mxu0
    %v2055 = vadd.f32 %v1670, %v2054
    %v2056 = vpop.f32.mrf.mxu0
    %2057 = vmatprep.mubr.f32.mxu0 %v862
    %2058 = vmatmul.mubr.f32.gmra.mxu0 %v848
    %v2059 = vpop.f32.mrf.mxu0
    %v2060 = vadd.f32 %v1675, %v2059
    %v2061 = vpop.f32.mrf.mxu0
    %2062 = vdwg.mxu0
    %2063 = vmatprep.subr.mxu0 0.0
    %2064 = vmatpush1.msra.mxu0 %v254
    %2065 = vmatprep.subr.mxu0 0.0
    %2066 = vmatpush1.msra.mxu0 %v253
    %2067 = vmatprep.subr.mxu0 0.0
    %2068 = vmatpush1.msra.mxu0 %v252
    %2069 = vmatprep.subr.mxu0 0.0
    %2070 = vmatpush1.msra.mxu0 %v251
    %2071 = vmatprep.subr.mxu0 0.0
    %2072 = vmatpush1.msra.mxu0 %v250
    %2073 = vmatprep.subr.mxu0 0.0
    %2074 = vmatpush1.msra.mxu0 %v249
    %2075 = vmatprep.subr.mxu0 0.0
    %2076 = vmatpush1.msra.mxu0 %v248
    %2077 = vmatprep.subr.mxu0 0.0
    %2078 = vmatpush1.msra.mxu0 %v247
    %2079 = vmatprep.subr.mxu0 0.0
    %2080 = vmatpush1.msra.mxu0 %v246
    %2081 = vmatprep.subr.mxu0 0.0
    %2082 = vmatpush1.msra.mxu0 %v245
    %2083 = vmatprep.subr.mxu0 0.0
    %2084 = vmatpush1.msra.mxu0 %v244
    %2085 = vmatprep.subr.mxu0 0.0
    %2086 = vmatpush1.msra.mxu0 %v243
    %2087 = vmatprep.subr.mxu0 0.0
    %2088 = vmatpush1.msra.mxu0 %v242
    %2089 = vmatprep.subr.mxu0 0.0
    %2090 = vmatpush1.msra.mxu0 %v241
    %2091 = vmatprep.subr.mxu0 0.0
    %2092 = vmatpush1.msra.mxu0 %v240
    %2093 = vmatprep.subr.mxu0 0.0
    %2094 = vmatpush1.msra.mxu0 %v239
    %2095 = vmatprep.subr.mxu0 0.0
    %2096 = vmatpush2.msra.mxu0 %v270
    %2097 = vmatprep.subr.mxu0 0.0
    %2098 = vmatpush2.msra.mxu0 %v269
    %2099 = vmatprep.subr.mxu0 0.0
    %2100 = vmatpush2.msra.mxu0 %v268
    %2101 = vmatprep.subr.mxu0 0.0
    %2102 = vmatpush2.msra.mxu0 %v267
    %2103 = vmatprep.subr.mxu0 0.0
    %2104 = vmatpush2.msra.mxu0 %v266
    %2105 = vmatprep.subr.mxu0 0.0
    %2106 = vmatpush2.msra.mxu0 %v265
    %2107 = vmatprep.subr.mxu0 0.0
    %2108 = vmatpush2.msra.mxu0 %v264
    %2109 = vmatprep.subr.mxu0 0.0
    %2110 = vmatpush2.msra.mxu0 %v263
    %2111 = vmatprep.subr.mxu0 0.0
    %2112 = vmatpush2.msra.mxu0 %v262
    %2113 = vmatprep.subr.mxu0 0.0
    %2114 = vmatpush2.msra.mxu0 %v261
    %2115 = vmatprep.subr.mxu0 0.0
    %2116 = vmatpush2.msra.mxu0 %v260
    %2117 = vmatprep.subr.mxu0 0.0
    %2118 = vmatpush2.msra.mxu0 %v259
    %2119 = vmatprep.subr.mxu0 0.0
    %2120 = vmatpush2.msra.mxu0 %v258
    %2121 = vmatprep.subr.mxu0 0.0
    %2122 = vmatpush2.msra.mxu0 %v257
    %2123 = vmatprep.subr.mxu0 0.0
    %2124 = vmatpush2.msra.mxu0 %v256
    %2125 = vmatprep.subr.mxu0 0.0
    %2126 = vmatpush2.msra.mxu0 %v255
    %2127 = vmatprep.mubr.f32.mxu0 %v396
    %2128 = vmatmul.mubr.f32.gmra.mxu0 %v41
    %v2129 = vpop.f32.mrf.mxu0
    %v2130 = vadd.f32 %v1745, %v2129
    %v2131 = vpop.f32.mrf.mxu0
    %2132 = vmatprep.mubr.f32.mxu0 %v398
    %2133 = vmatmul.mubr.f32.gmra.mxu0 %v42
    %v2134 = vpop.f32.mrf.mxu0
    %v2135 = vadd.f32 %v1750, %v2134
    %v2136 = vpop.f32.mrf.mxu0
    %2137 = vmatprep.mubr.f32.mxu0 %v401
    %2138 = vmatmul.mubr.f32.gmra.mxu0 %v44
    %v2139 = vpop.f32.mrf.mxu0
    %v2140 = vadd.f32 %v1755, %v2139
    %v2141 = vpop.f32.mrf.mxu0
    %2142 = vmatprep.mubr.f32.mxu0 %v403
    %2143 = vmatmul.mubr.f32.gmra.mxu0 %v45
    %v2144 = vpop.f32.mrf.mxu0
    %v2145 = vadd.f32 %v1760, %v2144
    %v2146 = vpop.f32.mrf.mxu0
    %2147 = vmatprep.mubr.f32.mxu0 %v406
    %2148 = vmatmul.mubr.f32.gmra.mxu0 %v47
    %v2149 = vpop.f32.mrf.mxu0
    %v2150 = vadd.f32 %v1765, %v2149
    %v2151 = vpop.f32.mrf.mxu0
    %2152 = vmatprep.mubr.f32.mxu0 %v408
    %2153 = vmatmul.mubr.f32.gmra.mxu0 %v48
    %v2154 = vpop.f32.mrf.mxu0
    %v2155 = vadd.f32 %v1770, %v2154
    %v2156 = vpop.f32.mrf.mxu0
    %2157 = vmatprep.mubr.f32.mxu0 %v411
    %2158 = vmatmul.mubr.f32.gmra.mxu0 %v50
    %v2159 = vpop.f32.mrf.mxu0
    %v2160 = vadd.f32 %v1775, %v2159
    %v2161 = vpop.f32.mrf.mxu0
    %2162 = vmatprep.mubr.f32.mxu0 %v413
    %2163 = vmatmul.mubr.f32.gmra.mxu0 %v51
    %v2164 = vpop.f32.mrf.mxu0
    %v2165 = vadd.f32 %v1780, %v2164
    %v2166 = vpop.f32.mrf.mxu0
    %2167 = vmatprep.mubr.f32.mxu0 %v416
    %2168 = vmatmul.mubr.f32.gmra.mxu0 %v53
    %v2169 = vpop.f32.mrf.mxu0
    %v2170 = vadd.f32 %v1785, %v2169
    %v2171 = vpop.f32.mrf.mxu0
    %2172 = vmatprep.mubr.f32.mxu0 %v418
    %2173 = vmatmul.mubr.f32.gmra.mxu0 %v54
    %v2174 = vpop.f32.mrf.mxu0
    %v2175 = vadd.f32 %v1790, %v2174
    %v2176 = vpop.f32.mrf.mxu0
    %2177 = vmatprep.mubr.f32.mxu0 %v421
    %2178 = vmatmul.mubr.f32.gmra.mxu0 %v56
    %v2179 = vpop.f32.mrf.mxu0
    %v2180 = vadd.f32 %v1795, %v2179
    %v2181 = vpop.f32.mrf.mxu0
    %2182 = vmatprep.mubr.f32.mxu0 %v423
    %2183 = vmatmul.mubr.f32.gmra.mxu0 %v57
    %v2184 = vpop.f32.mrf.mxu0
    %v2185 = vadd.f32 %v1800, %v2184
    %v2186 = vpop.f32.mrf.mxu0
    %2187 = vmatprep.mubr.f32.mxu0 %v426
    %2188 = vmatmul.mubr.f32.gmra.mxu0 %v59
    %v2189 = vpop.f32.mrf.mxu0
    %v2190 = vadd.f32 %v1805, %v2189
    %v2191 = vpop.f32.mrf.mxu0
    %2192 = vmatprep.mubr.f32.mxu0 %v428
    %2193 = vmatmul.mubr.f32.gmra.mxu0 %v60
    %v2194 = vpop.f32.mrf.mxu0
    %v2195 = vadd.f32 %v1810, %v2194
    %v2196 = vpop.f32.mrf.mxu0
    %2197 = vmatprep.mubr.f32.mxu0 %v431
    %2198 = vmatmul.mubr.f32.gmra.mxu0 %v62
    %v2199 = vpop.f32.mrf.mxu0
    %v2200 = vadd.f32 %v1815, %v2199
    %v2201 = vpop.f32.mrf.mxu0
    %2202 = vmatprep.mubr.f32.mxu0 %v433
    %2203 = vmatmul.mubr.f32.gmra.mxu0 %v63
    %v2204 = vpop.f32.mrf.mxu0
    %v2205 = vadd.f32 %v1820, %v2204
    %v2206 = vpop.f32.mrf.mxu0
    %2207 = vmatprep.mubr.f32.mxu0 %v436
    %2208 = vmatmul.mubr.f32.gmra.mxu0 %v65
    %v2209 = vpop.f32.mrf.mxu0
    %v2210 = vadd.f32 %v1825, %v2209
    %v2211 = vpop.f32.mrf.mxu0
    %2212 = vmatprep.mubr.f32.mxu0 %v438
    %2213 = vmatmul.mubr.f32.gmra.mxu0 %v66
    %v2214 = vpop.f32.mrf.mxu0
    %v2215 = vadd.f32 %v1830, %v2214
    %v2216 = vpop.f32.mrf.mxu0
    %2217 = vmatprep.mubr.f32.mxu0 %v441
    %2218 = vmatmul.mubr.f32.gmra.mxu0 %v68
    %v2219 = vpop.f32.mrf.mxu0
    %v2220 = vadd.f32 %v1835, %v2219
    %v2221 = vpop.f32.mrf.mxu0
    %2222 = vmatprep.mubr.f32.mxu0 %v443
    %2223 = vmatmul.mubr.f32.gmra.mxu0 %v69
    %v2224 = vpop.f32.mrf.mxu0
    %v2225 = vadd.f32 %v1840, %v2224
    %v2226 = vpop.f32.mrf.mxu0
    %2227 = vmatprep.mubr.f32.mxu0 %v446
    %2228 = vmatmul.mubr.f32.gmra.mxu0 %v71
    %v2229 = vpop.f32.mrf.mxu0
    %v2230 = vadd.f32 %v1845, %v2229
    %v2231 = vpop.f32.mrf.mxu0
    %2232 = vmatprep.mubr.f32.mxu0 %v448
    %2233 = vmatmul.mubr.f32.gmra.mxu0 %v72
    %v2234 = vpop.f32.mrf.mxu0
    %v2235 = vadd.f32 %v1850, %v2234
    %v2236 = vpop.f32.mrf.mxu0
    %2237 = vmatprep.mubr.f32.mxu0 %v451
    %2238 = vmatmul.mubr.f32.gmra.mxu0 %v74
    %v2239 = vpop.f32.mrf.mxu0
    %v2240 = vadd.f32 %v1855, %v2239
    %v2241 = vpop.f32.mrf.mxu0
    %2242 = vmatprep.mubr.f32.mxu0 %v453
    %2243 = vmatmul.mubr.f32.gmra.mxu0 %v75
    %v2244 = vpop.f32.mrf.mxu0
    %v2245 = vadd.f32 %v1860, %v2244
    %v2246 = vpop.f32.mrf.mxu0
    %2247 = vmatprep.mubr.f32.mxu0 %v456
    %2248 = vmatmul.mubr.f32.gmra.mxu0 %v77
    %v2249 = vpop.f32.mrf.mxu0
    %v2250 = vadd.f32 %v1865, %v2249
    %v2251 = vpop.f32.mrf.mxu0
    %2252 = vmatprep.mubr.f32.mxu0 %v458
    %2253 = vmatmul.mubr.f32.gmra.mxu0 %v78
    %v2254 = vpop.f32.mrf.mxu0
    %v2255 = vadd.f32 %v1870, %v2254
    %v2256 = vpop.f32.mrf.mxu0
    %2257 = vmatprep.mubr.f32.mxu0 %v461
    %2258 = vmatmul.mubr.f32.gmra.mxu0 %v80
    %v2259 = vpop.f32.mrf.mxu0
    %v2260 = vadd.f32 %v1875, %v2259
    %v2261 = vpop.f32.mrf.mxu0
    %2262 = vmatprep.mubr.f32.mxu0 %v463
    %2263 = vmatmul.mubr.f32.gmra.mxu0 %v81
    %v2264 = vpop.f32.mrf.mxu0
    %v2265 = vadd.f32 %v1880, %v2264
    %v2266 = vpop.f32.mrf.mxu0
    %2267 = vmatprep.mubr.f32.mxu0 %v841
    %2268 = vmatmul.mubr.f32.gmra.mxu0 %v83
    %v2269 = vpop.f32.mrf.mxu0
    %v2270 = vadd.f32 %v1885, %v2269
    %v2271 = vpop.f32.mrf.mxu0
    %2272 = vmatprep.mubr.f32.mxu0 %v843
    %2273 = vmatmul.mubr.f32.gmra.mxu0 %v84
    %v2274 = vpop.f32.mrf.mxu0
    %v2275 = vadd.f32 %v1890, %v2274
    %v2276 = vpop.f32.mrf.mxu0
    %2277 = vmatprep.mubr.f32.mxu0 %v875
    %2278 = vmatmul.mubr.f32.gmra.mxu0 %v86
    %v2279 = vpop.f32.mrf.mxu0
    %v2280 = vadd.f32 %v1895, %v2279
    %v2281 = vpop.f32.mrf.mxu0
    %2282 = vmatprep.mubr.f32.mxu0 %v877
    %2283 = vmatmul.mubr.f32.gmra.mxu0 %v87
    %v2284 = vpop.f32.mrf.mxu0
    %v2285 = vadd.f32 %v1900, %v2284
    %v2286 = vpop.f32.mrf.mxu0
    %2287 = vmatprep.mubr.f32.mxu0 %v476
    %2288 = vmatmul.mubr.f32.gmra.mxu0 %v95
    %v2289 = vpop.f32.mrf.mxu0
    %v2290 = vadd.f32 %v1905, %v2289
    %v2291 = vpop.f32.mrf.mxu0
    %2292 = vmatprep.mubr.f32.mxu0 %v478
    %2293 = vmatmul.mubr.f32.gmra.mxu0 %v96
    %v2294 = vpop.f32.mrf.mxu0
    %v2295 = vadd.f32 %v1910, %v2294
    %v2296 = vpop.f32.mrf.mxu0
    %2297 = vmatprep.mubr.f32.mxu0 %v481
    %2298 = vmatmul.mubr.f32.gmra.mxu0 %v98
    %v2299 = vpop.f32.mrf.mxu0
    %v2300 = vadd.f32 %v1915, %v2299
    %v2301 = vpop.f32.mrf.mxu0
    %2302 = vmatprep.mubr.f32.mxu0 %v483
    %2303 = vmatmul.mubr.f32.gmra.mxu0 %v99
    %v2304 = vpop.f32.mrf.mxu0
    %v2305 = vadd.f32 %v1920, %v2304
    %v2306 = vpop.f32.mrf.mxu0
    %2307 = vmatprep.mubr.f32.mxu0 %v486
    %2308 = vmatmul.mubr.f32.gmra.mxu0 %v101
    %v2309 = vpop.f32.mrf.mxu0
    %v2310 = vadd.f32 %v1925, %v2309
    %v2311 = vpop.f32.mrf.mxu0
    %2312 = vmatprep.mubr.f32.mxu0 %v488
    %2313 = vmatmul.mubr.f32.gmra.mxu0 %v102
    %v2314 = vpop.f32.mrf.mxu0
    %v2315 = vadd.f32 %v1930, %v2314
    %v2316 = vpop.f32.mrf.mxu0
    %2317 = vmatprep.mubr.f32.mxu0 %v491
    %2318 = vmatmul.mubr.f32.gmra.mxu0 %v104
    %v2319 = vpop.f32.mrf.mxu0
    %v2320 = vadd.f32 %v1935, %v2319
    %v2321 = vpop.f32.mrf.mxu0
    %2322 = vmatprep.mubr.f32.mxu0 %v493
    %2323 = vmatmul.mubr.f32.gmra.mxu0 %v105
    %v2324 = vpop.f32.mrf.mxu0
    %v2325 = vadd.f32 %v1940, %v2324
    %v2326 = vpop.f32.mrf.mxu0
    %2327 = vmatprep.mubr.f32.mxu0 %v496
    %2328 = vmatmul.mubr.f32.gmra.mxu0 %v107
    %v2329 = vpop.f32.mrf.mxu0
    %v2330 = vadd.f32 %v1945, %v2329
    %v2331 = vpop.f32.mrf.mxu0
    %2332 = vmatprep.mubr.f32.mxu0 %v498
    %2333 = vmatmul.mubr.f32.gmra.mxu0 %v108
    %v2334 = vpop.f32.mrf.mxu0
    %v2335 = vadd.f32 %v1950, %v2334
    %v2336 = vpop.f32.mrf.mxu0
    %2337 = vmatprep.mubr.f32.mxu0 %v501
    %2338 = vmatmul.mubr.f32.gmra.mxu0 %v110
    %v2339 = vpop.f32.mrf.mxu0
    %v2340 = vadd.f32 %v1955, %v2339
    %v2341 = vpop.f32.mrf.mxu0
    %2342 = vmatprep.mubr.f32.mxu0 %v503
    %2343 = vmatmul.mubr.f32.gmra.mxu0 %v111
    %v2344 = vpop.f32.mrf.mxu0
    %v2345 = vadd.f32 %v1960, %v2344
    %v2346 = vpop.f32.mrf.mxu0
    %2347 = vmatprep.mubr.f32.mxu0 %v506
    %2348 = vmatmul.mubr.f32.gmra.mxu0 %v113
    %v2349 = vpop.f32.mrf.mxu0
    %v2350 = vadd.f32 %v1965, %v2349
    %v2351 = vpop.f32.mrf.mxu0
    %2352 = vmatprep.mubr.f32.mxu0 %v508
    %2353 = vmatmul.mubr.f32.gmra.mxu0 %v114
    %v2354 = vpop.f32.mrf.mxu0
    %v2355 = vadd.f32 %v1970, %v2354
    %v2356 = vpop.f32.mrf.mxu0
    %2357 = vmatprep.mubr.f32.mxu0 %v511
    %2358 = vmatmul.mubr.f32.gmra.mxu0 %v116
    %v2359 = vpop.f32.mrf.mxu0
    %v2360 = vadd.f32 %v1975, %v2359
    %v2361 = vpop.f32.mrf.mxu0
    %2362 = vmatprep.mubr.f32.mxu0 %v513
    %2363 = vmatmul.mubr.f32.gmra.mxu0 %v117
    %v2364 = vpop.f32.mrf.mxu0
    %v2365 = vadd.f32 %v1980, %v2364
    %v2366 = vpop.f32.mrf.mxu0
    %2367 = vmatprep.mubr.f32.mxu0 %v516
    %2368 = vmatmul.mubr.f32.gmra.mxu0 %v119
    %v2369 = vpop.f32.mrf.mxu0
    %v2370 = vadd.f32 %v1985, %v2369
    %v2371 = vpop.f32.mrf.mxu0
    %2372 = vmatprep.mubr.f32.mxu0 %v518
    %2373 = vmatmul.mubr.f32.gmra.mxu0 %v120
    %v2374 = vpop.f32.mrf.mxu0
    %v2375 = vadd.f32 %v1990, %v2374
    %v2376 = vpop.f32.mrf.mxu0
    %2377 = vmatprep.mubr.f32.mxu0 %v521
    %2378 = vmatmul.mubr.f32.gmra.mxu0 %v122
    %v2379 = vpop.f32.mrf.mxu0
    %v2380 = vadd.f32 %v1995, %v2379
    %v2381 = vpop.f32.mrf.mxu0
    %2382 = vmatprep.mubr.f32.mxu0 %v523
    %2383 = vmatmul.mubr.f32.gmra.mxu0 %v123
    %v2384 = vpop.f32.mrf.mxu0
    %v2385 = vadd.f32 %v2000, %v2384
    %v2386 = vpop.f32.mrf.mxu0
    %2387 = vmatprep.mubr.f32.mxu0 %v526
    %2388 = vmatmul.mubr.f32.gmra.mxu0 %v125
    %v2389 = vpop.f32.mrf.mxu0
    %v2390 = vadd.f32 %v2005, %v2389
    %v2391 = vpop.f32.mrf.mxu0
    %2392 = vmatprep.mubr.f32.mxu0 %v528
    %2393 = vmatmul.mubr.f32.gmra.mxu0 %v126
    %v2394 = vpop.f32.mrf.mxu0
    %v2395 = vadd.f32 %v2010, %v2394
    %v2396 = vpop.f32.mrf.mxu0
    %2397 = vmatprep.mubr.f32.mxu0 %v531
    %2398 = vmatmul.mubr.f32.gmra.mxu0 %v128
    %v2399 = vpop.f32.mrf.mxu0
    %v2400 = vadd.f32 %v2015, %v2399
    %v2401 = vpop.f32.mrf.mxu0
    %2402 = vmatprep.mubr.f32.mxu0 %v533
    %2403 = vmatmul.mubr.f32.gmra.mxu0 %v129
    %v2404 = vpop.f32.mrf.mxu0
    %v2405 = vadd.f32 %v2020, %v2404
    %v2406 = vpop.f32.mrf.mxu0
    %2407 = vmatprep.mubr.f32.mxu0 %v536
    %2408 = vmatmul.mubr.f32.gmra.mxu0 %v131
    %v2409 = vpop.f32.mrf.mxu0
    %v2410 = vadd.f32 %v2025, %v2409
    %v2411 = vpop.f32.mrf.mxu0
    %2412 = vmatprep.mubr.f32.mxu0 %v538
    %2413 = vmatmul.mubr.f32.gmra.mxu0 %v132
    %v2414 = vpop.f32.mrf.mxu0
    %v2415 = vadd.f32 %v2030, %v2414
    %v2416 = vpop.f32.mrf.mxu0
    %2417 = vmatprep.mubr.f32.mxu0 %v541
    %2418 = vmatmul.mubr.f32.gmra.mxu0 %v134
    %v2419 = vpop.f32.mrf.mxu0
    %v2420 = vadd.f32 %v2035, %v2419
    %v2421 = vpop.f32.mrf.mxu0
    %2422 = vmatprep.mubr.f32.mxu0 %v543
    %2423 = vmatmul.mubr.f32.gmra.mxu0 %v135
    %v2424 = vpop.f32.mrf.mxu0
    %v2425 = vadd.f32 %v2040, %v2424
    %v2426 = vpop.f32.mrf.mxu0
    %2427 = vmatprep.mubr.f32.mxu0 %v846
    %2428 = vmatmul.mubr.f32.gmra.mxu0 %v137
    %v2429 = vpop.f32.mrf.mxu0
    %v2430 = vadd.f32 %v2045, %v2429
    %v2431 = vpop.f32.mrf.mxu0
    %2432 = vmatprep.mubr.f32.mxu0 %v848
    %2433 = vmatmul.mubr.f32.gmra.mxu0 %v138
    %v2434 = vpop.f32.mrf.mxu0
    %v2435 = vadd.f32 %v2050, %v2434
    %v2436 = vpop.f32.mrf.mxu0
    %2437 = vmatprep.mubr.f32.mxu0 %v880
    %2438 = vmatmul.mubr.f32.gmra.mxu0 %v140
    %v2439 = vpop.f32.mrf.mxu0
    %v2440 = vadd.f32 %v2055, %v2439
    %v2441 = vpop.f32.mrf.mxu0
    %2442 = vmatprep.mubr.f32.mxu0 %v882
    %2443 = vmatmul.mubr.f32.gmra.mxu0 %v141
    %v2444 = vpop.f32.mrf.mxu0
    %v2445 = vadd.f32 %v2060, %v2444
    %v2446 = vpop.f32.mrf.mxu0
    %2447 = vdwg.mxu0
    %2448 = vmatprep.subr.mxu0 0.0
    %2449 = vmatpush1.msra.mxu0 %v286
    %2450 = vmatprep.subr.mxu0 0.0
    %2451 = vmatpush1.msra.mxu0 %v285
    %2452 = vmatprep.subr.mxu0 0.0
    %2453 = vmatpush1.msra.mxu0 %v284
    %2454 = vmatprep.subr.mxu0 0.0
    %2455 = vmatpush1.msra.mxu0 %v283
    %2456 = vmatprep.subr.mxu0 0.0
    %2457 = vmatpush1.msra.mxu0 %v282
    %2458 = vmatprep.subr.mxu0 0.0
    %2459 = vmatpush1.msra.mxu0 %v281
    %2460 = vmatprep.subr.mxu0 0.0
    %2461 = vmatpush1.msra.mxu0 %v280
    %2462 = vmatprep.subr.mxu0 0.0
    %2463 = vmatpush1.msra.mxu0 %v279
    %2464 = vmatprep.subr.mxu0 0.0
    %2465 = vmatpush1.msra.mxu0 %v278
    %2466 = vmatprep.subr.mxu0 0.0
    %2467 = vmatpush1.msra.mxu0 %v277
    %2468 = vmatprep.subr.mxu0 0.0
    %2469 = vmatpush1.msra.mxu0 %v276
    %2470 = vmatprep.subr.mxu0 0.0
    %2471 = vmatpush1.msra.mxu0 %v275
    %2472 = vmatprep.subr.mxu0 0.0
    %2473 = vmatpush1.msra.mxu0 %v274
    %2474 = vmatprep.subr.mxu0 0.0
    %2475 = vmatpush1.msra.mxu0 %v273
    %2476 = vmatprep.subr.mxu0 0.0
    %2477 = vmatpush1.msra.mxu0 %v272
    %2478 = vmatprep.subr.mxu0 0.0
    %2479 = vmatpush1.msra.mxu0 %v271
    %2480 = vmatprep.subr.mxu0 0.0
    %2481 = vmatpush2.msra.mxu0 0.0
    %2482 = vmatprep.subr.mxu0 0.0
    %2483 = vmatpush2.msra.mxu0 0.0
    %2484 = vmatprep.subr.mxu0 0.0
    %2485 = vmatpush2.msra.mxu0 0.0
    %2486 = vmatprep.subr.mxu0 0.0
    %2487 = vmatpush2.msra.mxu0 0.0
    %2488 = vmatprep.subr.mxu0 0.0
    %2489 = vmatpush2.msra.mxu0 0.0
    %2490 = vmatprep.subr.mxu0 0.0
    %2491 = vmatpush2.msra.mxu0 0.0
    %2492 = vmatprep.subr.mxu0 0.0
    %2493 = vmatpush2.msra.mxu0 0.0
    %2494 = vmatprep.subr.mxu0 0.0
    %2495 = vmatpush2.msra.mxu0 0.0
    %2496 = vmatprep.subr.mxu0 0.0
    %2497 = vmatpush2.msra.mxu0 0.0
    %2498 = vmatprep.subr.mxu0 0.0
    %2499 = vmatpush2.msra.mxu0 0.0
    %2500 = vmatprep.subr.mxu0 0.0
    %2501 = vmatpush2.msra.mxu0 0.0
    %2502 = vmatprep.subr.mxu0 0.0
    %2503 = vmatpush2.msra.mxu0 0.0
    %2504 = vmatprep.subr.mxu0 0.0
    %2505 = vmatpush2.msra.mxu0 0.0
    %2506 = vmatprep.subr.mxu0 0.0
    %2507 = vmatpush2.msra.mxu0 0.0
    %2508 = vmatprep.subr.mxu0 0.0
    %2509 = vmatpush2.msra.mxu0 0.0
    %2510 = vmatprep.subr.mxu0 0.0
    %2511 = vmatpush2.msra.mxu0 0.0
    %2512 = vmatprep.mubr.f32.mxu0 0.0
    %2513 = vmatmul.mubr.f32.gmra.mxu0 %v621
    %v2514 = vpop.f32.mrf.mxu0
    %v2515 = vadd.f32 %v2130, %v2514
    %v2516 = vpop.f32.mrf.mxu0
    %2517 = vmatprep.mubr.f32.mxu0 0.0
    %2518 = vmatmul.mubr.f32.gmra.mxu0 %v623
    %v2519 = vpop.f32.mrf.mxu0
    %v2520 = vadd.f32 %v2135, %v2519
    %v2521 = vpop.f32.mrf.mxu0
    %2522 = vmatprep.mubr.f32.mxu0 0.0
    %2523 = vmatmul.mubr.f32.gmra.mxu0 %v626
    %v2524 = vpop.f32.mrf.mxu0
    %v2525 = vadd.f32 %v2140, %v2524
    %v2526 = vpop.f32.mrf.mxu0
    %2527 = vmatprep.mubr.f32.mxu0 0.0
    %2528 = vmatmul.mubr.f32.gmra.mxu0 %v628
    %v2529 = vpop.f32.mrf.mxu0
    %v2530 = vadd.f32 %v2145, %v2529
    %v2531 = vpop.f32.mrf.mxu0
    %2532 = vmatprep.mubr.f32.mxu0 0.0
    %2533 = vmatmul.mubr.f32.gmra.mxu0 %v631
    %v2534 = vpop.f32.mrf.mxu0
    %v2535 = vadd.f32 %v2150, %v2534
    %v2536 = vpop.f32.mrf.mxu0
    %2537 = vmatprep.mubr.f32.mxu0 0.0
    %2538 = vmatmul.mubr.f32.gmra.mxu0 %v633
    %v2539 = vpop.f32.mrf.mxu0
    %v2540 = vadd.f32 %v2155, %v2539
    %v2541 = vpop.f32.mrf.mxu0
    %2542 = vmatprep.mubr.f32.mxu0 0.0
    %2543 = vmatmul.mubr.f32.gmra.mxu0 %v636
    %v2544 = vpop.f32.mrf.mxu0
    %v2545 = vadd.f32 %v2160, %v2544
    %v2546 = vpop.f32.mrf.mxu0
    %2547 = vmatprep.mubr.f32.mxu0 0.0
    %2548 = vmatmul.mubr.f32.gmra.mxu0 %v638
    %v2549 = vpop.f32.mrf.mxu0
    %v2550 = vadd.f32 %v2165, %v2549
    %v2551 = vpop.f32.mrf.mxu0
    %2552 = vmatprep.mubr.f32.mxu0 0.0
    %2553 = vmatmul.mubr.f32.gmra.mxu0 %v641
    %v2554 = vpop.f32.mrf.mxu0
    %v2555 = vadd.f32 %v2170, %v2554
    %v2556 = vpop.f32.mrf.mxu0
    %2557 = vmatprep.mubr.f32.mxu0 0.0
    %2558 = vmatmul.mubr.f32.gmra.mxu0 %v643
    %v2559 = vpop.f32.mrf.mxu0
    %v2560 = vadd.f32 %v2175, %v2559
    %v2561 = vpop.f32.mrf.mxu0
    %2562 = vmatprep.mubr.f32.mxu0 0.0
    %2563 = vmatmul.mubr.f32.gmra.mxu0 %v646
    %v2564 = vpop.f32.mrf.mxu0
    %v2565 = vadd.f32 %v2180, %v2564
    %v2566 = vpop.f32.mrf.mxu0
    %2567 = vmatprep.mubr.f32.mxu0 0.0
    %2568 = vmatmul.mubr.f32.gmra.mxu0 %v648
    %v2569 = vpop.f32.mrf.mxu0
    %v2570 = vadd.f32 %v2185, %v2569
    %v2571 = vpop.f32.mrf.mxu0
    %2572 = vmatprep.mubr.f32.mxu0 0.0
    %2573 = vmatmul.mubr.f32.gmra.mxu0 %v651
    %v2574 = vpop.f32.mrf.mxu0
    %v2575 = vadd.f32 %v2190, %v2574
    %v2576 = vpop.f32.mrf.mxu0
    %2577 = vmatprep.mubr.f32.mxu0 0.0
    %2578 = vmatmul.mubr.f32.gmra.mxu0 %v653
    %v2579 = vpop.f32.mrf.mxu0
    %v2580 = vadd.f32 %v2195, %v2579
    %v2581 = vpop.f32.mrf.mxu0
    %2582 = vmatprep.mubr.f32.mxu0 0.0
    %2583 = vmatmul.mubr.f32.gmra.mxu0 %v656
    %v2584 = vpop.f32.mrf.mxu0
    %v2585 = vadd.f32 %v2200, %v2584
    %v2586 = vpop.f32.mrf.mxu0
    %2587 = vmatprep.mubr.f32.mxu0 0.0
    %2588 = vmatmul.mubr.f32.gmra.mxu0 %v658
    %v2589 = vpop.f32.mrf.mxu0
    %v2590 = vadd.f32 %v2205, %v2589
    %v2591 = vpop.f32.mrf.mxu0
    %2592 = vmatprep.mubr.f32.mxu0 0.0
    %2593 = vmatmul.mubr.f32.gmra.mxu0 %v661
    %v2594 = vpop.f32.mrf.mxu0
    %v2595 = vadd.f32 %v2210, %v2594
    %v2596 = vpop.f32.mrf.mxu0
    %2597 = vmatprep.mubr.f32.mxu0 0.0
    %2598 = vmatmul.mubr.f32.gmra.mxu0 %v663
    %v2599 = vpop.f32.mrf.mxu0
    %v2600 = vadd.f32 %v2215, %v2599
    %v2601 = vpop.f32.mrf.mxu0
    %2602 = vmatprep.mubr.f32.mxu0 0.0
    %2603 = vmatmul.mubr.f32.gmra.mxu0 %v666
    %v2604 = vpop.f32.mrf.mxu0
    %v2605 = vadd.f32 %v2220, %v2604
    %v2606 = vpop.f32.mrf.mxu0
    %2607 = vmatprep.mubr.f32.mxu0 0.0
    %2608 = vmatmul.mubr.f32.gmra.mxu0 %v668
    %v2609 = vpop.f32.mrf.mxu0
    %v2610 = vadd.f32 %v2225, %v2609
    %v2611 = vpop.f32.mrf.mxu0
    %2612 = vmatprep.mubr.f32.mxu0 0.0
    %2613 = vmatmul.mubr.f32.gmra.mxu0 %v671
    %v2614 = vpop.f32.mrf.mxu0
    %v2615 = vadd.f32 %v2230, %v2614
    %v2616 = vpop.f32.mrf.mxu0
    %2617 = vmatprep.mubr.f32.mxu0 0.0
    %2618 = vmatmul.mubr.f32.gmra.mxu0 %v673
    %v2619 = vpop.f32.mrf.mxu0
    %v2620 = vadd.f32 %v2235, %v2619
    %v2621 = vpop.f32.mrf.mxu0
    %2622 = vmatprep.mubr.f32.mxu0 0.0
    %2623 = vmatmul.mubr.f32.gmra.mxu0 %v676
    %v2624 = vpop.f32.mrf.mxu0
    %v2625 = vadd.f32 %v2240, %v2624
    %v2626 = vpop.f32.mrf.mxu0
    %2627 = vmatprep.mubr.f32.mxu0 0.0
    %2628 = vmatmul.mubr.f32.gmra.mxu0 %v678
    %v2629 = vpop.f32.mrf.mxu0
    %v2630 = vadd.f32 %v2245, %v2629
    %v2631 = vpop.f32.mrf.mxu0
    %2632 = vmatprep.mubr.f32.mxu0 0.0
    %2633 = vmatmul.mubr.f32.gmra.mxu0 %v681
    %v2634 = vpop.f32.mrf.mxu0
    %v2635 = vadd.f32 %v2250, %v2634
    %v2636 = vpop.f32.mrf.mxu0
    %2637 = vmatprep.mubr.f32.mxu0 0.0
    %2638 = vmatmul.mubr.f32.gmra.mxu0 %v683
    %v2639 = vpop.f32.mrf.mxu0
    %v2640 = vadd.f32 %v2255, %v2639
    %v2641 = vpop.f32.mrf.mxu0
    %2642 = vmatprep.mubr.f32.mxu0 0.0
    %2643 = vmatmul.mubr.f32.gmra.mxu0 %v686
    %v2644 = vpop.f32.mrf.mxu0
    %v2645 = vadd.f32 %v2260, %v2644
    %v2646 = vpop.f32.mrf.mxu0
    %2647 = vmatprep.mubr.f32.mxu0 0.0
    %2648 = vmatmul.mubr.f32.gmra.mxu0 %v688
    %v2649 = vpop.f32.mrf.mxu0
    %v2650 = vadd.f32 %v2265, %v2649
    %v2651 = vpop.f32.mrf.mxu0
    %2652 = vmatprep.mubr.f32.mxu0 0.0
    %2653 = vmatmul.mubr.f32.gmra.mxu0 %v855
    %v2654 = vpop.f32.mrf.mxu0
    %v2655 = vadd.f32 %v2270, %v2654
    %v2656 = vpop.f32.mrf.mxu0
    %2657 = vmatprep.mubr.f32.mxu0 0.0
    %2658 = vmatmul.mubr.f32.gmra.mxu0 %v857
    %v2659 = vpop.f32.mrf.mxu0
    %v2660 = vadd.f32 %v2275, %v2659
    %v2661 = vpop.f32.mrf.mxu0
    %2662 = vmatprep.mubr.f32.mxu0 0.0
    %2663 = vmatmul.mubr.f32.gmra.mxu0 %v889
    %v2664 = vpop.f32.mrf.mxu0
    %v2665 = vadd.f32 %v2280, %v2664
    %v2666 = vpop.f32.mrf.mxu0
    %2667 = vmatprep.mubr.f32.mxu0 0.0
    %2668 = vmatmul.mubr.f32.gmra.mxu0 %v891
    %v2669 = vpop.f32.mrf.mxu0
    %v2670 = vadd.f32 %v2285, %v2669
    %v2671 = vpop.f32.mrf.mxu0
    %2672 = vmatprep.mubr.f32.mxu0 0.0
    %2673 = vmatmul.mubr.f32.gmra.mxu0 %v701
    %v2674 = vpop.f32.mrf.mxu0
    %v2675 = vadd.f32 %v2290, %v2674
    %v2676 = vpop.f32.mrf.mxu0
    %2677 = vmatprep.mubr.f32.mxu0 0.0
    %2678 = vmatmul.mubr.f32.gmra.mxu0 %v703
    %v2679 = vpop.f32.mrf.mxu0
    %v2680 = vadd.f32 %v2295, %v2679
    %v2681 = vpop.f32.mrf.mxu0
    %2682 = vmatprep.mubr.f32.mxu0 0.0
    %2683 = vmatmul.mubr.f32.gmra.mxu0 %v706
    %v2684 = vpop.f32.mrf.mxu0
    %v2685 = vadd.f32 %v2300, %v2684
    %v2686 = vpop.f32.mrf.mxu0
    %2687 = vmatprep.mubr.f32.mxu0 0.0
    %2688 = vmatmul.mubr.f32.gmra.mxu0 %v708
    %v2689 = vpop.f32.mrf.mxu0
    %v2690 = vadd.f32 %v2305, %v2689
    %v2691 = vpop.f32.mrf.mxu0
    %2692 = vmatprep.mubr.f32.mxu0 0.0
    %2693 = vmatmul.mubr.f32.gmra.mxu0 %v711
    %v2694 = vpop.f32.mrf.mxu0
    %v2695 = vadd.f32 %v2310, %v2694
    %v2696 = vpop.f32.mrf.mxu0
    %2697 = vmatprep.mubr.f32.mxu0 0.0
    %2698 = vmatmul.mubr.f32.gmra.mxu0 %v713
    %v2699 = vpop.f32.mrf.mxu0
    %v2700 = vadd.f32 %v2315, %v2699
    %v2701 = vpop.f32.mrf.mxu0
    %2702 = vmatprep.mubr.f32.mxu0 0.0
    %2703 = vmatmul.mubr.f32.gmra.mxu0 %v716
    %v2704 = vpop.f32.mrf.mxu0
    %v2705 = vadd.f32 %v2320, %v2704
    %v2706 = vpop.f32.mrf.mxu0
    %2707 = vmatprep.mubr.f32.mxu0 0.0
    %2708 = vmatmul.mubr.f32.gmra.mxu0 %v718
    %v2709 = vpop.f32.mrf.mxu0
    %v2710 = vadd.f32 %v2325, %v2709
    %v2711 = vpop.f32.mrf.mxu0
    %2712 = vmatprep.mubr.f32.mxu0 0.0
    %2713 = vmatmul.mubr.f32.gmra.mxu0 %v721
    %v2714 = vpop.f32.mrf.mxu0
    %v2715 = vadd.f32 %v2330, %v2714
    %v2716 = vpop.f32.mrf.mxu0
    %2717 = vmatprep.mubr.f32.mxu0 0.0
    %2718 = vmatmul.mubr.f32.gmra.mxu0 %v723
    %v2719 = vpop.f32.mrf.mxu0
    %v2720 = vadd.f32 %v2335, %v2719
    %v2721 = vpop.f32.mrf.mxu0
    %2722 = vmatprep.mubr.f32.mxu0 0.0
    %2723 = vmatmul.mubr.f32.gmra.mxu0 %v726
    %v2724 = vpop.f32.mrf.mxu0
    %v2725 = vadd.f32 %v2340, %v2724
    %v2726 = vpop.f32.mrf.mxu0
    %2727 = vmatprep.mubr.f32.mxu0 0.0
    %2728 = vmatmul.mubr.f32.gmra.mxu0 %v728
    %v2729 = vpop.f32.mrf.mxu0
    %v2730 = vadd.f32 %v2345, %v2729
    %v2731 = vpop.f32.mrf.mxu0
    %2732 = vmatprep.mubr.f32.mxu0 0.0
    %2733 = vmatmul.mubr.f32.gmra.mxu0 %v731
    %v2734 = vpop.f32.mrf.mxu0
    %v2735 = vadd.f32 %v2350, %v2734
    %v2736 = vpop.f32.mrf.mxu0
    %2737 = vmatprep.mubr.f32.mxu0 0.0
    %2738 = vmatmul.mubr.f32.gmra.mxu0 %v733
    %v2739 = vpop.f32.mrf.mxu0
    %v2740 = vadd.f32 %v2355, %v2739
    %v2741 = vpop.f32.mrf.mxu0
    %2742 = vmatprep.mubr.f32.mxu0 0.0
    %2743 = vmatmul.mubr.f32.gmra.mxu0 %v736
    %v2744 = vpop.f32.mrf.mxu0
    %v2745 = vadd.f32 %v2360, %v2744
    %v2746 = vpop.f32.mrf.mxu0
    %2747 = vmatprep.mubr.f32.mxu0 0.0
    %2748 = vmatmul.mubr.f32.gmra.mxu0 %v738
    %v2749 = vpop.f32.mrf.mxu0
    %v2750 = vadd.f32 %v2365, %v2749
    %v2751 = vpop.f32.mrf.mxu0
    %2752 = vmatprep.mubr.f32.mxu0 0.0
    %2753 = vmatmul.mubr.f32.gmra.mxu0 %v741
    %v2754 = vpop.f32.mrf.mxu0
    %v2755 = vadd.f32 %v2370, %v2754
    %v2756 = vpop.f32.mrf.mxu0
    %2757 = vmatprep.mubr.f32.mxu0 0.0
    %2758 = vmatmul.mubr.f32.gmra.mxu0 %v743
    %v2759 = vpop.f32.mrf.mxu0
    %v2760 = vadd.f32 %v2375, %v2759
    %v2761 = vpop.f32.mrf.mxu0
    %2762 = vmatprep.mubr.f32.mxu0 0.0
    %2763 = vmatmul.mubr.f32.gmra.mxu0 %v746
    %v2764 = vpop.f32.mrf.mxu0
    %v2765 = vadd.f32 %v2380, %v2764
    %v2766 = vpop.f32.mrf.mxu0
    %2767 = vmatprep.mubr.f32.mxu0 0.0
    %2768 = vmatmul.mubr.f32.gmra.mxu0 %v748
    %v2769 = vpop.f32.mrf.mxu0
    %v2770 = vadd.f32 %v2385, %v2769
    %v2771 = vpop.f32.mrf.mxu0
    %2772 = vmatprep.mubr.f32.mxu0 0.0
    %2773 = vmatmul.mubr.f32.gmra.mxu0 %v751
    %v2774 = vpop.f32.mrf.mxu0
    %v2775 = vadd.f32 %v2390, %v2774
    %v2776 = vpop.f32.mrf.mxu0
    %2777 = vmatprep.mubr.f32.mxu0 0.0
    %2778 = vmatmul.mubr.f32.gmra.mxu0 %v753
    %v2779 = vpop.f32.mrf.mxu0
    %v2780 = vadd.f32 %v2395, %v2779
    %v2781 = vpop.f32.mrf.mxu0
    %2782 = vmatprep.mubr.f32.mxu0 0.0
    %2783 = vmatmul.mubr.f32.gmra.mxu0 %v756
    %v2784 = vpop.f32.mrf.mxu0
    %v2785 = vadd.f32 %v2400, %v2784
    %v2786 = vpop.f32.mrf.mxu0
    %2787 = vmatprep.mubr.f32.mxu0 0.0
    %2788 = vmatmul.mubr.f32.gmra.mxu0 %v758
    %v2789 = vpop.f32.mrf.mxu0
    %v2790 = vadd.f32 %v2405, %v2789
    %v2791 = vpop.f32.mrf.mxu0
    %2792 = vmatprep.mubr.f32.mxu0 0.0
    %2793 = vmatmul.mubr.f32.gmra.mxu0 %v761
    %v2794 = vpop.f32.mrf.mxu0
    %v2795 = vadd.f32 %v2410, %v2794
    %v2796 = vpop.f32.mrf.mxu0
    %2797 = vmatprep.mubr.f32.mxu0 0.0
    %2798 = vmatmul.mubr.f32.gmra.mxu0 %v763
    %v2799 = vpop.f32.mrf.mxu0
    %v2800 = vadd.f32 %v2415, %v2799
    %v2801 = vpop.f32.mrf.mxu0
    %2802 = vmatprep.mubr.f32.mxu0 0.0
    %2803 = vmatmul.mubr.f32.gmra.mxu0 %v766
    %v2804 = vpop.f32.mrf.mxu0
    %v2805 = vadd.f32 %v2420, %v2804
    %v2806 = vpop.f32.mrf.mxu0
    %2807 = vmatprep.mubr.f32.mxu0 0.0
    %2808 = vmatmul.mubr.f32.gmra.mxu0 %v768
    %v2809 = vpop.f32.mrf.mxu0
    %v2810 = vadd.f32 %v2425, %v2809
    %v2811 = vpop.f32.mrf.mxu0
    %2812 = vmatprep.mubr.f32.mxu0 0.0
    %2813 = vmatmul.mubr.f32.gmra.mxu0 %v860
    %v2814 = vpop.f32.mrf.mxu0
    %v2815 = vadd.f32 %v2430, %v2814
    %v2816 = vpop.f32.mrf.mxu0
    %2817 = vmatprep.mubr.f32.mxu0 0.0
    %2818 = vmatmul.mubr.f32.gmra.mxu0 %v862
    %v2819 = vpop.f32.mrf.mxu0
    %v2820 = vadd.f32 %v2435, %v2819
    %v2821 = vpop.f32.mrf.mxu0
    %2822 = vmatprep.mubr.f32.mxu0 0.0
    %2823 = vmatmul.mubr.f32.gmra.mxu0 %v894
    %v2824 = vpop.f32.mrf.mxu0
    %v2825 = vadd.f32 %v2440, %v2824
    %v2826 = vpop.f32.mrf.mxu0
    %2827 = vmatprep.mubr.f32.mxu0 0.0
    %2828 = vmatmul.mubr.f32.gmra.mxu0 %v896
    %v2829 = vpop.f32.mrf.mxu0
    %v2830 = vadd.f32 %v2445, %v2829
    %v2831 = vpop.f32.mrf.mxu0
    %2832 = vdwg.mxu0
    %v2833 = vmax.f32 %v2515, 0.0
    %v2834 = vmax.f32 %v2520, 0.0
    %v2835 = vmax.f32 %v2525, 0.0
    %v2836 = vmax.f32 %v2530, 0.0
    %v2837 = vmax.f32 %v2535, 0.0
    %v2838 = vmax.f32 %v2540, 0.0
    %v2839 = vmax.f32 %v2545, 0.0
    %v2840 = vmax.f32 %v2550, 0.0
    %v2841 = vmax.f32 %v2555, 0.0
    %v2842 = vmax.f32 %v2560, 0.0
    %v2843 = vmax.f32 %v2565, 0.0
    %v2844 = vmax.f32 %v2570, 0.0
    %v2845 = vmax.f32 %v2575, 0.0
    %v2846 = vmax.f32 %v2580, 0.0
    %v2847 = vmax.f32 %v2585, 0.0
    %v2848 = vmax.f32 %v2590, 0.0
    %v2849 = vmax.f32 %v2595, 0.0
    %v2850 = vmax.f32 %v2600, 0.0
    %v2851 = vmax.f32 %v2605, 0.0
    %v2852 = vmax.f32 %v2610, 0.0
    %v2853 = vmax.f32 %v2615, 0.0
    %v2854 = vmax.f32 %v2620, 0.0
    %v2855 = vmax.f32 %v2625, 0.0
    %v2856 = vmax.f32 %v2630, 0.0
    %v2857 = vmax.f32 %v2635, 0.0
    %v2858 = vmax.f32 %v2640, 0.0
    %v2859 = vmax.f32 %v2645, 0.0
    %v2860 = vmax.f32 %v2650, 0.0
    %v2861 = vmax.f32 %v2655, 0.0
    %v2862 = vmax.f32 %v2660, 0.0
    %v2863 = vmax.f32 %v2665, 0.0
    %v2864 = vmax.f32 %v2670, 0.0
    %v2865 = vmax.f32 %v2675, 0.0
    %v2866 = vmax.f32 %v2680, 0.0
    %v2867 = vmax.f32 %v2685, 0.0
    %v2868 = vmax.f32 %v2690, 0.0
    %v2869 = vmax.f32 %v2695, 0.0
    %v2870 = vmax.f32 %v2700, 0.0
    %v2871 = vmax.f32 %v2705, 0.0
    %v2872 = vmax.f32 %v2710, 0.0
    %v2873 = vmax.f32 %v2715, 0.0
    %v2874 = vmax.f32 %v2720, 0.0
    %v2875 = vmax.f32 %v2725, 0.0
    %v2876 = vmax.f32 %v2730, 0.0
    %v2877 = vmax.f32 %v2735, 0.0
    %v2878 = vmax.f32 %v2740, 0.0
    %v2879 = vmax.f32 %v2745, 0.0
    %v2880 = vmax.f32 %v2750, 0.0
    %v2881 = vmax.f32 %v2755, 0.0
    %v2882 = vmax.f32 %v2760, 0.0
    %v2883 = vmax.f32 %v2765, 0.0
    %v2884 = vmax.f32 %v2770, 0.0
    %v2885 = vmax.f32 %v2775, 0.0
    %v2886 = vmax.f32 %v2780, 0.0
    %v2887 = vmax.f32 %v2785, 0.0
    %v2888 = vmax.f32 %v2790, 0.0
    %v2889 = vmax.f32 %v2795, 0.0
    %v2890 = vmax.f32 %v2800, 0.0
    %v2891 = vmax.f32 %v2805, 0.0
    %v2892 = vmax.f32 %v2810, 0.0
    %v2893 = vmax.f32 %v2815, 0.0
    %v2894 = vmax.f32 %v2820, 0.0
    %v2895 = vmax.f32 %v2825, 0.0
    %v2896 = vmax.f32 %v2830, 0.0
    %vm2962 = vcmask 1040384
    %v2963 = vrot.slane 0.0, 7
    %v2964 = vsel %vm2962, %v2963, %v2963
    %v2965 = vrot.slane %v2833, 7
    %v2966 = vrot.slane %v2834, 7
    %v2967 = vsel %vm2962, %v2965, %v2966
    %v2968 = vrot.slane %v2835, 7
    %v2969 = vrot.slane %v2836, 7
    %v2970 = vsel %vm2962, %v2968, %v2969
    %v2971 = vrot.slane %v2837, 7
    %v2972 = vrot.slane %v2838, 7
    %v2973 = vsel %vm2962, %v2971, %v2972
    %v2974 = vrot.slane %v2839, 7
    %v2975 = vrot.slane %v2840, 7
    %v2976 = vsel %vm2962, %v2974, %v2975
    %v2977 = vrot.slane %v2841, 7
    %v2978 = vrot.slane %v2842, 7
    %v2979 = vsel %vm2962, %v2977, %v2978
    %v2980 = vrot.slane %v2843, 7
    %v2981 = vrot.slane %v2844, 7
    %v2982 = vsel %vm2962, %v2980, %v2981
    %v2983 = vrot.slane %v2845, 7
    %v2984 = vrot.slane %v2846, 7
    %v2985 = vsel %vm2962, %v2983, %v2984
    %v2986 = vrot.slane %v2847, 7
    %v2987 = vrot.slane %v2848, 7
    %v2988 = vsel %vm2962, %v2986, %v2987
    %v2989 = vrot.slane %v2849, 7
    %v2990 = vrot.slane %v2850, 7
    %v2991 = vsel %vm2962, %v2989, %v2990
    %v2992 = vrot.slane %v2851, 7
    %v2993 = vrot.slane %v2852, 7
    %v2994 = vsel %vm2962, %v2992, %v2993
    %v2995 = vrot.slane %v2853, 7
    %v2996 = vrot.slane %v2854, 7
    %v2997 = vsel %vm2962, %v2995, %v2996
    %v2998 = vrot.slane %v2855, 7
    %v2999 = vrot.slane %v2856, 7
    %v3000 = vsel %vm2962, %v2998, %v2999
    %v3001 = vrot.slane %v2857, 7
    %v3002 = vrot.slane %v2858, 7
    %v3003 = vsel %vm2962, %v3001, %v3002
    %v3004 = vrot.slane %v2859, 7
    %v3005 = vrot.slane %v2860, 7
    %v3006 = vsel %vm2962, %v3004, %v3005
    %v3007 = vrot.slane %v2861, 7
    %v3008 = vrot.slane %v2862, 7
    %v3009 = vsel %vm2962, %v3007, %v3008
    %v3010 = vrot.slane %v2863, 7
    %v3011 = vrot.slane %v2864, 7
    %v3012 = vsel %vm2962, %v3010, %v3011
    %v3013 = vrot.slane %v2865, 7
    %v3014 = vrot.slane %v2866, 7
    %v3015 = vsel %vm2962, %v3013, %v3014
    %v3016 = vrot.slane %v2867, 7
    %v3017 = vrot.slane %v2868, 7
    %v3018 = vsel %vm2962, %v3016, %v3017
    %v3019 = vrot.slane %v2869, 7
    %v3020 = vrot.slane %v2870, 7
    %v3021 = vsel %vm2962, %v3019, %v3020
    %v3022 = vrot.slane %v2871, 7
    %v3023 = vrot.slane %v2872, 7
    %v3024 = vsel %vm2962, %v3022, %v3023
    %v3025 = vrot.slane %v2873, 7
    %v3026 = vrot.slane %v2874, 7
    %v3027 = vsel %vm2962, %v3025, %v3026
    %v3028 = vrot.slane %v2875, 7
    %v3029 = vrot.slane %v2876, 7
    %v3030 = vsel %vm2962, %v3028, %v3029
    %v3031 = vrot.slane %v2877, 7
    %v3032 = vrot.slane %v2878, 7
    %v3033 = vsel %vm2962, %v3031, %v3032
    %v3034 = vrot.slane %v2879, 7
    %v3035 = vrot.slane %v2880, 7
    %v3036 = vsel %vm2962, %v3034, %v3035
    %v3037 = vrot.slane %v2881, 7
    %v3038 = vrot.slane %v2882, 7
    %v3039 = vsel %vm2962, %v3037, %v3038
    %v3040 = vrot.slane %v2883, 7
    %v3041 = vrot.slane %v2884, 7
    %v3042 = vsel %vm2962, %v3040, %v3041
    %v3043 = vrot.slane %v2885, 7
    %v3044 = vrot.slane %v2886, 7
    %v3045 = vsel %vm2962, %v3043, %v3044
    %v3046 = vrot.slane %v2887, 7
    %v3047 = vrot.slane %v2888, 7
    %v3048 = vsel %vm2962, %v3046, %v3047
    %v3049 = vrot.slane %v2889, 7
    %v3050 = vrot.slane %v2890, 7
    %v3051 = vsel %vm2962, %v3049, %v3050
    %v3052 = vrot.slane %v2891, 7
    %v3053 = vrot.slane %v2892, 7
    %v3054 = vsel %vm2962, %v3052, %v3053
    %v3055 = vrot.slane %v2893, 7
    %v3056 = vrot.slane %v2894, 7
    %v3057 = vsel %vm2962, %v3055, %v3056
    %v3058 = vrot.slane %v2895, 7
    %v3059 = vrot.slane %v2896, 7
    %v3060 = vsel %vm2962, %v3058, %v3059
    %v3159 = vsel %vm2962, 0.0, %v2963
    %v3160 = vsel %vm2962, 0.0, %v2965
    %v3161 = vsel %vm2962, 0.0, %v2968
    %v3162 = vsel %vm2962, 0.0, %v2971
    %v3163 = vsel %vm2962, 0.0, %v2974
    %v3164 = vsel %vm2962, 0.0, %v2977
    %v3165 = vsel %vm2962, 0.0, %v2980
    %v3166 = vsel %vm2962, 0.0, %v2983
    %v3167 = vsel %vm2962, 0.0, %v2986
    %v3168 = vsel %vm2962, 0.0, %v2989
    %v3169 = vsel %vm2962, 0.0, %v2992
    %v3170 = vsel %vm2962, 0.0, %v2995
    %v3171 = vsel %vm2962, 0.0, %v2998
    %v3172 = vsel %vm2962, 0.0, %v3001
    %v3173 = vsel %vm2962, 0.0, %v3004
    %v3174 = vsel %vm2962, 0.0, %v3007
    %v3175 = vsel %vm2962, 0.0, %v3010
    %v3176 = vsel %vm2962, 0.0, %v3013
    %v3177 = vsel %vm2962, 0.0, %v3016
    %v3178 = vsel %vm2962, 0.0, %v3019
    %v3179 = vsel %vm2962, 0.0, %v3022
    %v3180 = vsel %vm2962, 0.0, %v3025
    %v3181 = vsel %vm2962, 0.0, %v3028
    %v3182 = vsel %vm2962, 0.0, %v3031
    %v3183 = vsel %vm2962, 0.0, %v3034
    %v3184 = vsel %vm2962, 0.0, %v3037
    %v3185 = vsel %vm2962, 0.0, %v3040
    %v3186 = vsel %vm2962, 0.0, %v3043
    %v3187 = vsel %vm2962, 0.0, %v3046
    %v3188 = vsel %vm2962, 0.0, %v3049
    %v3189 = vsel %vm2962, 0.0, %v3052
    %v3190 = vsel %vm2962, 0.0, %v3055
    %v3191 = vsel %vm2962, 0.0, %v3058
    %v3192 = vsel %vm2962, %v2963, 0.0
    %v3193 = vsel %vm2962, %v2966, 0.0
    %v3194 = vsel %vm2962, %v2969, 0.0
    %v3195 = vsel %vm2962, %v2972, 0.0
    %v3196 = vsel %vm2962, %v2975, 0.0
    %v3197 = vsel %vm2962, %v2978, 0.0
    %v3198 = vsel %vm2962, %v2981, 0.0
    %v3199 = vsel %vm2962, %v2984, 0.0
    %v3200 = vsel %vm2962, %v2987, 0.0
    %v3201 = vsel %vm2962, %v2990, 0.0
    %v3202 = vsel %vm2962, %v2993, 0.0
    %v3203 = vsel %vm2962, %v2996, 0.0
    %v3204 = vsel %vm2962, %v2999, 0.0
    %v3205 = vsel %vm2962, %v3002, 0.0
    %v3206 = vsel %vm2962, %v3005, 0.0
    %v3207 = vsel %vm2962, %v3008, 0.0
    %v3208 = vsel %vm2962, %v3011, 0.0
    %v3209 = vsel %vm2962, %v3014, 0.0
    %v3210 = vsel %vm2962, %v3017, 0.0
    %v3211 = vsel %vm2962, %v3020, 0.0
    %v3212 = vsel %vm2962, %v3023, 0.0
    %v3213 = vsel %vm2962, %v3026, 0.0
    %v3214 = vsel %vm2962, %v3029, 0.0
    %v3215 = vsel %vm2962, %v3032, 0.0
    %v3216 = vsel %vm2962, %v3035, 0.0
    %v3217 = vsel %vm2962, %v3038, 0.0
    %v3218 = vsel %vm2962, %v3041, 0.0
    %v3219 = vsel %vm2962, %v3044, 0.0
    %v3220 = vsel %vm2962, %v3047, 0.0
    %v3221 = vsel %vm2962, %v3050, 0.0
    %v3222 = vsel %vm2962, %v3053, 0.0
    %v3223 = vsel %vm2962, %v3056, 0.0
    %v3224 = vsel %vm2962, %v3059, 0.0
    %v3225 = vld [vmem:[#allocation2] sm:$0xff]
    %v3226 = vld [vmem:[#allocation2 + $0x8] sm:$0xff]
    %v3227 = vld [vmem:[#allocation2 + $0x10] sm:$0xff]
    %v3228 = vld [vmem:[#allocation2 + $0x18] sm:$0xff]
    %v3229 = vld [vmem:[#allocation2 + $0x20] sm:$0xff]
    %v3230 = vld [vmem:[#allocation2 + $0x28] sm:$0xff]
    %v3231 = vld [vmem:[#allocation2 + $0x30] sm:$0xff]
    %v3232 = vld [vmem:[#allocation2 + $0x38] sm:$0xff]
    %v3233 = vld [vmem:[#allocation2 + $0x40] sm:$0xff]
    %v3234 = vld [vmem:[#allocation2 + $0x48] sm:$0xff]
    %v3235 = vld [vmem:[#allocation2 + $0x50] sm:$0xff]
    %v3236 = vld [vmem:[#allocation2 + $0x58] sm:$0xff]
    %v3237 = vld [vmem:[#allocation2 + $0x60] sm:$0xff]
    %v3238 = vld [vmem:[#allocation2 + $0x68] sm:$0xff]
    %v3239 = vld [vmem:[#allocation2 + $0x70] sm:$0xff]
    %v3240 = vld [vmem:[#allocation2 + $0x78] sm:$0xff]
    %v3241 = vld [vmem:[#allocation2 + $0x80] sm:$0xff]
    %v3242 = vld [vmem:[#allocation2 + $0x88] sm:$0xff]
    %v3243 = vld [vmem:[#allocation2 + $0x90] sm:$0xff]
    %v3244 = vld [vmem:[#allocation2 + $0x98] sm:$0xff]
    %v3245 = vld [vmem:[#allocation2 + $0xa0] sm:$0xff]
    %v3246 = vld [vmem:[#allocation2 + $0xa8] sm:$0xff]
    %v3247 = vld [vmem:[#allocation2 + $0xb0] sm:$0xff]
    %v3248 = vld [vmem:[#allocation2 + $0xb8] sm:$0xff]
    %v3249 = vld [vmem:[#allocation2 + $0xc0] sm:$0xff]
    %v3250 = vld [vmem:[#allocation2 + $0xc8] sm:$0xff]
    %v3251 = vld [vmem:[#allocation2 + $0xd0] sm:$0xff]
    %v3252 = vld [vmem:[#allocation2 + $0xd8] sm:$0xff]
    %v3253 = vld [vmem:[#allocation2 + $0xe0] sm:$0xff]
    %v3254 = vld [vmem:[#allocation2 + $0xe8] sm:$0xff]
    %v3255 = vld [vmem:[#allocation2 + $0xf0] sm:$0xff]
    %v3256 = vld [vmem:[#allocation2 + $0xf8] sm:$0xff]
    %v3257 = vld [vmem:[#allocation2 + $0x100] sm:$0xff]
    %v3258 = vld [vmem:[#allocation2 + $0x108] sm:$0xff]
    %v3259 = vld [vmem:[#allocation2 + $0x110] sm:$0xff]
    %v3260 = vld [vmem:[#allocation2 + $0x118] sm:$0xff]
    %v3261 = vld [vmem:[#allocation2 + $0x120] sm:$0xff]
    %v3262 = vld [vmem:[#allocation2 + $0x128] sm:$0xff]
    %v3263 = vld [vmem:[#allocation2 + $0x130] sm:$0xff]
    %v3264 = vld [vmem:[#allocation2 + $0x138] sm:$0xff]
    %v3265 = vld [vmem:[#allocation2 + $0x140] sm:$0xff]
    %v3266 = vld [vmem:[#allocation2 + $0x148] sm:$0xff]
    %v3267 = vld [vmem:[#allocation2 + $0x150] sm:$0xff]
    %v3268 = vld [vmem:[#allocation2 + $0x158] sm:$0xff]
    %v3269 = vld [vmem:[#allocation2 + $0x160] sm:$0xff]
    %v3270 = vld [vmem:[#allocation2 + $0x168] sm:$0xff]
    %v3271 = vld [vmem:[#allocation2 + $0x170] sm:$0xff]
    %v3272 = vld [vmem:[#allocation2 + $0x178] sm:$0xff]
    %v3273 = vld [vmem:[#allocation2 + $0x180] sm:$0xff]
    %v3274 = vld [vmem:[#allocation2 + $0x188] sm:$0xff]
    %v3275 = vld [vmem:[#allocation2 + $0x190] sm:$0xff]
    %v3276 = vld [vmem:[#allocation2 + $0x198] sm:$0xff]
    %v3277 = vld [vmem:[#allocation2 + $0x1a0] sm:$0xff]
    %v3278 = vld [vmem:[#allocation2 + $0x1a8] sm:$0xff]
    %v3279 = vld [vmem:[#allocation2 + $0x1b0] sm:$0xff]
    %v3280 = vld [vmem:[#allocation2 + $0x1b8] sm:$0xff]
    %v3281 = vld [vmem:[#allocation2 + $0x1c0] sm:$0xff]
    %v3282 = vld [vmem:[#allocation2 + $0x1c8] sm:$0xff]
    %v3283 = vld [vmem:[#allocation2 + $0x1d0] sm:$0xff]
    %v3284 = vld [vmem:[#allocation2 + $0x1d8] sm:$0xff]
    %v3285 = vld [vmem:[#allocation2 + $0x1e0] sm:$0xff]
    %v3286 = vld [vmem:[#allocation2 + $0x1e8] sm:$0xff]
    %v3287 = vld [vmem:[#allocation2 + $0x1f0] sm:$0xff]
    %v3288 = vld [vmem:[#allocation2 + $0x1f8] sm:$0xff]
    %v3289 = vld [vmem:[#allocation2 + $0x200] sm:$0xff]
    %v3290 = vld [vmem:[#allocation2 + $0x208] sm:$0xff]
    %v3291 = vld [vmem:[#allocation2 + $0x210] sm:$0xff]
    %v3292 = vld [vmem:[#allocation2 + $0x218] sm:$0xff]
    %v3293 = vld [vmem:[#allocation2 + $0x220] sm:$0xff]
    %v3294 = vld [vmem:[#allocation2 + $0x228] sm:$0xff]
    %v3295 = vld [vmem:[#allocation2 + $0x230] sm:$0xff]
    %v3296 = vld [vmem:[#allocation2 + $0x238] sm:$0xff]
    %v3297 = vld [vmem:[#allocation2 + $0x240] sm:$0xff]
    %v3298 = vld [vmem:[#allocation2 + $0x248] sm:$0xff]
    %v3299 = vld [vmem:[#allocation2 + $0x250] sm:$0xff]
    %v3300 = vld [vmem:[#allocation2 + $0x258] sm:$0xff]
    %v3301 = vld [vmem:[#allocation2 + $0x260] sm:$0xff]
    %v3302 = vld [vmem:[#allocation2 + $0x268] sm:$0xff]
    %v3303 = vld [vmem:[#allocation2 + $0x270] sm:$0xff]
    %v3304 = vld [vmem:[#allocation2 + $0x278] sm:$0xff]
    %v3305 = vld [vmem:[#allocation2 + $0x280] sm:$0xff]
    %v3306 = vld [vmem:[#allocation2 + $0x288] sm:$0xff]
    %v3307 = vld [vmem:[#allocation2 + $0x290] sm:$0xff]
    %v3308 = vld [vmem:[#allocation2 + $0x298] sm:$0xff]
    %v3309 = vld [vmem:[#allocation2 + $0x2a0] sm:$0xff]
    %v3310 = vld [vmem:[#allocation2 + $0x2a8] sm:$0xff]
    %v3311 = vld [vmem:[#allocation2 + $0x2b0] sm:$0xff]
    %v3312 = vld [vmem:[#allocation2 + $0x2b8] sm:$0xff]
    %v3313 = vld [vmem:[#allocation2 + $0x2c0] sm:$0xff]
    %v3314 = vld [vmem:[#allocation2 + $0x2c8] sm:$0xff]
    %v3315 = vld [vmem:[#allocation2 + $0x2d0] sm:$0xff]
    %v3316 = vld [vmem:[#allocation2 + $0x2d8] sm:$0xff]
    %v3317 = vld [vmem:[#allocation2 + $0x2e0] sm:$0xff]
    %v3318 = vld [vmem:[#allocation2 + $0x2e8] sm:$0xff]
    %v3319 = vld [vmem:[#allocation2 + $0x2f0] sm:$0xff]
    %v3320 = vld [vmem:[#allocation2 + $0x2f8] sm:$0xff]
    %v3321 = vld [vmem:[#allocation2 + $0x300] sm:$0xff]
    %v3322 = vld [vmem:[#allocation2 + $0x308] sm:$0xff]
    %v3323 = vld [vmem:[#allocation2 + $0x310] sm:$0xff]
    %v3324 = vld [vmem:[#allocation2 + $0x318] sm:$0xff]
    %v3325 = vld [vmem:[#allocation2 + $0x320] sm:$0xff]
    %v3326 = vld [vmem:[#allocation2 + $0x328] sm:$0xff]
    %v3327 = vld [vmem:[#allocation2 + $0x330] sm:$0xff]
    %v3328 = vld [vmem:[#allocation2 + $0x338] sm:$0xff]
    %v3329 = vld [vmem:[#allocation2 + $0x340] sm:$0xff]
    %v3330 = vld [vmem:[#allocation2 + $0x348] sm:$0xff]
    %v3331 = vld [vmem:[#allocation2 + $0x350] sm:$0xff]
    %v3332 = vld [vmem:[#allocation2 + $0x358] sm:$0xff]
    %v3333 = vld [vmem:[#allocation2 + $0x360] sm:$0xff]
    %v3334 = vld [vmem:[#allocation2 + $0x368] sm:$0xff]
    %v3335 = vld [vmem:[#allocation2 + $0x370] sm:$0xff]
    %v3336 = vld [vmem:[#allocation2 + $0x378] sm:$0xff]
    %v3337 = vld [vmem:[#allocation2 + $0x380] sm:$0xff]
    %v3338 = vld [vmem:[#allocation2 + $0x388] sm:$0xff]
    %v3339 = vld [vmem:[#allocation2 + $0x390] sm:$0xff]
    %v3340 = vld [vmem:[#allocation2 + $0x398] sm:$0xff]
    %v3341 = vld [vmem:[#allocation2 + $0x3a0] sm:$0xff]
    %v3342 = vld [vmem:[#allocation2 + $0x3a8] sm:$0xff]
    %v3343 = vld [vmem:[#allocation2 + $0x3b0] sm:$0xff]
    %v3344 = vld [vmem:[#allocation2 + $0x3b8] sm:$0xff]
    %v3345 = vld [vmem:[#allocation2 + $0x3c0] sm:$0xff]
    %v3346 = vld [vmem:[#allocation2 + $0x3c8] sm:$0xff]
    %v3347 = vld [vmem:[#allocation2 + $0x3d0] sm:$0xff]
    %v3348 = vld [vmem:[#allocation2 + $0x3d8] sm:$0xff]
    %v3349 = vld [vmem:[#allocation2 + $0x3e0] sm:$0xff]
    %v3350 = vld [vmem:[#allocation2 + $0x3e8] sm:$0xff]
    %v3351 = vld [vmem:[#allocation2 + $0x3f0] sm:$0xff]
    %v3352 = vld [vmem:[#allocation2 + $0x3f8] sm:$0xff]
    %v3353 = vld [vmem:[#allocation2 + $0x400] sm:$0xff]
    %v3354 = vld [vmem:[#allocation2 + $0x408] sm:$0xff]
    %v3355 = vld [vmem:[#allocation2 + $0x410] sm:$0xff]
    %v3356 = vld [vmem:[#allocation2 + $0x418] sm:$0xff]
    %v3357 = vld [vmem:[#allocation2 + $0x420] sm:$0xff]
    %v3358 = vld [vmem:[#allocation2 + $0x428] sm:$0xff]
    %v3359 = vld [vmem:[#allocation2 + $0x430] sm:$0xff]
    %v3360 = vld [vmem:[#allocation2 + $0x438] sm:$0xff]
    %v3361 = vld [vmem:[#allocation2 + $0x440] sm:$0xff]
    %v3362 = vld [vmem:[#allocation2 + $0x448] sm:$0xff]
    %v3363 = vld [vmem:[#allocation2 + $0x450] sm:$0xff]
    %v3364 = vld [vmem:[#allocation2 + $0x458] sm:$0xff]
    %v3365 = vld [vmem:[#allocation2 + $0x460] sm:$0xff]
    %v3366 = vld [vmem:[#allocation2 + $0x468] sm:$0xff]
    %v3367 = vld [vmem:[#allocation2 + $0x470] sm:$0xff]
    %v3368 = vld [vmem:[#allocation2 + $0x478] sm:$0xff]
    %v3431 = vrot.slane %v3159, 1
    %v3432 = vrot.slane %v2964, 1
    %v3433 = vsel %vm383, %v3431, %v3432
    %v3434 = vrot.slane %v3192, 1
    %v3435 = vsel %vm383, %v3432, %v3434
    %v3436 = vrot.slane %v3160, 1
    %v3437 = vrot.slane %v2967, 1
    %v3438 = vsel %vm383, %v3436, %v3437
    %v3439 = vrot.slane %v3193, 1
    %v3440 = vsel %vm383, %v3437, %v3439
    %v3441 = vrot.slane %v3161, 1
    %v3442 = vrot.slane %v2970, 1
    %v3443 = vsel %vm383, %v3441, %v3442
    %v3444 = vrot.slane %v3194, 1
    %v3445 = vsel %vm383, %v3442, %v3444
    %v3446 = vrot.slane %v3162, 1
    %v3447 = vrot.slane %v2973, 1
    %v3448 = vsel %vm383, %v3446, %v3447
    %v3449 = vrot.slane %v3195, 1
    %v3450 = vsel %vm383, %v3447, %v3449
    %v3451 = vrot.slane %v3163, 1
    %v3452 = vrot.slane %v2976, 1
    %v3453 = vsel %vm383, %v3451, %v3452
    %v3454 = vrot.slane %v3196, 1
    %v3455 = vsel %vm383, %v3452, %v3454
    %v3456 = vrot.slane %v3164, 1
    %v3457 = vrot.slane %v2979, 1
    %v3458 = vsel %vm383, %v3456, %v3457
    %v3459 = vrot.slane %v3197, 1
    %v3460 = vsel %vm383, %v3457, %v3459
    %v3461 = vrot.slane %v3165, 1
    %v3462 = vrot.slane %v2982, 1
    %v3463 = vsel %vm383, %v3461, %v3462
    %v3464 = vrot.slane %v3198, 1
    %v3465 = vsel %vm383, %v3462, %v3464
    %v3466 = vrot.slane %v3166, 1
    %v3467 = vrot.slane %v2985, 1
    %v3468 = vsel %vm383, %v3466, %v3467
    %v3469 = vrot.slane %v3199, 1
    %v3470 = vsel %vm383, %v3467, %v3469
    %v3471 = vrot.slane %v3167, 1
    %v3472 = vrot.slane %v2988, 1
    %v3473 = vsel %vm383, %v3471, %v3472
    %v3474 = vrot.slane %v3200, 1
    %v3475 = vsel %vm383, %v3472, %v3474
    %v3476 = vrot.slane %v3168, 1
    %v3477 = vrot.slane %v2991, 1
    %v3478 = vsel %vm383, %v3476, %v3477
    %v3479 = vrot.slane %v3201, 1
    %v3480 = vsel %vm383, %v3477, %v3479
    %v3481 = vrot.slane %v3169, 1
    %v3482 = vrot.slane %v2994, 1
    %v3483 = vsel %vm383, %v3481, %v3482
    %v3484 = vrot.slane %v3202, 1
    %v3485 = vsel %vm383, %v3482, %v3484
    %v3486 = vrot.slane %v3170, 1
    %v3487 = vrot.slane %v2997, 1
    %v3488 = vsel %vm383, %v3486, %v3487
    %v3489 = vrot.slane %v3203, 1
    %v3490 = vsel %vm383, %v3487, %v3489
    %v3491 = vrot.slane %v3171, 1
    %v3492 = vrot.slane %v3000, 1
    %v3493 = vsel %vm383, %v3491, %v3492
    %v3494 = vrot.slane %v3204, 1
    %v3495 = vsel %vm383, %v3492, %v3494
    %v3496 = vrot.slane %v3172, 1
    %v3497 = vrot.slane %v3003, 1
    %v3498 = vsel %vm383, %v3496, %v3497
    %v3499 = vrot.slane %v3205, 1
    %v3500 = vsel %vm383, %v3497, %v3499
    %v3501 = vrot.slane %v3173, 1
    %v3502 = vrot.slane %v3006, 1
    %v3503 = vsel %vm383, %v3501, %v3502
    %v3504 = vrot.slane %v3206, 1
    %v3505 = vsel %vm383, %v3502, %v3504
    %v3506 = vrot.slane %v3174, 1
    %v3507 = vrot.slane %v3009, 1
    %v3508 = vsel %vm383, %v3506, %v3507
    %v3509 = vrot.slane %v3207, 1
    %v3510 = vsel %vm383, %v3507, %v3509
    %v3511 = vrot.slane %v3176, 1
    %v3512 = vrot.slane %v3015, 1
    %v3513 = vsel %vm383, %v3511, %v3512
    %v3514 = vrot.slane %v3209, 1
    %v3515 = vsel %vm383, %v3512, %v3514
    %v3516 = vrot.slane %v3177, 1
    %v3517 = vrot.slane %v3018, 1
    %v3518 = vsel %vm383, %v3516, %v3517
    %v3519 = vrot.slane %v3210, 1
    %v3520 = vsel %vm383, %v3517, %v3519
    %v3521 = vrot.slane %v3178, 1
    %v3522 = vrot.slane %v3021, 1
    %v3523 = vsel %vm383, %v3521, %v3522
    %v3524 = vrot.slane %v3211, 1
    %v3525 = vsel %vm383, %v3522, %v3524
    %v3526 = vrot.slane %v3179, 1
    %v3527 = vrot.slane %v3024, 1
    %v3528 = vsel %vm383, %v3526, %v3527
    %v3529 = vrot.slane %v3212, 1
    %v3530 = vsel %vm383, %v3527, %v3529
    %v3531 = vrot.slane %v3180, 1
    %v3532 = vrot.slane %v3027, 1
    %v3533 = vsel %vm383, %v3531, %v3532
    %v3534 = vrot.slane %v3213, 1
    %v3535 = vsel %vm383, %v3532, %v3534
    %v3536 = vrot.slane %v3181, 1
    %v3537 = vrot.slane %v3030, 1
    %v3538 = vsel %vm383, %v3536, %v3537
    %v3539 = vrot.slane %v3214, 1
    %v3540 = vsel %vm383, %v3537, %v3539
    %v3541 = vrot.slane %v3182, 1
    %v3542 = vrot.slane %v3033, 1
    %v3543 = vsel %vm383, %v3541, %v3542
    %v3544 = vrot.slane %v3215, 1
    %v3545 = vsel %vm383, %v3542, %v3544
    %v3546 = vrot.slane %v3183, 1
    %v3547 = vrot.slane %v3036, 1
    %v3548 = vsel %vm383, %v3546, %v3547
    %v3549 = vrot.slane %v3216, 1
    %v3550 = vsel %vm383, %v3547, %v3549
    %v3551 = vrot.slane %v3184, 1
    %v3552 = vrot.slane %v3039, 1
    %v3553 = vsel %vm383, %v3551, %v3552
    %v3554 = vrot.slane %v3217, 1
    %v3555 = vsel %vm383, %v3552, %v3554
    %v3556 = vrot.slane %v3185, 1
    %v3557 = vrot.slane %v3042, 1
    %v3558 = vsel %vm383, %v3556, %v3557
    %v3559 = vrot.slane %v3218, 1
    %v3560 = vsel %vm383, %v3557, %v3559
    %v3561 = vrot.slane %v3186, 1
    %v3562 = vrot.slane %v3045, 1
    %v3563 = vsel %vm383, %v3561, %v3562
    %v3564 = vrot.slane %v3219, 1
    %v3565 = vsel %vm383, %v3562, %v3564
    %v3566 = vrot.slane %v3187, 1
    %v3567 = vrot.slane %v3048, 1
    %v3568 = vsel %vm383, %v3566, %v3567
    %v3569 = vrot.slane %v3220, 1
    %v3570 = vsel %vm383, %v3567, %v3569
    %v3571 = vrot.slane %v3188, 1
    %v3572 = vrot.slane %v3051, 1
    %v3573 = vsel %vm383, %v3571, %v3572
    %v3574 = vrot.slane %v3221, 1
    %v3575 = vsel %vm383, %v3572, %v3574
    %v3576 = vrot.slane %v3189, 1
    %v3577 = vrot.slane %v3054, 1
    %v3578 = vsel %vm383, %v3576, %v3577
    %v3579 = vrot.slane %v3222, 1
    %v3580 = vsel %vm383, %v3577, %v3579
    %v3581 = vrot.slane %v3190, 1
    %v3582 = vrot.slane %v3057, 1
    %v3583 = vsel %vm383, %v3581, %v3582
    %v3584 = vrot.slane %v3223, 1
    %v3585 = vsel %vm383, %v3582, %v3584
    %v3648 = vrot.slane %v3159, 2
    %v3649 = vrot.slane %v2964, 2
    %v3650 = vsel %vm608, %v3648, %v3649
    %v3651 = vrot.slane %v3192, 2
    %v3652 = vsel %vm608, %v3649, %v3651
    %v3653 = vrot.slane %v3160, 2
    %v3654 = vrot.slane %v2967, 2
    %v3655 = vsel %vm608, %v3653, %v3654
    %v3656 = vrot.slane %v3193, 2
    %v3657 = vsel %vm608, %v3654, %v3656
    %v3658 = vrot.slane %v3161, 2
    %v3659 = vrot.slane %v2970, 2
    %v3660 = vsel %vm608, %v3658, %v3659
    %v3661 = vrot.slane %v3194, 2
    %v3662 = vsel %vm608, %v3659, %v3661
    %v3663 = vrot.slane %v3162, 2
    %v3664 = vrot.slane %v2973, 2
    %v3665 = vsel %vm608, %v3663, %v3664
    %v3666 = vrot.slane %v3195, 2
    %v3667 = vsel %vm608, %v3664, %v3666
    %v3668 = vrot.slane %v3163, 2
    %v3669 = vrot.slane %v2976, 2
    %v3670 = vsel %vm608, %v3668, %v3669
    %v3671 = vrot.slane %v3196, 2
    %v3672 = vsel %vm608, %v3669, %v3671
    %v3673 = vrot.slane %v3164, 2
    %v3674 = vrot.slane %v2979, 2
    %v3675 = vsel %vm608, %v3673, %v3674
    %v3676 = vrot.slane %v3197, 2
    %v3677 = vsel %vm608, %v3674, %v3676
    %v3678 = vrot.slane %v3165, 2
    %v3679 = vrot.slane %v2982, 2
    %v3680 = vsel %vm608, %v3678, %v3679
    %v3681 = vrot.slane %v3198, 2
    %v3682 = vsel %vm608, %v3679, %v3681
    %v3683 = vrot.slane %v3166, 2
    %v3684 = vrot.slane %v2985, 2
    %v3685 = vsel %vm608, %v3683, %v3684
    %v3686 = vrot.slane %v3199, 2
    %v3687 = vsel %vm608, %v3684, %v3686
    %v3688 = vrot.slane %v3167, 2
    %v3689 = vrot.slane %v2988, 2
    %v3690 = vsel %vm608, %v3688, %v3689
    %v3691 = vrot.slane %v3200, 2
    %v3692 = vsel %vm608, %v3689, %v3691
    %v3693 = vrot.slane %v3168, 2
    %v3694 = vrot.slane %v2991, 2
    %v3695 = vsel %vm608, %v3693, %v3694
    %v3696 = vrot.slane %v3201, 2
    %v3697 = vsel %vm608, %v3694, %v3696
    %v3698 = vrot.slane %v3169, 2
    %v3699 = vrot.slane %v2994, 2
    %v3700 = vsel %vm608, %v3698, %v3699
    %v3701 = vrot.slane %v3202, 2
    %v3702 = vsel %vm608, %v3699, %v3701
    %v3703 = vrot.slane %v3170, 2
    %v3704 = vrot.slane %v2997, 2
    %v3705 = vsel %vm608, %v3703, %v3704
    %v3706 = vrot.slane %v3203, 2
    %v3707 = vsel %vm608, %v3704, %v3706
    %v3708 = vrot.slane %v3171, 2
    %v3709 = vrot.slane %v3000, 2
    %v3710 = vsel %vm608, %v3708, %v3709
    %v3711 = vrot.slane %v3204, 2
    %v3712 = vsel %vm608, %v3709, %v3711
    %v3713 = vrot.slane %v3172, 2
    %v3714 = vrot.slane %v3003, 2
    %v3715 = vsel %vm608, %v3713, %v3714
    %v3716 = vrot.slane %v3205, 2
    %v3717 = vsel %vm608, %v3714, %v3716
    %v3718 = vrot.slane %v3173, 2
    %v3719 = vrot.slane %v3006, 2
    %v3720 = vsel %vm608, %v3718, %v3719
    %v3721 = vrot.slane %v3206, 2
    %v3722 = vsel %vm608, %v3719, %v3721
    %v3723 = vrot.slane %v3174, 2
    %v3724 = vrot.slane %v3009, 2
    %v3725 = vsel %vm608, %v3723, %v3724
    %v3726 = vrot.slane %v3207, 2
    %v3727 = vsel %vm608, %v3724, %v3726
    %v3728 = vrot.slane %v3176, 2
    %v3729 = vrot.slane %v3015, 2
    %v3730 = vsel %vm608, %v3728, %v3729
    %v3731 = vrot.slane %v3209, 2
    %v3732 = vsel %vm608, %v3729, %v3731
    %v3733 = vrot.slane %v3177, 2
    %v3734 = vrot.slane %v3018, 2
    %v3735 = vsel %vm608, %v3733, %v3734
    %v3736 = vrot.slane %v3210, 2
    %v3737 = vsel %vm608, %v3734, %v3736
    %v3738 = vrot.slane %v3178, 2
    %v3739 = vrot.slane %v3021, 2
    %v3740 = vsel %vm608, %v3738, %v3739
    %v3741 = vrot.slane %v3211, 2
    %v3742 = vsel %vm608, %v3739, %v3741
    %v3743 = vrot.slane %v3179, 2
    %v3744 = vrot.slane %v3024, 2
    %v3745 = vsel %vm608, %v3743, %v3744
    %v3746 = vrot.slane %v3212, 2
    %v3747 = vsel %vm608, %v3744, %v3746
    %v3748 = vrot.slane %v3180, 2
    %v3749 = vrot.slane %v3027, 2
    %v3750 = vsel %vm608, %v3748, %v3749
    %v3751 = vrot.slane %v3213, 2
    %v3752 = vsel %vm608, %v3749, %v3751
    %v3753 = vrot.slane %v3181, 2
    %v3754 = vrot.slane %v3030, 2
    %v3755 = vsel %vm608, %v3753, %v3754
    %v3756 = vrot.slane %v3214, 2
    %v3757 = vsel %vm608, %v3754, %v3756
    %v3758 = vrot.slane %v3182, 2
    %v3759 = vrot.slane %v3033, 2
    %v3760 = vsel %vm608, %v3758, %v3759
    %v3761 = vrot.slane %v3215, 2
    %v3762 = vsel %vm608, %v3759, %v3761
    %v3763 = vrot.slane %v3183, 2
    %v3764 = vrot.slane %v3036, 2
    %v3765 = vsel %vm608, %v3763, %v3764
    %v3766 = vrot.slane %v3216, 2
    %v3767 = vsel %vm608, %v3764, %v3766
    %v3768 = vrot.slane %v3184, 2
    %v3769 = vrot.slane %v3039, 2
    %v3770 = vsel %vm608, %v3768, %v3769
    %v3771 = vrot.slane %v3217, 2
    %v3772 = vsel %vm608, %v3769, %v3771
    %v3773 = vrot.slane %v3185, 2
    %v3774 = vrot.slane %v3042, 2
    %v3775 = vsel %vm608, %v3773, %v3774
    %v3776 = vrot.slane %v3218, 2
    %v3777 = vsel %vm608, %v3774, %v3776
    %v3778 = vrot.slane %v3186, 2
    %v3779 = vrot.slane %v3045, 2
    %v3780 = vsel %vm608, %v3778, %v3779
    %v3781 = vrot.slane %v3219, 2
    %v3782 = vsel %vm608, %v3779, %v3781
    %v3783 = vrot.slane %v3187, 2
    %v3784 = vrot.slane %v3048, 2
    %v3785 = vsel %vm608, %v3783, %v3784
    %v3786 = vrot.slane %v3220, 2
    %v3787 = vsel %vm608, %v3784, %v3786
    %v3788 = vrot.slane %v3188, 2
    %v3789 = vrot.slane %v3051, 2
    %v3790 = vsel %vm608, %v3788, %v3789
    %v3791 = vrot.slane %v3221, 2
    %v3792 = vsel %vm608, %v3789, %v3791
    %v3793 = vrot.slane %v3189, 2
    %v3794 = vrot.slane %v3054, 2
    %v3795 = vsel %vm608, %v3793, %v3794
    %v3796 = vrot.slane %v3222, 2
    %v3797 = vsel %vm608, %v3794, %v3796
    %v3798 = vrot.slane %v3190, 2
    %v3799 = vrot.slane %v3057, 2
    %v3800 = vsel %vm608, %v3798, %v3799
    %v3801 = vrot.slane %v3223, 2
    %v3802 = vsel %vm608, %v3799, %v3801
    %v3869 = vrot.slane %v3175, 1
    %v3870 = vrot.slane %v3012, 1
    %v3871 = vsel %vm383, %v3869, %v3870
    %v3872 = vrot.slane %v3208, 1
    %v3873 = vsel %vm383, %v3870, %v3872
    %v3874 = vrot.slane %v3191, 1
    %v3875 = vrot.slane %v3060, 1
    %v3876 = vsel %vm383, %v3874, %v3875
    %v3877 = vrot.slane %v3224, 1
    %v3878 = vsel %vm383, %v3875, %v3877
    %v3883 = vrot.slane %v3175, 2
    %v3884 = vrot.slane %v3012, 2
    %v3885 = vsel %vm608, %v3883, %v3884
    %v3886 = vrot.slane %v3208, 2
    %v3887 = vsel %vm608, %v3884, %v3886
    %v3888 = vrot.slane %v3191, 2
    %v3889 = vrot.slane %v3060, 2
    %v3890 = vsel %vm608, %v3888, %v3889
    %v3891 = vrot.slane %v3224, 2
    %v3892 = vsel %vm608, %v3889, %v3891
    %v3897 = vld [vmem:[%s4] sm:$0x1]
    %v3899 = vlaneseq
    %v3900 = vshrl.u32 %v3899, 7
    %v3901 = vsub.s32 0, %v3900
    %v3902 = vrot.slane %v3897, %v3901
    %3904 = vmatprep.subr.mxu0 0.0
    %3905 = vmatpush1.msra.mxu0 %v3240
    %3906 = vmatprep.subr.mxu0 0.0
    %3907 = vmatpush1.msra.mxu0 %v3239
    %3908 = vmatprep.subr.mxu0 0.0
    %3909 = vmatpush1.msra.mxu0 %v3238
    %3910 = vmatprep.subr.mxu0 0.0
    %3911 = vmatpush1.msra.mxu0 %v3237
    %3912 = vmatprep.subr.mxu0 0.0
    %3913 = vmatpush1.msra.mxu0 %v3236
    %3914 = vmatprep.subr.mxu0 0.0
    %3915 = vmatpush1.msra.mxu0 %v3235
    %3916 = vmatprep.subr.mxu0 0.0
    %3917 = vmatpush1.msra.mxu0 %v3234
    %3918 = vmatprep.subr.mxu0 0.0
    %3919 = vmatpush1.msra.mxu0 %v3233
    %3920 = vmatprep.subr.mxu0 0.0
    %3921 = vmatpush1.msra.mxu0 %v3232
    %3922 = vmatprep.subr.mxu0 0.0
    %3923 = vmatpush1.msra.mxu0 %v3231
    %3924 = vmatprep.subr.mxu0 0.0
    %3925 = vmatpush1.msra.mxu0 %v3230
    %3926 = vmatprep.subr.mxu0 0.0
    %3927 = vmatpush1.msra.mxu0 %v3229
    %3928 = vmatprep.subr.mxu0 0.0
    %3929 = vmatpush1.msra.mxu0 %v3228
    %3930 = vmatprep.subr.mxu0 0.0
    %3931 = vmatpush1.msra.mxu0 %v3227
    %3932 = vmatprep.subr.mxu0 0.0
    %3933 = vmatpush1.msra.mxu0 %v3226
    %3934 = vmatprep.subr.mxu0 0.0
    %3935 = vmatpush1.msra.mxu0 %v3225
    %3936 = vmatprep.subr.mxu0 0.0
    %3937 = vmatpush2.msra.mxu0 %v3256
    %3938 = vmatprep.subr.mxu0 0.0
    %3939 = vmatpush2.msra.mxu0 %v3255
    %3940 = vmatprep.subr.mxu0 0.0
    %3941 = vmatpush2.msra.mxu0 %v3254
    %3942 = vmatprep.subr.mxu0 0.0
    %3943 = vmatpush2.msra.mxu0 %v3253
    %3944 = vmatprep.subr.mxu0 0.0
    %3945 = vmatpush2.msra.mxu0 %v3252
    %3946 = vmatprep.subr.mxu0 0.0
    %3947 = vmatpush2.msra.mxu0 %v3251
    %3948 = vmatprep.subr.mxu0 0.0
    %3949 = vmatpush2.msra.mxu0 %v3250
    %3950 = vmatprep.subr.mxu0 0.0
    %3951 = vmatpush2.msra.mxu0 %v3249
    %3952 = vmatprep.subr.mxu0 0.0
    %3953 = vmatpush2.msra.mxu0 %v3248
    %3954 = vmatprep.subr.mxu0 0.0
    %3955 = vmatpush2.msra.mxu0 %v3247
    %3956 = vmatprep.subr.mxu0 0.0
    %3957 = vmatpush2.msra.mxu0 %v3246
    %3958 = vmatprep.subr.mxu0 0.0
    %3959 = vmatpush2.msra.mxu0 %v3245
    %3960 = vmatprep.subr.mxu0 0.0
    %3961 = vmatpush2.msra.mxu0 %v3244
    %3962 = vmatprep.subr.mxu0 0.0
    %3963 = vmatpush2.msra.mxu0 %v3243
    %3964 = vmatprep.subr.mxu0 0.0
    %3965 = vmatpush2.msra.mxu0 %v3242
    %3966 = vmatprep.subr.mxu0 0.0
    %3967 = vmatpush2.msra.mxu0 %v3241
    %3968 = vmatprep.mubr.f32.mxu0 %v3433
    %3969 = vmatmul.mubr.f32.gmra.mxu0 %v3159
    %v3970 = vpop.f32.mrf.mxu0
    %v3971 = vadd.f32 %v3902, %v3970
    %v3972 = vpop.f32.mrf.mxu0
    %3973 = vmatprep.mubr.f32.mxu0 %v3435
    %3974 = vmatmul.mubr.f32.gmra.mxu0 %v2964
    %v3975 = vpop.f32.mrf.mxu0
    %v3976 = vadd.f32 %v3902, %v3975
    %v3977 = vpop.f32.mrf.mxu0
    %3978 = vmatprep.mubr.f32.mxu0 %v3438
    %3979 = vmatmul.mubr.f32.gmra.mxu0 %v3160
    %v3980 = vpop.f32.mrf.mxu0
    %v3981 = vadd.f32 %v3902, %v3980
    %v3982 = vpop.f32.mrf.mxu0
    %3983 = vmatprep.mubr.f32.mxu0 %v3440
    %3984 = vmatmul.mubr.f32.gmra.mxu0 %v2967
    %v3985 = vpop.f32.mrf.mxu0
    %v3986 = vadd.f32 %v3902, %v3985
    %v3987 = vpop.f32.mrf.mxu0
    %3988 = vmatprep.mubr.f32.mxu0 %v3443
    %3989 = vmatmul.mubr.f32.gmra.mxu0 %v3161
    %v3990 = vpop.f32.mrf.mxu0
    %v3991 = vadd.f32 %v3902, %v3990
    %v3992 = vpop.f32.mrf.mxu0
    %3993 = vmatprep.mubr.f32.mxu0 %v3445
    %3994 = vmatmul.mubr.f32.gmra.mxu0 %v2970
    %v3995 = vpop.f32.mrf.mxu0
    %v3996 = vadd.f32 %v3902, %v3995
    %v3997 = vpop.f32.mrf.mxu0
    %3998 = vmatprep.mubr.f32.mxu0 %v3448
    %3999 = vmatmul.mubr.f32.gmra.mxu0 %v3162
    %v4000 = vpop.f32.mrf.mxu0
    %v4001 = vadd.f32 %v3902, %v4000
    %v4002 = vpop.f32.mrf.mxu0
    %4003 = vmatprep.mubr.f32.mxu0 %v3450
    %4004 = vmatmul.mubr.f32.gmra.mxu0 %v2973
    %v4005 = vpop.f32.mrf.mxu0
    %v4006 = vadd.f32 %v3902, %v4005
    %v4007 = vpop.f32.mrf.mxu0
    %4008 = vmatprep.mubr.f32.mxu0 %v3453
    %4009 = vmatmul.mubr.f32.gmra.mxu0 %v3163
    %v4010 = vpop.f32.mrf.mxu0
    %v4011 = vadd.f32 %v3902, %v4010
    %v4012 = vpop.f32.mrf.mxu0
    %4013 = vmatprep.mubr.f32.mxu0 %v3455
    %4014 = vmatmul.mubr.f32.gmra.mxu0 %v2976
    %v4015 = vpop.f32.mrf.mxu0
    %v4016 = vadd.f32 %v3902, %v4015
    %v4017 = vpop.f32.mrf.mxu0
    %4018 = vmatprep.mubr.f32.mxu0 %v3458
    %4019 = vmatmul.mubr.f32.gmra.mxu0 %v3164
    %v4020 = vpop.f32.mrf.mxu0
    %v4021 = vadd.f32 %v3902, %v4020
    %v4022 = vpop.f32.mrf.mxu0
    %4023 = vmatprep.mubr.f32.mxu0 %v3460
    %4024 = vmatmul.mubr.f32.gmra.mxu0 %v2979
    %v4025 = vpop.f32.mrf.mxu0
    %v4026 = vadd.f32 %v3902, %v4025
    %v4027 = vpop.f32.mrf.mxu0
    %4028 = vmatprep.mubr.f32.mxu0 %v3463
    %4029 = vmatmul.mubr.f32.gmra.mxu0 %v3165
    %v4030 = vpop.f32.mrf.mxu0
    %v4031 = vadd.f32 %v3902, %v4030
    %v4032 = vpop.f32.mrf.mxu0
    %4033 = vmatprep.mubr.f32.mxu0 %v3465
    %4034 = vmatmul.mubr.f32.gmra.mxu0 %v2982
    %v4035 = vpop.f32.mrf.mxu0
    %v4036 = vadd.f32 %v3902, %v4035
    %v4037 = vpop.f32.mrf.mxu0
    %4038 = vmatprep.mubr.f32.mxu0 %v3468
    %4039 = vmatmul.mubr.f32.gmra.mxu0 %v3166
    %v4040 = vpop.f32.mrf.mxu0
    %v4041 = vadd.f32 %v3902, %v4040
    %v4042 = vpop.f32.mrf.mxu0
    %4043 = vmatprep.mubr.f32.mxu0 %v3470
    %4044 = vmatmul.mubr.f32.gmra.mxu0 %v2985
    %v4045 = vpop.f32.mrf.mxu0
    %v4046 = vadd.f32 %v3902, %v4045
    %v4047 = vpop.f32.mrf.mxu0
    %4048 = vmatprep.mubr.f32.mxu0 %v3473
    %4049 = vmatmul.mubr.f32.gmra.mxu0 %v3167
    %v4050 = vpop.f32.mrf.mxu0
    %v4051 = vadd.f32 %v3902, %v4050
    %v4052 = vpop.f32.mrf.mxu0
    %4053 = vmatprep.mubr.f32.mxu0 %v3475
    %4054 = vmatmul.mubr.f32.gmra.mxu0 %v2988
    %v4055 = vpop.f32.mrf.mxu0
    %v4056 = vadd.f32 %v3902, %v4055
    %v4057 = vpop.f32.mrf.mxu0
    %4058 = vmatprep.mubr.f32.mxu0 %v3478
    %4059 = vmatmul.mubr.f32.gmra.mxu0 %v3168
    %v4060 = vpop.f32.mrf.mxu0
    %v4061 = vadd.f32 %v3902, %v4060
    %v4062 = vpop.f32.mrf.mxu0
    %4063 = vmatprep.mubr.f32.mxu0 %v3480
    %4064 = vmatmul.mubr.f32.gmra.mxu0 %v2991
    %v4065 = vpop.f32.mrf.mxu0
    %v4066 = vadd.f32 %v3902, %v4065
    %v4067 = vpop.f32.mrf.mxu0
    %4068 = vmatprep.mubr.f32.mxu0 %v3483
    %4069 = vmatmul.mubr.f32.gmra.mxu0 %v3169
    %v4070 = vpop.f32.mrf.mxu0
    %v4071 = vadd.f32 %v3902, %v4070
    %v4072 = vpop.f32.mrf.mxu0
    %4073 = vmatprep.mubr.f32.mxu0 %v3485
    %4074 = vmatmul.mubr.f32.gmra.mxu0 %v2994
    %v4075 = vpop.f32.mrf.mxu0
    %v4076 = vadd.f32 %v3902, %v4075
    %v4077 = vpop.f32.mrf.mxu0
    %4078 = vmatprep.mubr.f32.mxu0 %v3488
    %4079 = vmatmul.mubr.f32.gmra.mxu0 %v3170
    %v4080 = vpop.f32.mrf.mxu0
    %v4081 = vadd.f32 %v3902, %v4080
    %v4082 = vpop.f32.mrf.mxu0
    %4083 = vmatprep.mubr.f32.mxu0 %v3490
    %4084 = vmatmul.mubr.f32.gmra.mxu0 %v2997
    %v4085 = vpop.f32.mrf.mxu0
    %v4086 = vadd.f32 %v3902, %v4085
    %v4087 = vpop.f32.mrf.mxu0
    %4088 = vmatprep.mubr.f32.mxu0 %v3493
    %4089 = vmatmul.mubr.f32.gmra.mxu0 %v3171
    %v4090 = vpop.f32.mrf.mxu0
    %v4091 = vadd.f32 %v3902, %v4090
    %v4092 = vpop.f32.mrf.mxu0
    %4093 = vmatprep.mubr.f32.mxu0 %v3495
    %4094 = vmatmul.mubr.f32.gmra.mxu0 %v3000
    %v4095 = vpop.f32.mrf.mxu0
    %v4096 = vadd.f32 %v3902, %v4095
    %v4097 = vpop.f32.mrf.mxu0
    %4098 = vmatprep.mubr.f32.mxu0 %v3498
    %4099 = vmatmul.mubr.f32.gmra.mxu0 %v3172
    %v4100 = vpop.f32.mrf.mxu0
    %v4101 = vadd.f32 %v3902, %v4100
    %v4102 = vpop.f32.mrf.mxu0
    %4103 = vmatprep.mubr.f32.mxu0 %v3500
    %4104 = vmatmul.mubr.f32.gmra.mxu0 %v3003
    %v4105 = vpop.f32.mrf.mxu0
    %v4106 = vadd.f32 %v3902, %v4105
    %v4107 = vpop.f32.mrf.mxu0
    %4108 = vmatprep.mubr.f32.mxu0 %v3503
    %4109 = vmatmul.mubr.f32.gmra.mxu0 %v3173
    %v4110 = vpop.f32.mrf.mxu0
    %v4111 = vadd.f32 %v3902, %v4110
    %v4112 = vpop.f32.mrf.mxu0
    %4113 = vmatprep.mubr.f32.mxu0 %v3505
    %4114 = vmatmul.mubr.f32.gmra.mxu0 %v3006
    %v4115 = vpop.f32.mrf.mxu0
    %v4116 = vadd.f32 %v3902, %v4115
    %v4117 = vpop.f32.mrf.mxu0
    %4118 = vmatprep.mubr.f32.mxu0 %v3508
    %4119 = vmatmul.mubr.f32.gmra.mxu0 %v3174
    %v4120 = vpop.f32.mrf.mxu0
    %v4121 = vadd.f32 %v3902, %v4120
    %v4122 = vpop.f32.mrf.mxu0
    %4123 = vmatprep.mubr.f32.mxu0 %v3510
    %4124 = vmatmul.mubr.f32.gmra.mxu0 %v3009
    %v4125 = vpop.f32.mrf.mxu0
    %v4126 = vadd.f32 %v3902, %v4125
    %v4127 = vpop.f32.mrf.mxu0
    %4128 = vmatprep.mubr.f32.mxu0 %v3433
    %4129 = vmatmul.mubr.f32.gmra.mxu0 %v3159
    %v4130 = vpop.f32.mrf.mxu0
    %v4131 = vadd.f32 %v3902, %v4130
    %v4132 = vpop.f32.mrf.mxu0
    %4133 = vmatprep.mubr.f32.mxu0 %v3435
    %4134 = vmatmul.mubr.f32.gmra.mxu0 %v2964
    %v4135 = vpop.f32.mrf.mxu0
    %v4136 = vadd.f32 %v3902, %v4135
    %v4137 = vpop.f32.mrf.mxu0
    %4138 = vmatprep.mubr.f32.mxu0 %v3513
    %4139 = vmatmul.mubr.f32.gmra.mxu0 %v3176
    %v4140 = vpop.f32.mrf.mxu0
    %v4141 = vadd.f32 %v3902, %v4140
    %v4142 = vpop.f32.mrf.mxu0
    %4143 = vmatprep.mubr.f32.mxu0 %v3515
    %4144 = vmatmul.mubr.f32.gmra.mxu0 %v3015
    %v4145 = vpop.f32.mrf.mxu0
    %v4146 = vadd.f32 %v3902, %v4145
    %v4147 = vpop.f32.mrf.mxu0
    %4148 = vmatprep.mubr.f32.mxu0 %v3518
    %4149 = vmatmul.mubr.f32.gmra.mxu0 %v3177
    %v4150 = vpop.f32.mrf.mxu0
    %v4151 = vadd.f32 %v3902, %v4150
    %v4152 = vpop.f32.mrf.mxu0
    %4153 = vmatprep.mubr.f32.mxu0 %v3520
    %4154 = vmatmul.mubr.f32.gmra.mxu0 %v3018
    %v4155 = vpop.f32.mrf.mxu0
    %v4156 = vadd.f32 %v3902, %v4155
    %v4157 = vpop.f32.mrf.mxu0
    %4158 = vmatprep.mubr.f32.mxu0 %v3523
    %4159 = vmatmul.mubr.f32.gmra.mxu0 %v3178
    %v4160 = vpop.f32.mrf.mxu0
    %v4161 = vadd.f32 %v3902, %v4160
    %v4162 = vpop.f32.mrf.mxu0
    %4163 = vmatprep.mubr.f32.mxu0 %v3525
    %4164 = vmatmul.mubr.f32.gmra.mxu0 %v3021
    %v4165 = vpop.f32.mrf.mxu0
    %v4166 = vadd.f32 %v3902, %v4165
    %v4167 = vpop.f32.mrf.mxu0
    %4168 = vmatprep.mubr.f32.mxu0 %v3528
    %4169 = vmatmul.mubr.f32.gmra.mxu0 %v3179
    %v4170 = vpop.f32.mrf.mxu0
    %v4171 = vadd.f32 %v3902, %v4170
    %v4172 = vpop.f32.mrf.mxu0
    %4173 = vmatprep.mubr.f32.mxu0 %v3530
    %4174 = vmatmul.mubr.f32.gmra.mxu0 %v3024
    %v4175 = vpop.f32.mrf.mxu0
    %v4176 = vadd.f32 %v3902, %v4175
    %v4177 = vpop.f32.mrf.mxu0
    %4178 = vmatprep.mubr.f32.mxu0 %v3533
    %4179 = vmatmul.mubr.f32.gmra.mxu0 %v3180
    %v4180 = vpop.f32.mrf.mxu0
    %v4181 = vadd.f32 %v3902, %v4180
    %v4182 = vpop.f32.mrf.mxu0
    %4183 = vmatprep.mubr.f32.mxu0 %v3535
    %4184 = vmatmul.mubr.f32.gmra.mxu0 %v3027
    %v4185 = vpop.f32.mrf.mxu0
    %v4186 = vadd.f32 %v3902, %v4185
    %v4187 = vpop.f32.mrf.mxu0
    %4188 = vmatprep.mubr.f32.mxu0 %v3538
    %4189 = vmatmul.mubr.f32.gmra.mxu0 %v3181
    %v4190 = vpop.f32.mrf.mxu0
    %v4191 = vadd.f32 %v3902, %v4190
    %v4192 = vpop.f32.mrf.mxu0
    %4193 = vmatprep.mubr.f32.mxu0 %v3540
    %4194 = vmatmul.mubr.f32.gmra.mxu0 %v3030
    %v4195 = vpop.f32.mrf.mxu0
    %v4196 = vadd.f32 %v3902, %v4195
    %v4197 = vpop.f32.mrf.mxu0
    %4198 = vmatprep.mubr.f32.mxu0 %v3543
    %4199 = vmatmul.mubr.f32.gmra.mxu0 %v3182
    %v4200 = vpop.f32.mrf.mxu0
    %v4201 = vadd.f32 %v3902, %v4200
    %v4202 = vpop.f32.mrf.mxu0
    %4203 = vmatprep.mubr.f32.mxu0 %v3545
    %4204 = vmatmul.mubr.f32.gmra.mxu0 %v3033
    %v4205 = vpop.f32.mrf.mxu0
    %v4206 = vadd.f32 %v3902, %v4205
    %v4207 = vpop.f32.mrf.mxu0
    %4208 = vmatprep.mubr.f32.mxu0 %v3548
    %4209 = vmatmul.mubr.f32.gmra.mxu0 %v3183
    %v4210 = vpop.f32.mrf.mxu0
    %v4211 = vadd.f32 %v3902, %v4210
    %v4212 = vpop.f32.mrf.mxu0
    %4213 = vmatprep.mubr.f32.mxu0 %v3550
    %4214 = vmatmul.mubr.f32.gmra.mxu0 %v3036
    %v4215 = vpop.f32.mrf.mxu0
    %v4216 = vadd.f32 %v3902, %v4215
    %v4217 = vpop.f32.mrf.mxu0
    %4218 = vmatprep.mubr.f32.mxu0 %v3553
    %4219 = vmatmul.mubr.f32.gmra.mxu0 %v3184
    %v4220 = vpop.f32.mrf.mxu0
    %v4221 = vadd.f32 %v3902, %v4220
    %v4222 = vpop.f32.mrf.mxu0
    %4223 = vmatprep.mubr.f32.mxu0 %v3555
    %4224 = vmatmul.mubr.f32.gmra.mxu0 %v3039
    %v4225 = vpop.f32.mrf.mxu0
    %v4226 = vadd.f32 %v3902, %v4225
    %v4227 = vpop.f32.mrf.mxu0
    %4228 = vmatprep.mubr.f32.mxu0 %v3558
    %4229 = vmatmul.mubr.f32.gmra.mxu0 %v3185
    %v4230 = vpop.f32.mrf.mxu0
    %v4231 = vadd.f32 %v3902, %v4230
    %v4232 = vpop.f32.mrf.mxu0
    %4233 = vmatprep.mubr.f32.mxu0 %v3560
    %4234 = vmatmul.mubr.f32.gmra.mxu0 %v3042
    %v4235 = vpop.f32.mrf.mxu0
    %v4236 = vadd.f32 %v3902, %v4235
    %v4237 = vpop.f32.mrf.mxu0
    %4238 = vmatprep.mubr.f32.mxu0 %v3563
    %4239 = vmatmul.mubr.f32.gmra.mxu0 %v3186
    %v4240 = vpop.f32.mrf.mxu0
    %v4241 = vadd.f32 %v3902, %v4240
    %v4242 = vpop.f32.mrf.mxu0
    %4243 = vmatprep.mubr.f32.mxu0 %v3565
    %4244 = vmatmul.mubr.f32.gmra.mxu0 %v3045
    %v4245 = vpop.f32.mrf.mxu0
    %v4246 = vadd.f32 %v3902, %v4245
    %v4247 = vpop.f32.mrf.mxu0
    %4248 = vmatprep.mubr.f32.mxu0 %v3568
    %4249 = vmatmul.mubr.f32.gmra.mxu0 %v3187
    %v4250 = vpop.f32.mrf.mxu0
    %v4251 = vadd.f32 %v3902, %v4250
    %v4252 = vpop.f32.mrf.mxu0
    %4253 = vmatprep.mubr.f32.mxu0 %v3570
    %4254 = vmatmul.mubr.f32.gmra.mxu0 %v3048
    %v4255 = vpop.f32.mrf.mxu0
    %v4256 = vadd.f32 %v3902, %v4255
    %v4257 = vpop.f32.mrf.mxu0
    %4258 = vmatprep.mubr.f32.mxu0 %v3573
    %4259 = vmatmul.mubr.f32.gmra.mxu0 %v3188
    %v4260 = vpop.f32.mrf.mxu0
    %v4261 = vadd.f32 %v3902, %v4260
    %v4262 = vpop.f32.mrf.mxu0
    %4263 = vmatprep.mubr.f32.mxu0 %v3575
    %4264 = vmatmul.mubr.f32.gmra.mxu0 %v3051
    %v4265 = vpop.f32.mrf.mxu0
    %v4266 = vadd.f32 %v3902, %v4265
    %v4267 = vpop.f32.mrf.mxu0
    %4268 = vmatprep.mubr.f32.mxu0 %v3578
    %4269 = vmatmul.mubr.f32.gmra.mxu0 %v3189
    %v4270 = vpop.f32.mrf.mxu0
    %v4271 = vadd.f32 %v3902, %v4270
    %v4272 = vpop.f32.mrf.mxu0
    %4273 = vmatprep.mubr.f32.mxu0 %v3580
    %4274 = vmatmul.mubr.f32.gmra.mxu0 %v3054
    %v4275 = vpop.f32.mrf.mxu0
    %v4276 = vadd.f32 %v3902, %v4275
    %v4277 = vpop.f32.mrf.mxu0
    %4278 = vmatprep.mubr.f32.mxu0 %v3583
    %4279 = vmatmul.mubr.f32.gmra.mxu0 %v3190
    %v4280 = vpop.f32.mrf.mxu0
    %v4281 = vadd.f32 %v3902, %v4280
    %v4282 = vpop.f32.mrf.mxu0
    %4283 = vmatprep.mubr.f32.mxu0 %v3585
    %4284 = vmatmul.mubr.f32.gmra.mxu0 %v3057
    %v4285 = vpop.f32.mrf.mxu0
    %v4286 = vadd.f32 %v3902, %v4285
    %v4287 = vpop.f32.mrf.mxu0
    %4288 = vdwg.mxu0
    %4289 = vmatprep.subr.mxu0 0.0
    %4290 = vmatpush1.msra.mxu0 %v3272
    %4291 = vmatprep.subr.mxu0 0.0
    %4292 = vmatpush1.msra.mxu0 %v3271
    %4293 = vmatprep.subr.mxu0 0.0
    %4294 = vmatpush1.msra.mxu0 %v3270
    %4295 = vmatprep.subr.mxu0 0.0
    %4296 = vmatpush1.msra.mxu0 %v3269
    %4297 = vmatprep.subr.mxu0 0.0
    %4298 = vmatpush1.msra.mxu0 %v3268
    %4299 = vmatprep.subr.mxu0 0.0
    %4300 = vmatpush1.msra.mxu0 %v3267
    %4301 = vmatprep.subr.mxu0 0.0
    %4302 = vmatpush1.msra.mxu0 %v3266
    %4303 = vmatprep.subr.mxu0 0.0
    %4304 = vmatpush1.msra.mxu0 %v3265
    %4305 = vmatprep.subr.mxu0 0.0
    %4306 = vmatpush1.msra.mxu0 %v3264
    %4307 = vmatprep.subr.mxu0 0.0
    %4308 = vmatpush1.msra.mxu0 %v3263
    %4309 = vmatprep.subr.mxu0 0.0
    %4310 = vmatpush1.msra.mxu0 %v3262
    %4311 = vmatprep.subr.mxu0 0.0
    %4312 = vmatpush1.msra.mxu0 %v3261
    %4313 = vmatprep.subr.mxu0 0.0
    %4314 = vmatpush1.msra.mxu0 %v3260
    %4315 = vmatprep.subr.mxu0 0.0
    %4316 = vmatpush1.msra.mxu0 %v3259
    %4317 = vmatprep.subr.mxu0 0.0
    %4318 = vmatpush1.msra.mxu0 %v3258
    %4319 = vmatprep.subr.mxu0 0.0
    %4320 = vmatpush1.msra.mxu0 %v3257
    %4321 = vmatprep.subr.mxu0 0.0
    %4322 = vmatpush2.msra.mxu0 %v3288
    %4323 = vmatprep.subr.mxu0 0.0
    %4324 = vmatpush2.msra.mxu0 %v3287
    %4325 = vmatprep.subr.mxu0 0.0
    %4326 = vmatpush2.msra.mxu0 %v3286
    %4327 = vmatprep.subr.mxu0 0.0
    %4328 = vmatpush2.msra.mxu0 %v3285
    %4329 = vmatprep.subr.mxu0 0.0
    %4330 = vmatpush2.msra.mxu0 %v3284
    %4331 = vmatprep.subr.mxu0 0.0
    %4332 = vmatpush2.msra.mxu0 %v3283
    %4333 = vmatprep.subr.mxu0 0.0
    %4334 = vmatpush2.msra.mxu0 %v3282
    %4335 = vmatprep.subr.mxu0 0.0
    %4336 = vmatpush2.msra.mxu0 %v3281
    %4337 = vmatprep.subr.mxu0 0.0
    %4338 = vmatpush2.msra.mxu0 %v3280
    %4339 = vmatprep.subr.mxu0 0.0
    %4340 = vmatpush2.msra.mxu0 %v3279
    %4341 = vmatprep.subr.mxu0 0.0
    %4342 = vmatpush2.msra.mxu0 %v3278
    %4343 = vmatprep.subr.mxu0 0.0
    %4344 = vmatpush2.msra.mxu0 %v3277
    %4345 = vmatprep.subr.mxu0 0.0
    %4346 = vmatpush2.msra.mxu0 %v3276
    %4347 = vmatprep.subr.mxu0 0.0
    %4348 = vmatpush2.msra.mxu0 %v3275
    %4349 = vmatprep.subr.mxu0 0.0
    %4350 = vmatpush2.msra.mxu0 %v3274
    %4351 = vmatprep.subr.mxu0 0.0
    %4352 = vmatpush2.msra.mxu0 %v3273
    %4353 = vmatprep.mubr.f32.mxu0 %v3160
    %4354 = vmatmul.mubr.f32.gmra.mxu0 %v3650
    %v4355 = vpop.f32.mrf.mxu0
    %v4356 = vadd.f32 %v3971, %v4355
    %v4357 = vpop.f32.mrf.mxu0
    %4358 = vmatprep.mubr.f32.mxu0 %v2967
    %4359 = vmatmul.mubr.f32.gmra.mxu0 %v3652
    %v4360 = vpop.f32.mrf.mxu0
    %v4361 = vadd.f32 %v3976, %v4360
    %v4362 = vpop.f32.mrf.mxu0
    %4363 = vmatprep.mubr.f32.mxu0 %v3161
    %4364 = vmatmul.mubr.f32.gmra.mxu0 %v3655
    %v4365 = vpop.f32.mrf.mxu0
    %v4366 = vadd.f32 %v3981, %v4365
    %v4367 = vpop.f32.mrf.mxu0
    %4368 = vmatprep.mubr.f32.mxu0 %v2970
    %4369 = vmatmul.mubr.f32.gmra.mxu0 %v3657
    %v4370 = vpop.f32.mrf.mxu0
    %v4371 = vadd.f32 %v3986, %v4370
    %v4372 = vpop.f32.mrf.mxu0
    %4373 = vmatprep.mubr.f32.mxu0 %v3162
    %4374 = vmatmul.mubr.f32.gmra.mxu0 %v3660
    %v4375 = vpop.f32.mrf.mxu0
    %v4376 = vadd.f32 %v3991, %v4375
    %v4377 = vpop.f32.mrf.mxu0
    %4378 = vmatprep.mubr.f32.mxu0 %v2973
    %4379 = vmatmul.mubr.f32.gmra.mxu0 %v3662
    %v4380 = vpop.f32.mrf.mxu0
    %v4381 = vadd.f32 %v3996, %v4380
    %v4382 = vpop.f32.mrf.mxu0
    %4383 = vmatprep.mubr.f32.mxu0 %v3163
    %4384 = vmatmul.mubr.f32.gmra.mxu0 %v3665
    %v4385 = vpop.f32.mrf.mxu0
    %v4386 = vadd.f32 %v4001, %v4385
    %v4387 = vpop.f32.mrf.mxu0
    %4388 = vmatprep.mubr.f32.mxu0 %v2976
    %4389 = vmatmul.mubr.f32.gmra.mxu0 %v3667
    %v4390 = vpop.f32.mrf.mxu0
    %v4391 = vadd.f32 %v4006, %v4390
    %v4392 = vpop.f32.mrf.mxu0
    %4393 = vmatprep.mubr.f32.mxu0 %v3164
    %4394 = vmatmul.mubr.f32.gmra.mxu0 %v3670
    %v4395 = vpop.f32.mrf.mxu0
    %v4396 = vadd.f32 %v4011, %v4395
    %v4397 = vpop.f32.mrf.mxu0
    %4398 = vmatprep.mubr.f32.mxu0 %v2979
    %4399 = vmatmul.mubr.f32.gmra.mxu0 %v3672
    %v4400 = vpop.f32.mrf.mxu0
    %v4401 = vadd.f32 %v4016, %v4400
    %v4402 = vpop.f32.mrf.mxu0
    %4403 = vmatprep.mubr.f32.mxu0 %v3165
    %4404 = vmatmul.mubr.f32.gmra.mxu0 %v3675
    %v4405 = vpop.f32.mrf.mxu0
    %v4406 = vadd.f32 %v4021, %v4405
    %v4407 = vpop.f32.mrf.mxu0
    %4408 = vmatprep.mubr.f32.mxu0 %v2982
    %4409 = vmatmul.mubr.f32.gmra.mxu0 %v3677
    %v4410 = vpop.f32.mrf.mxu0
    %v4411 = vadd.f32 %v4026, %v4410
    %v4412 = vpop.f32.mrf.mxu0
    %4413 = vmatprep.mubr.f32.mxu0 %v3166
    %4414 = vmatmul.mubr.f32.gmra.mxu0 %v3680
    %v4415 = vpop.f32.mrf.mxu0
    %v4416 = vadd.f32 %v4031, %v4415
    %v4417 = vpop.f32.mrf.mxu0
    %4418 = vmatprep.mubr.f32.mxu0 %v2985
    %4419 = vmatmul.mubr.f32.gmra.mxu0 %v3682
    %v4420 = vpop.f32.mrf.mxu0
    %v4421 = vadd.f32 %v4036, %v4420
    %v4422 = vpop.f32.mrf.mxu0
    %4423 = vmatprep.mubr.f32.mxu0 %v3167
    %4424 = vmatmul.mubr.f32.gmra.mxu0 %v3685
    %v4425 = vpop.f32.mrf.mxu0
    %v4426 = vadd.f32 %v4041, %v4425
    %v4427 = vpop.f32.mrf.mxu0
    %4428 = vmatprep.mubr.f32.mxu0 %v2988
    %4429 = vmatmul.mubr.f32.gmra.mxu0 %v3687
    %v4430 = vpop.f32.mrf.mxu0
    %v4431 = vadd.f32 %v4046, %v4430
    %v4432 = vpop.f32.mrf.mxu0
    %4433 = vmatprep.mubr.f32.mxu0 %v3168
    %4434 = vmatmul.mubr.f32.gmra.mxu0 %v3690
    %v4435 = vpop.f32.mrf.mxu0
    %v4436 = vadd.f32 %v4051, %v4435
    %v4437 = vpop.f32.mrf.mxu0
    %4438 = vmatprep.mubr.f32.mxu0 %v2991
    %4439 = vmatmul.mubr.f32.gmra.mxu0 %v3692
    %v4440 = vpop.f32.mrf.mxu0
    %v4441 = vadd.f32 %v4056, %v4440
    %v4442 = vpop.f32.mrf.mxu0
    %4443 = vmatprep.mubr.f32.mxu0 %v3169
    %4444 = vmatmul.mubr.f32.gmra.mxu0 %v3695
    %v4445 = vpop.f32.mrf.mxu0
    %v4446 = vadd.f32 %v4061, %v4445
    %v4447 = vpop.f32.mrf.mxu0
    %4448 = vmatprep.mubr.f32.mxu0 %v2994
    %4449 = vmatmul.mubr.f32.gmra.mxu0 %v3697
    %v4450 = vpop.f32.mrf.mxu0
    %v4451 = vadd.f32 %v4066, %v4450
    %v4452 = vpop.f32.mrf.mxu0
    %4453 = vmatprep.mubr.f32.mxu0 %v3170
    %4454 = vmatmul.mubr.f32.gmra.mxu0 %v3700
    %v4455 = vpop.f32.mrf.mxu0
    %v4456 = vadd.f32 %v4071, %v4455
    %v4457 = vpop.f32.mrf.mxu0
    %4458 = vmatprep.mubr.f32.mxu0 %v2997
    %4459 = vmatmul.mubr.f32.gmra.mxu0 %v3702
    %v4460 = vpop.f32.mrf.mxu0
    %v4461 = vadd.f32 %v4076, %v4460
    %v4462 = vpop.f32.mrf.mxu0
    %4463 = vmatprep.mubr.f32.mxu0 %v3171
    %4464 = vmatmul.mubr.f32.gmra.mxu0 %v3705
    %v4465 = vpop.f32.mrf.mxu0
    %v4466 = vadd.f32 %v4081, %v4465
    %v4467 = vpop.f32.mrf.mxu0
    %4468 = vmatprep.mubr.f32.mxu0 %v3000
    %4469 = vmatmul.mubr.f32.gmra.mxu0 %v3707
    %v4470 = vpop.f32.mrf.mxu0
    %v4471 = vadd.f32 %v4086, %v4470
    %v4472 = vpop.f32.mrf.mxu0
    %4473 = vmatprep.mubr.f32.mxu0 %v3172
    %4474 = vmatmul.mubr.f32.gmra.mxu0 %v3710
    %v4475 = vpop.f32.mrf.mxu0
    %v4476 = vadd.f32 %v4091, %v4475
    %v4477 = vpop.f32.mrf.mxu0
    %4478 = vmatprep.mubr.f32.mxu0 %v3003
    %4479 = vmatmul.mubr.f32.gmra.mxu0 %v3712
    %v4480 = vpop.f32.mrf.mxu0
    %v4481 = vadd.f32 %v4096, %v4480
    %v4482 = vpop.f32.mrf.mxu0
    %4483 = vmatprep.mubr.f32.mxu0 %v3173
    %4484 = vmatmul.mubr.f32.gmra.mxu0 %v3715
    %v4485 = vpop.f32.mrf.mxu0
    %v4486 = vadd.f32 %v4101, %v4485
    %v4487 = vpop.f32.mrf.mxu0
    %4488 = vmatprep.mubr.f32.mxu0 %v3006
    %4489 = vmatmul.mubr.f32.gmra.mxu0 %v3717
    %v4490 = vpop.f32.mrf.mxu0
    %v4491 = vadd.f32 %v4106, %v4490
    %v4492 = vpop.f32.mrf.mxu0
    %4493 = vmatprep.mubr.f32.mxu0 %v3174
    %4494 = vmatmul.mubr.f32.gmra.mxu0 %v3720
    %v4495 = vpop.f32.mrf.mxu0
    %v4496 = vadd.f32 %v4111, %v4495
    %v4497 = vpop.f32.mrf.mxu0
    %4498 = vmatprep.mubr.f32.mxu0 %v3009
    %4499 = vmatmul.mubr.f32.gmra.mxu0 %v3722
    %v4500 = vpop.f32.mrf.mxu0
    %v4501 = vadd.f32 %v4116, %v4500
    %v4502 = vpop.f32.mrf.mxu0
    %4503 = vmatprep.mubr.f32.mxu0 %v3175
    %4504 = vmatmul.mubr.f32.gmra.mxu0 %v3725
    %v4505 = vpop.f32.mrf.mxu0
    %v4506 = vadd.f32 %v4121, %v4505
    %v4507 = vpop.f32.mrf.mxu0
    %4508 = vmatprep.mubr.f32.mxu0 %v3012
    %4509 = vmatmul.mubr.f32.gmra.mxu0 %v3727
    %v4510 = vpop.f32.mrf.mxu0
    %v4511 = vadd.f32 %v4126, %v4510
    %v4512 = vpop.f32.mrf.mxu0
    %4513 = vmatprep.mubr.f32.mxu0 %v3176
    %4514 = vmatmul.mubr.f32.gmra.mxu0 %v3650
    %v4515 = vpop.f32.mrf.mxu0
    %v4516 = vadd.f32 %v4131, %v4515
    %v4517 = vpop.f32.mrf.mxu0
    %4518 = vmatprep.mubr.f32.mxu0 %v3015
    %4519 = vmatmul.mubr.f32.gmra.mxu0 %v3652
    %v4520 = vpop.f32.mrf.mxu0
    %v4521 = vadd.f32 %v4136, %v4520
    %v4522 = vpop.f32.mrf.mxu0
    %4523 = vmatprep.mubr.f32.mxu0 %v3177
    %4524 = vmatmul.mubr.f32.gmra.mxu0 %v3730
    %v4525 = vpop.f32.mrf.mxu0
    %v4526 = vadd.f32 %v4141, %v4525
    %v4527 = vpop.f32.mrf.mxu0
    %4528 = vmatprep.mubr.f32.mxu0 %v3018
    %4529 = vmatmul.mubr.f32.gmra.mxu0 %v3732
    %v4530 = vpop.f32.mrf.mxu0
    %v4531 = vadd.f32 %v4146, %v4530
    %v4532 = vpop.f32.mrf.mxu0
    %4533 = vmatprep.mubr.f32.mxu0 %v3178
    %4534 = vmatmul.mubr.f32.gmra.mxu0 %v3735
    %v4535 = vpop.f32.mrf.mxu0
    %v4536 = vadd.f32 %v4151, %v4535
    %v4537 = vpop.f32.mrf.mxu0
    %4538 = vmatprep.mubr.f32.mxu0 %v3021
    %4539 = vmatmul.mubr.f32.gmra.mxu0 %v3737
    %v4540 = vpop.f32.mrf.mxu0
    %v4541 = vadd.f32 %v4156, %v4540
    %v4542 = vpop.f32.mrf.mxu0
    %4543 = vmatprep.mubr.f32.mxu0 %v3179
    %4544 = vmatmul.mubr.f32.gmra.mxu0 %v3740
    %v4545 = vpop.f32.mrf.mxu0
    %v4546 = vadd.f32 %v4161, %v4545
    %v4547 = vpop.f32.mrf.mxu0
    %4548 = vmatprep.mubr.f32.mxu0 %v3024
    %4549 = vmatmul.mubr.f32.gmra.mxu0 %v3742
    %v4550 = vpop.f32.mrf.mxu0
    %v4551 = vadd.f32 %v4166, %v4550
    %v4552 = vpop.f32.mrf.mxu0
    %4553 = vmatprep.mubr.f32.mxu0 %v3180
    %4554 = vmatmul.mubr.f32.gmra.mxu0 %v3745
    %v4555 = vpop.f32.mrf.mxu0
    %v4556 = vadd.f32 %v4171, %v4555
    %v4557 = vpop.f32.mrf.mxu0
    %4558 = vmatprep.mubr.f32.mxu0 %v3027
    %4559 = vmatmul.mubr.f32.gmra.mxu0 %v3747
    %v4560 = vpop.f32.mrf.mxu0
    %v4561 = vadd.f32 %v4176, %v4560
    %v4562 = vpop.f32.mrf.mxu0
    %4563 = vmatprep.mubr.f32.mxu0 %v3181
    %4564 = vmatmul.mubr.f32.gmra.mxu0 %v3750
    %v4565 = vpop.f32.mrf.mxu0
    %v4566 = vadd.f32 %v4181, %v4565
    %v4567 = vpop.f32.mrf.mxu0
    %4568 = vmatprep.mubr.f32.mxu0 %v3030
    %4569 = vmatmul.mubr.f32.gmra.mxu0 %v3752
    %v4570 = vpop.f32.mrf.mxu0
    %v4571 = vadd.f32 %v4186, %v4570
    %v4572 = vpop.f32.mrf.mxu0
    %4573 = vmatprep.mubr.f32.mxu0 %v3182
    %4574 = vmatmul.mubr.f32.gmra.mxu0 %v3755
    %v4575 = vpop.f32.mrf.mxu0
    %v4576 = vadd.f32 %v4191, %v4575
    %v4577 = vpop.f32.mrf.mxu0
    %4578 = vmatprep.mubr.f32.mxu0 %v3033
    %4579 = vmatmul.mubr.f32.gmra.mxu0 %v3757
    %v4580 = vpop.f32.mrf.mxu0
    %v4581 = vadd.f32 %v4196, %v4580
    %v4582 = vpop.f32.mrf.mxu0
    %4583 = vmatprep.mubr.f32.mxu0 %v3183
    %4584 = vmatmul.mubr.f32.gmra.mxu0 %v3760
    %v4585 = vpop.f32.mrf.mxu0
    %v4586 = vadd.f32 %v4201, %v4585
    %v4587 = vpop.f32.mrf.mxu0
    %4588 = vmatprep.mubr.f32.mxu0 %v3036
    %4589 = vmatmul.mubr.f32.gmra.mxu0 %v3762
    %v4590 = vpop.f32.mrf.mxu0
    %v4591 = vadd.f32 %v4206, %v4590
    %v4592 = vpop.f32.mrf.mxu0
    %4593 = vmatprep.mubr.f32.mxu0 %v3184
    %4594 = vmatmul.mubr.f32.gmra.mxu0 %v3765
    %v4595 = vpop.f32.mrf.mxu0
    %v4596 = vadd.f32 %v4211, %v4595
    %v4597 = vpop.f32.mrf.mxu0
    %4598 = vmatprep.mubr.f32.mxu0 %v3039
    %4599 = vmatmul.mubr.f32.gmra.mxu0 %v3767
    %v4600 = vpop.f32.mrf.mxu0
    %v4601 = vadd.f32 %v4216, %v4600
    %v4602 = vpop.f32.mrf.mxu0
    %4603 = vmatprep.mubr.f32.mxu0 %v3185
    %4604 = vmatmul.mubr.f32.gmra.mxu0 %v3770
    %v4605 = vpop.f32.mrf.mxu0
    %v4606 = vadd.f32 %v4221, %v4605
    %v4607 = vpop.f32.mrf.mxu0
    %4608 = vmatprep.mubr.f32.mxu0 %v3042
    %4609 = vmatmul.mubr.f32.gmra.mxu0 %v3772
    %v4610 = vpop.f32.mrf.mxu0
    %v4611 = vadd.f32 %v4226, %v4610
    %v4612 = vpop.f32.mrf.mxu0
    %4613 = vmatprep.mubr.f32.mxu0 %v3186
    %4614 = vmatmul.mubr.f32.gmra.mxu0 %v3775
    %v4615 = vpop.f32.mrf.mxu0
    %v4616 = vadd.f32 %v4231, %v4615
    %v4617 = vpop.f32.mrf.mxu0
    %4618 = vmatprep.mubr.f32.mxu0 %v3045
    %4619 = vmatmul.mubr.f32.gmra.mxu0 %v3777
    %v4620 = vpop.f32.mrf.mxu0
    %v4621 = vadd.f32 %v4236, %v4620
    %v4622 = vpop.f32.mrf.mxu0
    %4623 = vmatprep.mubr.f32.mxu0 %v3187
    %4624 = vmatmul.mubr.f32.gmra.mxu0 %v3780
    %v4625 = vpop.f32.mrf.mxu0
    %v4626 = vadd.f32 %v4241, %v4625
    %v4627 = vpop.f32.mrf.mxu0
    %4628 = vmatprep.mubr.f32.mxu0 %v3048
    %4629 = vmatmul.mubr.f32.gmra.mxu0 %v3782
    %v4630 = vpop.f32.mrf.mxu0
    %v4631 = vadd.f32 %v4246, %v4630
    %v4632 = vpop.f32.mrf.mxu0
    %4633 = vmatprep.mubr.f32.mxu0 %v3188
    %4634 = vmatmul.mubr.f32.gmra.mxu0 %v3785
    %v4635 = vpop.f32.mrf.mxu0
    %v4636 = vadd.f32 %v4251, %v4635
    %v4637 = vpop.f32.mrf.mxu0
    %4638 = vmatprep.mubr.f32.mxu0 %v3051
    %4639 = vmatmul.mubr.f32.gmra.mxu0 %v3787
    %v4640 = vpop.f32.mrf.mxu0
    %v4641 = vadd.f32 %v4256, %v4640
    %v4642 = vpop.f32.mrf.mxu0
    %4643 = vmatprep.mubr.f32.mxu0 %v3189
    %4644 = vmatmul.mubr.f32.gmra.mxu0 %v3790
    %v4645 = vpop.f32.mrf.mxu0
    %v4646 = vadd.f32 %v4261, %v4645
    %v4647 = vpop.f32.mrf.mxu0
    %4648 = vmatprep.mubr.f32.mxu0 %v3054
    %4649 = vmatmul.mubr.f32.gmra.mxu0 %v3792
    %v4650 = vpop.f32.mrf.mxu0
    %v4651 = vadd.f32 %v4266, %v4650
    %v4652 = vpop.f32.mrf.mxu0
    %4653 = vmatprep.mubr.f32.mxu0 %v3190
    %4654 = vmatmul.mubr.f32.gmra.mxu0 %v3795
    %v4655 = vpop.f32.mrf.mxu0
    %v4656 = vadd.f32 %v4271, %v4655
    %v4657 = vpop.f32.mrf.mxu0
    %4658 = vmatprep.mubr.f32.mxu0 %v3057
    %4659 = vmatmul.mubr.f32.gmra.mxu0 %v3797
    %v4660 = vpop.f32.mrf.mxu0
    %v4661 = vadd.f32 %v4276, %v4660
    %v4662 = vpop.f32.mrf.mxu0
    %4663 = vmatprep.mubr.f32.mxu0 %v3191
    %4664 = vmatmul.mubr.f32.gmra.mxu0 %v3800
    %v4665 = vpop.f32.mrf.mxu0
    %v4666 = vadd.f32 %v4281, %v4665
    %v4667 = vpop.f32.mrf.mxu0
    %4668 = vmatprep.mubr.f32.mxu0 %v3060
    %4669 = vmatmul.mubr.f32.gmra.mxu0 %v3802
    %v4670 = vpop.f32.mrf.mxu0
    %v4671 = vadd.f32 %v4286, %v4670
    %v4672 = vpop.f32.mrf.mxu0
    %4673 = vdwg.mxu0
    %4674 = vmatprep.subr.mxu0 0.0
    %4675 = vmatpush1.msra.mxu0 %v3304
    %4676 = vmatprep.subr.mxu0 0.0
    %4677 = vmatpush1.msra.mxu0 %v3303
    %4678 = vmatprep.subr.mxu0 0.0
    %4679 = vmatpush1.msra.mxu0 %v3302
    %4680 = vmatprep.subr.mxu0 0.0
    %4681 = vmatpush1.msra.mxu0 %v3301
    %4682 = vmatprep.subr.mxu0 0.0
    %4683 = vmatpush1.msra.mxu0 %v3300
    %4684 = vmatprep.subr.mxu0 0.0
    %4685 = vmatpush1.msra.mxu0 %v3299
    %4686 = vmatprep.subr.mxu0 0.0
    %4687 = vmatpush1.msra.mxu0 %v3298
    %4688 = vmatprep.subr.mxu0 0.0
    %4689 = vmatpush1.msra.mxu0 %v3297
    %4690 = vmatprep.subr.mxu0 0.0
    %4691 = vmatpush1.msra.mxu0 %v3296
    %4692 = vmatprep.subr.mxu0 0.0
    %4693 = vmatpush1.msra.mxu0 %v3295
    %4694 = vmatprep.subr.mxu0 0.0
    %4695 = vmatpush1.msra.mxu0 %v3294
    %4696 = vmatprep.subr.mxu0 0.0
    %4697 = vmatpush1.msra.mxu0 %v3293
    %4698 = vmatprep.subr.mxu0 0.0
    %4699 = vmatpush1.msra.mxu0 %v3292
    %4700 = vmatprep.subr.mxu0 0.0
    %4701 = vmatpush1.msra.mxu0 %v3291
    %4702 = vmatprep.subr.mxu0 0.0
    %4703 = vmatpush1.msra.mxu0 %v3290
    %4704 = vmatprep.subr.mxu0 0.0
    %4705 = vmatpush1.msra.mxu0 %v3289
    %4706 = vmatprep.subr.mxu0 0.0
    %4707 = vmatpush2.msra.mxu0 %v3320
    %4708 = vmatprep.subr.mxu0 0.0
    %4709 = vmatpush2.msra.mxu0 %v3319
    %4710 = vmatprep.subr.mxu0 0.0
    %4711 = vmatpush2.msra.mxu0 %v3318
    %4712 = vmatprep.subr.mxu0 0.0
    %4713 = vmatpush2.msra.mxu0 %v3317
    %4714 = vmatprep.subr.mxu0 0.0
    %4715 = vmatpush2.msra.mxu0 %v3316
    %4716 = vmatprep.subr.mxu0 0.0
    %4717 = vmatpush2.msra.mxu0 %v3315
    %4718 = vmatprep.subr.mxu0 0.0
    %4719 = vmatpush2.msra.mxu0 %v3314
    %4720 = vmatprep.subr.mxu0 0.0
    %4721 = vmatpush2.msra.mxu0 %v3313
    %4722 = vmatprep.subr.mxu0 0.0
    %4723 = vmatpush2.msra.mxu0 %v3312
    %4724 = vmatprep.subr.mxu0 0.0
    %4725 = vmatpush2.msra.mxu0 %v3311
    %4726 = vmatprep.subr.mxu0 0.0
    %4727 = vmatpush2.msra.mxu0 %v3310
    %4728 = vmatprep.subr.mxu0 0.0
    %4729 = vmatpush2.msra.mxu0 %v3309
    %4730 = vmatprep.subr.mxu0 0.0
    %4731 = vmatpush2.msra.mxu0 %v3308
    %4732 = vmatprep.subr.mxu0 0.0
    %4733 = vmatpush2.msra.mxu0 %v3307
    %4734 = vmatprep.subr.mxu0 0.0
    %4735 = vmatpush2.msra.mxu0 %v3306
    %4736 = vmatprep.subr.mxu0 0.0
    %4737 = vmatpush2.msra.mxu0 %v3305
    %4738 = vmatprep.mubr.f32.mxu0 %v3655
    %4739 = vmatmul.mubr.f32.gmra.mxu0 %v3438
    %v4740 = vpop.f32.mrf.mxu0
    %v4741 = vadd.f32 %v4356, %v4740
    %v4742 = vpop.f32.mrf.mxu0
    %4743 = vmatprep.mubr.f32.mxu0 %v3657
    %4744 = vmatmul.mubr.f32.gmra.mxu0 %v3440
    %v4745 = vpop.f32.mrf.mxu0
    %v4746 = vadd.f32 %v4361, %v4745
    %v4747 = vpop.f32.mrf.mxu0
    %4748 = vmatprep.mubr.f32.mxu0 %v3660
    %4749 = vmatmul.mubr.f32.gmra.mxu0 %v3443
    %v4750 = vpop.f32.mrf.mxu0
    %v4751 = vadd.f32 %v4366, %v4750
    %v4752 = vpop.f32.mrf.mxu0
    %4753 = vmatprep.mubr.f32.mxu0 %v3662
    %4754 = vmatmul.mubr.f32.gmra.mxu0 %v3445
    %v4755 = vpop.f32.mrf.mxu0
    %v4756 = vadd.f32 %v4371, %v4755
    %v4757 = vpop.f32.mrf.mxu0
    %4758 = vmatprep.mubr.f32.mxu0 %v3665
    %4759 = vmatmul.mubr.f32.gmra.mxu0 %v3448
    %v4760 = vpop.f32.mrf.mxu0
    %v4761 = vadd.f32 %v4376, %v4760
    %v4762 = vpop.f32.mrf.mxu0
    %4763 = vmatprep.mubr.f32.mxu0 %v3667
    %4764 = vmatmul.mubr.f32.gmra.mxu0 %v3450
    %v4765 = vpop.f32.mrf.mxu0
    %v4766 = vadd.f32 %v4381, %v4765
    %v4767 = vpop.f32.mrf.mxu0
    %4768 = vmatprep.mubr.f32.mxu0 %v3670
    %4769 = vmatmul.mubr.f32.gmra.mxu0 %v3453
    %v4770 = vpop.f32.mrf.mxu0
    %v4771 = vadd.f32 %v4386, %v4770
    %v4772 = vpop.f32.mrf.mxu0
    %4773 = vmatprep.mubr.f32.mxu0 %v3672
    %4774 = vmatmul.mubr.f32.gmra.mxu0 %v3455
    %v4775 = vpop.f32.mrf.mxu0
    %v4776 = vadd.f32 %v4391, %v4775
    %v4777 = vpop.f32.mrf.mxu0
    %4778 = vmatprep.mubr.f32.mxu0 %v3675
    %4779 = vmatmul.mubr.f32.gmra.mxu0 %v3458
    %v4780 = vpop.f32.mrf.mxu0
    %v4781 = vadd.f32 %v4396, %v4780
    %v4782 = vpop.f32.mrf.mxu0
    %4783 = vmatprep.mubr.f32.mxu0 %v3677
    %4784 = vmatmul.mubr.f32.gmra.mxu0 %v3460
    %v4785 = vpop.f32.mrf.mxu0
    %v4786 = vadd.f32 %v4401, %v4785
    %v4787 = vpop.f32.mrf.mxu0
    %4788 = vmatprep.mubr.f32.mxu0 %v3680
    %4789 = vmatmul.mubr.f32.gmra.mxu0 %v3463
    %v4790 = vpop.f32.mrf.mxu0
    %v4791 = vadd.f32 %v4406, %v4790
    %v4792 = vpop.f32.mrf.mxu0
    %4793 = vmatprep.mubr.f32.mxu0 %v3682
    %4794 = vmatmul.mubr.f32.gmra.mxu0 %v3465
    %v4795 = vpop.f32.mrf.mxu0
    %v4796 = vadd.f32 %v4411, %v4795
    %v4797 = vpop.f32.mrf.mxu0
    %4798 = vmatprep.mubr.f32.mxu0 %v3685
    %4799 = vmatmul.mubr.f32.gmra.mxu0 %v3468
    %v4800 = vpop.f32.mrf.mxu0
    %v4801 = vadd.f32 %v4416, %v4800
    %v4802 = vpop.f32.mrf.mxu0
    %4803 = vmatprep.mubr.f32.mxu0 %v3687
    %4804 = vmatmul.mubr.f32.gmra.mxu0 %v3470
    %v4805 = vpop.f32.mrf.mxu0
    %v4806 = vadd.f32 %v4421, %v4805
    %v4807 = vpop.f32.mrf.mxu0
    %4808 = vmatprep.mubr.f32.mxu0 %v3690
    %4809 = vmatmul.mubr.f32.gmra.mxu0 %v3473
    %v4810 = vpop.f32.mrf.mxu0
    %v4811 = vadd.f32 %v4426, %v4810
    %v4812 = vpop.f32.mrf.mxu0
    %4813 = vmatprep.mubr.f32.mxu0 %v3692
    %4814 = vmatmul.mubr.f32.gmra.mxu0 %v3475
    %v4815 = vpop.f32.mrf.mxu0
    %v4816 = vadd.f32 %v4431, %v4815
    %v4817 = vpop.f32.mrf.mxu0
    %4818 = vmatprep.mubr.f32.mxu0 %v3695
    %4819 = vmatmul.mubr.f32.gmra.mxu0 %v3478
    %v4820 = vpop.f32.mrf.mxu0
    %v4821 = vadd.f32 %v4436, %v4820
    %v4822 = vpop.f32.mrf.mxu0
    %4823 = vmatprep.mubr.f32.mxu0 %v3697
    %4824 = vmatmul.mubr.f32.gmra.mxu0 %v3480
    %v4825 = vpop.f32.mrf.mxu0
    %v4826 = vadd.f32 %v4441, %v4825
    %v4827 = vpop.f32.mrf.mxu0
    %4828 = vmatprep.mubr.f32.mxu0 %v3700
    %4829 = vmatmul.mubr.f32.gmra.mxu0 %v3483
    %v4830 = vpop.f32.mrf.mxu0
    %v4831 = vadd.f32 %v4446, %v4830
    %v4832 = vpop.f32.mrf.mxu0
    %4833 = vmatprep.mubr.f32.mxu0 %v3702
    %4834 = vmatmul.mubr.f32.gmra.mxu0 %v3485
    %v4835 = vpop.f32.mrf.mxu0
    %v4836 = vadd.f32 %v4451, %v4835
    %v4837 = vpop.f32.mrf.mxu0
    %4838 = vmatprep.mubr.f32.mxu0 %v3705
    %4839 = vmatmul.mubr.f32.gmra.mxu0 %v3488
    %v4840 = vpop.f32.mrf.mxu0
    %v4841 = vadd.f32 %v4456, %v4840
    %v4842 = vpop.f32.mrf.mxu0
    %4843 = vmatprep.mubr.f32.mxu0 %v3707
    %4844 = vmatmul.mubr.f32.gmra.mxu0 %v3490
    %v4845 = vpop.f32.mrf.mxu0
    %v4846 = vadd.f32 %v4461, %v4845
    %v4847 = vpop.f32.mrf.mxu0
    %4848 = vmatprep.mubr.f32.mxu0 %v3710
    %4849 = vmatmul.mubr.f32.gmra.mxu0 %v3493
    %v4850 = vpop.f32.mrf.mxu0
    %v4851 = vadd.f32 %v4466, %v4850
    %v4852 = vpop.f32.mrf.mxu0
    %4853 = vmatprep.mubr.f32.mxu0 %v3712
    %4854 = vmatmul.mubr.f32.gmra.mxu0 %v3495
    %v4855 = vpop.f32.mrf.mxu0
    %v4856 = vadd.f32 %v4471, %v4855
    %v4857 = vpop.f32.mrf.mxu0
    %4858 = vmatprep.mubr.f32.mxu0 %v3715
    %4859 = vmatmul.mubr.f32.gmra.mxu0 %v3498
    %v4860 = vpop.f32.mrf.mxu0
    %v4861 = vadd.f32 %v4476, %v4860
    %v4862 = vpop.f32.mrf.mxu0
    %4863 = vmatprep.mubr.f32.mxu0 %v3717
    %4864 = vmatmul.mubr.f32.gmra.mxu0 %v3500
    %v4865 = vpop.f32.mrf.mxu0
    %v4866 = vadd.f32 %v4481, %v4865
    %v4867 = vpop.f32.mrf.mxu0
    %4868 = vmatprep.mubr.f32.mxu0 %v3720
    %4869 = vmatmul.mubr.f32.gmra.mxu0 %v3503
    %v4870 = vpop.f32.mrf.mxu0
    %v4871 = vadd.f32 %v4486, %v4870
    %v4872 = vpop.f32.mrf.mxu0
    %4873 = vmatprep.mubr.f32.mxu0 %v3722
    %4874 = vmatmul.mubr.f32.gmra.mxu0 %v3505
    %v4875 = vpop.f32.mrf.mxu0
    %v4876 = vadd.f32 %v4491, %v4875
    %v4877 = vpop.f32.mrf.mxu0
    %4878 = vmatprep.mubr.f32.mxu0 %v3725
    %4879 = vmatmul.mubr.f32.gmra.mxu0 %v3508
    %v4880 = vpop.f32.mrf.mxu0
    %v4881 = vadd.f32 %v4496, %v4880
    %v4882 = vpop.f32.mrf.mxu0
    %4883 = vmatprep.mubr.f32.mxu0 %v3727
    %4884 = vmatmul.mubr.f32.gmra.mxu0 %v3510
    %v4885 = vpop.f32.mrf.mxu0
    %v4886 = vadd.f32 %v4501, %v4885
    %v4887 = vpop.f32.mrf.mxu0
    %4888 = vmatprep.mubr.f32.mxu0 %v3885
    %4889 = vmatmul.mubr.f32.gmra.mxu0 %v3871
    %v4890 = vpop.f32.mrf.mxu0
    %v4891 = vadd.f32 %v4506, %v4890
    %v4892 = vpop.f32.mrf.mxu0
    %4893 = vmatprep.mubr.f32.mxu0 %v3887
    %4894 = vmatmul.mubr.f32.gmra.mxu0 %v3873
    %v4895 = vpop.f32.mrf.mxu0
    %v4896 = vadd.f32 %v4511, %v4895
    %v4897 = vpop.f32.mrf.mxu0
    %4898 = vmatprep.mubr.f32.mxu0 %v3730
    %4899 = vmatmul.mubr.f32.gmra.mxu0 %v3513
    %v4900 = vpop.f32.mrf.mxu0
    %v4901 = vadd.f32 %v4516, %v4900
    %v4902 = vpop.f32.mrf.mxu0
    %4903 = vmatprep.mubr.f32.mxu0 %v3732
    %4904 = vmatmul.mubr.f32.gmra.mxu0 %v3515
    %v4905 = vpop.f32.mrf.mxu0
    %v4906 = vadd.f32 %v4521, %v4905
    %v4907 = vpop.f32.mrf.mxu0
    %4908 = vmatprep.mubr.f32.mxu0 %v3735
    %4909 = vmatmul.mubr.f32.gmra.mxu0 %v3518
    %v4910 = vpop.f32.mrf.mxu0
    %v4911 = vadd.f32 %v4526, %v4910
    %v4912 = vpop.f32.mrf.mxu0
    %4913 = vmatprep.mubr.f32.mxu0 %v3737
    %4914 = vmatmul.mubr.f32.gmra.mxu0 %v3520
    %v4915 = vpop.f32.mrf.mxu0
    %v4916 = vadd.f32 %v4531, %v4915
    %v4917 = vpop.f32.mrf.mxu0
    %4918 = vmatprep.mubr.f32.mxu0 %v3740
    %4919 = vmatmul.mubr.f32.gmra.mxu0 %v3523
    %v4920 = vpop.f32.mrf.mxu0
    %v4921 = vadd.f32 %v4536, %v4920
    %v4922 = vpop.f32.mrf.mxu0
    %4923 = vmatprep.mubr.f32.mxu0 %v3742
    %4924 = vmatmul.mubr.f32.gmra.mxu0 %v3525
    %v4925 = vpop.f32.mrf.mxu0
    %v4926 = vadd.f32 %v4541, %v4925
    %v4927 = vpop.f32.mrf.mxu0
    %4928 = vmatprep.mubr.f32.mxu0 %v3745
    %4929 = vmatmul.mubr.f32.gmra.mxu0 %v3528
    %v4930 = vpop.f32.mrf.mxu0
    %v4931 = vadd.f32 %v4546, %v4930
    %v4932 = vpop.f32.mrf.mxu0
    %4933 = vmatprep.mubr.f32.mxu0 %v3747
    %4934 = vmatmul.mubr.f32.gmra.mxu0 %v3530
    %v4935 = vpop.f32.mrf.mxu0
    %v4936 = vadd.f32 %v4551, %v4935
    %v4937 = vpop.f32.mrf.mxu0
    %4938 = vmatprep.mubr.f32.mxu0 %v3750
    %4939 = vmatmul.mubr.f32.gmra.mxu0 %v3533
    %v4940 = vpop.f32.mrf.mxu0
    %v4941 = vadd.f32 %v4556, %v4940
    %v4942 = vpop.f32.mrf.mxu0
    %4943 = vmatprep.mubr.f32.mxu0 %v3752
    %4944 = vmatmul.mubr.f32.gmra.mxu0 %v3535
    %v4945 = vpop.f32.mrf.mxu0
    %v4946 = vadd.f32 %v4561, %v4945
    %v4947 = vpop.f32.mrf.mxu0
    %4948 = vmatprep.mubr.f32.mxu0 %v3755
    %4949 = vmatmul.mubr.f32.gmra.mxu0 %v3538
    %v4950 = vpop.f32.mrf.mxu0
    %v4951 = vadd.f32 %v4566, %v4950
    %v4952 = vpop.f32.mrf.mxu0
    %4953 = vmatprep.mubr.f32.mxu0 %v3757
    %4954 = vmatmul.mubr.f32.gmra.mxu0 %v3540
    %v4955 = vpop.f32.mrf.mxu0
    %v4956 = vadd.f32 %v4571, %v4955
    %v4957 = vpop.f32.mrf.mxu0
    %4958 = vmatprep.mubr.f32.mxu0 %v3760
    %4959 = vmatmul.mubr.f32.gmra.mxu0 %v3543
    %v4960 = vpop.f32.mrf.mxu0
    %v4961 = vadd.f32 %v4576, %v4960
    %v4962 = vpop.f32.mrf.mxu0
    %4963 = vmatprep.mubr.f32.mxu0 %v3762
    %4964 = vmatmul.mubr.f32.gmra.mxu0 %v3545
    %v4965 = vpop.f32.mrf.mxu0
    %v4966 = vadd.f32 %v4581, %v4965
    %v4967 = vpop.f32.mrf.mxu0
    %4968 = vmatprep.mubr.f32.mxu0 %v3765
    %4969 = vmatmul.mubr.f32.gmra.mxu0 %v3548
    %v4970 = vpop.f32.mrf.mxu0
    %v4971 = vadd.f32 %v4586, %v4970
    %v4972 = vpop.f32.mrf.mxu0
    %4973 = vmatprep.mubr.f32.mxu0 %v3767
    %4974 = vmatmul.mubr.f32.gmra.mxu0 %v3550
    %v4975 = vpop.f32.mrf.mxu0
    %v4976 = vadd.f32 %v4591, %v4975
    %v4977 = vpop.f32.mrf.mxu0
    %4978 = vmatprep.mubr.f32.mxu0 %v3770
    %4979 = vmatmul.mubr.f32.gmra.mxu0 %v3553
    %v4980 = vpop.f32.mrf.mxu0
    %v4981 = vadd.f32 %v4596, %v4980
    %v4982 = vpop.f32.mrf.mxu0
    %4983 = vmatprep.mubr.f32.mxu0 %v3772
    %4984 = vmatmul.mubr.f32.gmra.mxu0 %v3555
    %v4985 = vpop.f32.mrf.mxu0
    %v4986 = vadd.f32 %v4601, %v4985
    %v4987 = vpop.f32.mrf.mxu0
    %4988 = vmatprep.mubr.f32.mxu0 %v3775
    %4989 = vmatmul.mubr.f32.gmra.mxu0 %v3558
    %v4990 = vpop.f32.mrf.mxu0
    %v4991 = vadd.f32 %v4606, %v4990
    %v4992 = vpop.f32.mrf.mxu0
    %4993 = vmatprep.mubr.f32.mxu0 %v3777
    %4994 = vmatmul.mubr.f32.gmra.mxu0 %v3560
    %v4995 = vpop.f32.mrf.mxu0
    %v4996 = vadd.f32 %v4611, %v4995
    %v4997 = vpop.f32.mrf.mxu0
    %4998 = vmatprep.mubr.f32.mxu0 %v3780
    %4999 = vmatmul.mubr.f32.gmra.mxu0 %v3563
    %v5000 = vpop.f32.mrf.mxu0
    %v5001 = vadd.f32 %v4616, %v5000
    %v5002 = vpop.f32.mrf.mxu0
    %5003 = vmatprep.mubr.f32.mxu0 %v3782
    %5004 = vmatmul.mubr.f32.gmra.mxu0 %v3565
    %v5005 = vpop.f32.mrf.mxu0
    %v5006 = vadd.f32 %v4621, %v5005
    %v5007 = vpop.f32.mrf.mxu0
    %5008 = vmatprep.mubr.f32.mxu0 %v3785
    %5009 = vmatmul.mubr.f32.gmra.mxu0 %v3568
    %v5010 = vpop.f32.mrf.mxu0
    %v5011 = vadd.f32 %v4626, %v5010
    %v5012 = vpop.f32.mrf.mxu0
    %5013 = vmatprep.mubr.f32.mxu0 %v3787
    %5014 = vmatmul.mubr.f32.gmra.mxu0 %v3570
    %v5015 = vpop.f32.mrf.mxu0
    %v5016 = vadd.f32 %v4631, %v5015
    %v5017 = vpop.f32.mrf.mxu0
    %5018 = vmatprep.mubr.f32.mxu0 %v3790
    %5019 = vmatmul.mubr.f32.gmra.mxu0 %v3573
    %v5020 = vpop.f32.mrf.mxu0
    %v5021 = vadd.f32 %v4636, %v5020
    %v5022 = vpop.f32.mrf.mxu0
    %5023 = vmatprep.mubr.f32.mxu0 %v3792
    %5024 = vmatmul.mubr.f32.gmra.mxu0 %v3575
    %v5025 = vpop.f32.mrf.mxu0
    %v5026 = vadd.f32 %v4641, %v5025
    %v5027 = vpop.f32.mrf.mxu0
    %5028 = vmatprep.mubr.f32.mxu0 %v3795
    %5029 = vmatmul.mubr.f32.gmra.mxu0 %v3578
    %v5030 = vpop.f32.mrf.mxu0
    %v5031 = vadd.f32 %v4646, %v5030
    %v5032 = vpop.f32.mrf.mxu0
    %5033 = vmatprep.mubr.f32.mxu0 %v3797
    %5034 = vmatmul.mubr.f32.gmra.mxu0 %v3580
    %v5035 = vpop.f32.mrf.mxu0
    %v5036 = vadd.f32 %v4651, %v5035
    %v5037 = vpop.f32.mrf.mxu0
    %5038 = vmatprep.mubr.f32.mxu0 %v3800
    %5039 = vmatmul.mubr.f32.gmra.mxu0 %v3583
    %v5040 = vpop.f32.mrf.mxu0
    %v5041 = vadd.f32 %v4656, %v5040
    %v5042 = vpop.f32.mrf.mxu0
    %5043 = vmatprep.mubr.f32.mxu0 %v3802
    %5044 = vmatmul.mubr.f32.gmra.mxu0 %v3585
    %v5045 = vpop.f32.mrf.mxu0
    %v5046 = vadd.f32 %v4661, %v5045
    %v5047 = vpop.f32.mrf.mxu0
    %5048 = vmatprep.mubr.f32.mxu0 %v3890
    %5049 = vmatmul.mubr.f32.gmra.mxu0 %v3876
    %v5050 = vpop.f32.mrf.mxu0
    %v5051 = vadd.f32 %v4666, %v5050
    %v5052 = vpop.f32.mrf.mxu0
    %5053 = vmatprep.mubr.f32.mxu0 %v3892
    %5054 = vmatmul.mubr.f32.gmra.mxu0 %v3878
    %v5055 = vpop.f32.mrf.mxu0
    %v5056 = vadd.f32 %v4671, %v5055
    %v5057 = vpop.f32.mrf.mxu0
    %5058 = vdwg.mxu0
    %5059 = vmatprep.subr.mxu0 0.0
    %5060 = vmatpush1.msra.mxu0 %v3336
    %5061 = vmatprep.subr.mxu0 0.0
    %5062 = vmatpush1.msra.mxu0 %v3335
    %5063 = vmatprep.subr.mxu0 0.0
    %5064 = vmatpush1.msra.mxu0 %v3334
    %5065 = vmatprep.subr.mxu0 0.0
    %5066 = vmatpush1.msra.mxu0 %v3333
    %5067 = vmatprep.subr.mxu0 0.0
    %5068 = vmatpush1.msra.mxu0 %v3332
    %5069 = vmatprep.subr.mxu0 0.0
    %5070 = vmatpush1.msra.mxu0 %v3331
    %5071 = vmatprep.subr.mxu0 0.0
    %5072 = vmatpush1.msra.mxu0 %v3330
    %5073 = vmatprep.subr.mxu0 0.0
    %5074 = vmatpush1.msra.mxu0 %v3329
    %5075 = vmatprep.subr.mxu0 0.0
    %5076 = vmatpush1.msra.mxu0 %v3328
    %5077 = vmatprep.subr.mxu0 0.0
    %5078 = vmatpush1.msra.mxu0 %v3327
    %5079 = vmatprep.subr.mxu0 0.0
    %5080 = vmatpush1.msra.mxu0 %v3326
    %5081 = vmatprep.subr.mxu0 0.0
    %5082 = vmatpush1.msra.mxu0 %v3325
    %5083 = vmatprep.subr.mxu0 0.0
    %5084 = vmatpush1.msra.mxu0 %v3324
    %5085 = vmatprep.subr.mxu0 0.0
    %5086 = vmatpush1.msra.mxu0 %v3323
    %5087 = vmatprep.subr.mxu0 0.0
    %5088 = vmatpush1.msra.mxu0 %v3322
    %5089 = vmatprep.subr.mxu0 0.0
    %5090 = vmatpush1.msra.mxu0 %v3321
    %5091 = vmatprep.subr.mxu0 0.0
    %5092 = vmatpush2.msra.mxu0 %v3352
    %5093 = vmatprep.subr.mxu0 0.0
    %5094 = vmatpush2.msra.mxu0 %v3351
    %5095 = vmatprep.subr.mxu0 0.0
    %5096 = vmatpush2.msra.mxu0 %v3350
    %5097 = vmatprep.subr.mxu0 0.0
    %5098 = vmatpush2.msra.mxu0 %v3349
    %5099 = vmatprep.subr.mxu0 0.0
    %5100 = vmatpush2.msra.mxu0 %v3348
    %5101 = vmatprep.subr.mxu0 0.0
    %5102 = vmatpush2.msra.mxu0 %v3347
    %5103 = vmatprep.subr.mxu0 0.0
    %5104 = vmatpush2.msra.mxu0 %v3346
    %5105 = vmatprep.subr.mxu0 0.0
    %5106 = vmatpush2.msra.mxu0 %v3345
    %5107 = vmatprep.subr.mxu0 0.0
    %5108 = vmatpush2.msra.mxu0 %v3344
    %5109 = vmatprep.subr.mxu0 0.0
    %5110 = vmatpush2.msra.mxu0 %v3343
    %5111 = vmatprep.subr.mxu0 0.0
    %5112 = vmatpush2.msra.mxu0 %v3342
    %5113 = vmatprep.subr.mxu0 0.0
    %5114 = vmatpush2.msra.mxu0 %v3341
    %5115 = vmatprep.subr.mxu0 0.0
    %5116 = vmatpush2.msra.mxu0 %v3340
    %5117 = vmatprep.subr.mxu0 0.0
    %5118 = vmatpush2.msra.mxu0 %v3339
    %5119 = vmatprep.subr.mxu0 0.0
    %5120 = vmatpush2.msra.mxu0 %v3338
    %5121 = vmatprep.subr.mxu0 0.0
    %5122 = vmatpush2.msra.mxu0 %v3337
    %5123 = vmatprep.mubr.f32.mxu0 %v3443
    %5124 = vmatmul.mubr.f32.gmra.mxu0 %v3161
    %v5125 = vpop.f32.mrf.mxu0
    %v5126 = vadd.f32 %v4741, %v5125
    %v5127 = vpop.f32.mrf.mxu0
    %5128 = vmatprep.mubr.f32.mxu0 %v3445
    %5129 = vmatmul.mubr.f32.gmra.mxu0 %v2970
    %v5130 = vpop.f32.mrf.mxu0
    %v5131 = vadd.f32 %v4746, %v5130
    %v5132 = vpop.f32.mrf.mxu0
    %5133 = vmatprep.mubr.f32.mxu0 %v3448
    %5134 = vmatmul.mubr.f32.gmra.mxu0 %v3162
    %v5135 = vpop.f32.mrf.mxu0
    %v5136 = vadd.f32 %v4751, %v5135
    %v5137 = vpop.f32.mrf.mxu0
    %5138 = vmatprep.mubr.f32.mxu0 %v3450
    %5139 = vmatmul.mubr.f32.gmra.mxu0 %v2973
    %v5140 = vpop.f32.mrf.mxu0
    %v5141 = vadd.f32 %v4756, %v5140
    %v5142 = vpop.f32.mrf.mxu0
    %5143 = vmatprep.mubr.f32.mxu0 %v3453
    %5144 = vmatmul.mubr.f32.gmra.mxu0 %v3163
    %v5145 = vpop.f32.mrf.mxu0
    %v5146 = vadd.f32 %v4761, %v5145
    %v5147 = vpop.f32.mrf.mxu0
    %5148 = vmatprep.mubr.f32.mxu0 %v3455
    %5149 = vmatmul.mubr.f32.gmra.mxu0 %v2976
    %v5150 = vpop.f32.mrf.mxu0
    %v5151 = vadd.f32 %v4766, %v5150
    %v5152 = vpop.f32.mrf.mxu0
    %5153 = vmatprep.mubr.f32.mxu0 %v3458
    %5154 = vmatmul.mubr.f32.gmra.mxu0 %v3164
    %v5155 = vpop.f32.mrf.mxu0
    %v5156 = vadd.f32 %v4771, %v5155
    %v5157 = vpop.f32.mrf.mxu0
    %5158 = vmatprep.mubr.f32.mxu0 %v3460
    %5159 = vmatmul.mubr.f32.gmra.mxu0 %v2979
    %v5160 = vpop.f32.mrf.mxu0
    %v5161 = vadd.f32 %v4776, %v5160
    %v5162 = vpop.f32.mrf.mxu0
    %5163 = vmatprep.mubr.f32.mxu0 %v3463
    %5164 = vmatmul.mubr.f32.gmra.mxu0 %v3165
    %v5165 = vpop.f32.mrf.mxu0
    %v5166 = vadd.f32 %v4781, %v5165
    %v5167 = vpop.f32.mrf.mxu0
    %5168 = vmatprep.mubr.f32.mxu0 %v3465
    %5169 = vmatmul.mubr.f32.gmra.mxu0 %v2982
    %v5170 = vpop.f32.mrf.mxu0
    %v5171 = vadd.f32 %v4786, %v5170
    %v5172 = vpop.f32.mrf.mxu0
    %5173 = vmatprep.mubr.f32.mxu0 %v3468
    %5174 = vmatmul.mubr.f32.gmra.mxu0 %v3166
    %v5175 = vpop.f32.mrf.mxu0
    %v5176 = vadd.f32 %v4791, %v5175
    %v5177 = vpop.f32.mrf.mxu0
    %5178 = vmatprep.mubr.f32.mxu0 %v3470
    %5179 = vmatmul.mubr.f32.gmra.mxu0 %v2985
    %v5180 = vpop.f32.mrf.mxu0
    %v5181 = vadd.f32 %v4796, %v5180
    %v5182 = vpop.f32.mrf.mxu0
    %5183 = vmatprep.mubr.f32.mxu0 %v3473
    %5184 = vmatmul.mubr.f32.gmra.mxu0 %v3167
    %v5185 = vpop.f32.mrf.mxu0
    %v5186 = vadd.f32 %v4801, %v5185
    %v5187 = vpop.f32.mrf.mxu0
    %5188 = vmatprep.mubr.f32.mxu0 %v3475
    %5189 = vmatmul.mubr.f32.gmra.mxu0 %v2988
    %v5190 = vpop.f32.mrf.mxu0
    %v5191 = vadd.f32 %v4806, %v5190
    %v5192 = vpop.f32.mrf.mxu0
    %5193 = vmatprep.mubr.f32.mxu0 %v3478
    %5194 = vmatmul.mubr.f32.gmra.mxu0 %v3168
    %v5195 = vpop.f32.mrf.mxu0
    %v5196 = vadd.f32 %v4811, %v5195
    %v5197 = vpop.f32.mrf.mxu0
    %5198 = vmatprep.mubr.f32.mxu0 %v3480
    %5199 = vmatmul.mubr.f32.gmra.mxu0 %v2991
    %v5200 = vpop.f32.mrf.mxu0
    %v5201 = vadd.f32 %v4816, %v5200
    %v5202 = vpop.f32.mrf.mxu0
    %5203 = vmatprep.mubr.f32.mxu0 %v3483
    %5204 = vmatmul.mubr.f32.gmra.mxu0 %v3169
    %v5205 = vpop.f32.mrf.mxu0
    %v5206 = vadd.f32 %v4821, %v5205
    %v5207 = vpop.f32.mrf.mxu0
    %5208 = vmatprep.mubr.f32.mxu0 %v3485
    %5209 = vmatmul.mubr.f32.gmra.mxu0 %v2994
    %v5210 = vpop.f32.mrf.mxu0
    %v5211 = vadd.f32 %v4826, %v5210
    %v5212 = vpop.f32.mrf.mxu0
    %5213 = vmatprep.mubr.f32.mxu0 %v3488
    %5214 = vmatmul.mubr.f32.gmra.mxu0 %v3170
    %v5215 = vpop.f32.mrf.mxu0
    %v5216 = vadd.f32 %v4831, %v5215
    %v5217 = vpop.f32.mrf.mxu0
    %5218 = vmatprep.mubr.f32.mxu0 %v3490
    %5219 = vmatmul.mubr.f32.gmra.mxu0 %v2997
    %v5220 = vpop.f32.mrf.mxu0
    %v5221 = vadd.f32 %v4836, %v5220
    %v5222 = vpop.f32.mrf.mxu0
    %5223 = vmatprep.mubr.f32.mxu0 %v3493
    %5224 = vmatmul.mubr.f32.gmra.mxu0 %v3171
    %v5225 = vpop.f32.mrf.mxu0
    %v5226 = vadd.f32 %v4841, %v5225
    %v5227 = vpop.f32.mrf.mxu0
    %5228 = vmatprep.mubr.f32.mxu0 %v3495
    %5229 = vmatmul.mubr.f32.gmra.mxu0 %v3000
    %v5230 = vpop.f32.mrf.mxu0
    %v5231 = vadd.f32 %v4846, %v5230
    %v5232 = vpop.f32.mrf.mxu0
    %5233 = vmatprep.mubr.f32.mxu0 %v3498
    %5234 = vmatmul.mubr.f32.gmra.mxu0 %v3172
    %v5235 = vpop.f32.mrf.mxu0
    %v5236 = vadd.f32 %v4851, %v5235
    %v5237 = vpop.f32.mrf.mxu0
    %5238 = vmatprep.mubr.f32.mxu0 %v3500
    %5239 = vmatmul.mubr.f32.gmra.mxu0 %v3003
    %v5240 = vpop.f32.mrf.mxu0
    %v5241 = vadd.f32 %v4856, %v5240
    %v5242 = vpop.f32.mrf.mxu0
    %5243 = vmatprep.mubr.f32.mxu0 %v3503
    %5244 = vmatmul.mubr.f32.gmra.mxu0 %v3173
    %v5245 = vpop.f32.mrf.mxu0
    %v5246 = vadd.f32 %v4861, %v5245
    %v5247 = vpop.f32.mrf.mxu0
    %5248 = vmatprep.mubr.f32.mxu0 %v3505
    %5249 = vmatmul.mubr.f32.gmra.mxu0 %v3006
    %v5250 = vpop.f32.mrf.mxu0
    %v5251 = vadd.f32 %v4866, %v5250
    %v5252 = vpop.f32.mrf.mxu0
    %5253 = vmatprep.mubr.f32.mxu0 %v3508
    %5254 = vmatmul.mubr.f32.gmra.mxu0 %v3174
    %v5255 = vpop.f32.mrf.mxu0
    %v5256 = vadd.f32 %v4871, %v5255
    %v5257 = vpop.f32.mrf.mxu0
    %5258 = vmatprep.mubr.f32.mxu0 %v3510
    %5259 = vmatmul.mubr.f32.gmra.mxu0 %v3009
    %v5260 = vpop.f32.mrf.mxu0
    %v5261 = vadd.f32 %v4876, %v5260
    %v5262 = vpop.f32.mrf.mxu0
    %5263 = vmatprep.mubr.f32.mxu0 %v3871
    %5264 = vmatmul.mubr.f32.gmra.mxu0 %v3175
    %v5265 = vpop.f32.mrf.mxu0
    %v5266 = vadd.f32 %v4881, %v5265
    %v5267 = vpop.f32.mrf.mxu0
    %5268 = vmatprep.mubr.f32.mxu0 %v3873
    %5269 = vmatmul.mubr.f32.gmra.mxu0 %v3012
    %v5270 = vpop.f32.mrf.mxu0
    %v5271 = vadd.f32 %v4886, %v5270
    %v5272 = vpop.f32.mrf.mxu0
    %5273 = vmatprep.mubr.f32.mxu0 %v3433
    %5274 = vmatmul.mubr.f32.gmra.mxu0 %v3159
    %v5275 = vpop.f32.mrf.mxu0
    %v5276 = vadd.f32 %v4891, %v5275
    %v5277 = vpop.f32.mrf.mxu0
    %5278 = vmatprep.mubr.f32.mxu0 %v3435
    %5279 = vmatmul.mubr.f32.gmra.mxu0 %v2964
    %v5280 = vpop.f32.mrf.mxu0
    %v5281 = vadd.f32 %v4896, %v5280
    %v5282 = vpop.f32.mrf.mxu0
    %5283 = vmatprep.mubr.f32.mxu0 %v3518
    %5284 = vmatmul.mubr.f32.gmra.mxu0 %v3177
    %v5285 = vpop.f32.mrf.mxu0
    %v5286 = vadd.f32 %v4901, %v5285
    %v5287 = vpop.f32.mrf.mxu0
    %5288 = vmatprep.mubr.f32.mxu0 %v3520
    %5289 = vmatmul.mubr.f32.gmra.mxu0 %v3018
    %v5290 = vpop.f32.mrf.mxu0
    %v5291 = vadd.f32 %v4906, %v5290
    %v5292 = vpop.f32.mrf.mxu0
    %5293 = vmatprep.mubr.f32.mxu0 %v3523
    %5294 = vmatmul.mubr.f32.gmra.mxu0 %v3178
    %v5295 = vpop.f32.mrf.mxu0
    %v5296 = vadd.f32 %v4911, %v5295
    %v5297 = vpop.f32.mrf.mxu0
    %5298 = vmatprep.mubr.f32.mxu0 %v3525
    %5299 = vmatmul.mubr.f32.gmra.mxu0 %v3021
    %v5300 = vpop.f32.mrf.mxu0
    %v5301 = vadd.f32 %v4916, %v5300
    %v5302 = vpop.f32.mrf.mxu0
    %5303 = vmatprep.mubr.f32.mxu0 %v3528
    %5304 = vmatmul.mubr.f32.gmra.mxu0 %v3179
    %v5305 = vpop.f32.mrf.mxu0
    %v5306 = vadd.f32 %v4921, %v5305
    %v5307 = vpop.f32.mrf.mxu0
    %5308 = vmatprep.mubr.f32.mxu0 %v3530
    %5309 = vmatmul.mubr.f32.gmra.mxu0 %v3024
    %v5310 = vpop.f32.mrf.mxu0
    %v5311 = vadd.f32 %v4926, %v5310
    %v5312 = vpop.f32.mrf.mxu0
    %5313 = vmatprep.mubr.f32.mxu0 %v3533
    %5314 = vmatmul.mubr.f32.gmra.mxu0 %v3180
    %v5315 = vpop.f32.mrf.mxu0
    %v5316 = vadd.f32 %v4931, %v5315
    %v5317 = vpop.f32.mrf.mxu0
    %5318 = vmatprep.mubr.f32.mxu0 %v3535
    %5319 = vmatmul.mubr.f32.gmra.mxu0 %v3027
    %v5320 = vpop.f32.mrf.mxu0
    %v5321 = vadd.f32 %v4936, %v5320
    %v5322 = vpop.f32.mrf.mxu0
    %5323 = vmatprep.mubr.f32.mxu0 %v3538
    %5324 = vmatmul.mubr.f32.gmra.mxu0 %v3181
    %v5325 = vpop.f32.mrf.mxu0
    %v5326 = vadd.f32 %v4941, %v5325
    %v5327 = vpop.f32.mrf.mxu0
    %5328 = vmatprep.mubr.f32.mxu0 %v3540
    %5329 = vmatmul.mubr.f32.gmra.mxu0 %v3030
    %v5330 = vpop.f32.mrf.mxu0
    %v5331 = vadd.f32 %v4946, %v5330
    %v5332 = vpop.f32.mrf.mxu0
    %5333 = vmatprep.mubr.f32.mxu0 %v3543
    %5334 = vmatmul.mubr.f32.gmra.mxu0 %v3182
    %v5335 = vpop.f32.mrf.mxu0
    %v5336 = vadd.f32 %v4951, %v5335
    %v5337 = vpop.f32.mrf.mxu0
    %5338 = vmatprep.mubr.f32.mxu0 %v3545
    %5339 = vmatmul.mubr.f32.gmra.mxu0 %v3033
    %v5340 = vpop.f32.mrf.mxu0
    %v5341 = vadd.f32 %v4956, %v5340
    %v5342 = vpop.f32.mrf.mxu0
    %5343 = vmatprep.mubr.f32.mxu0 %v3548
    %5344 = vmatmul.mubr.f32.gmra.mxu0 %v3183
    %v5345 = vpop.f32.mrf.mxu0
    %v5346 = vadd.f32 %v4961, %v5345
    %v5347 = vpop.f32.mrf.mxu0
    %5348 = vmatprep.mubr.f32.mxu0 %v3550
    %5349 = vmatmul.mubr.f32.gmra.mxu0 %v3036
    %v5350 = vpop.f32.mrf.mxu0
    %v5351 = vadd.f32 %v4966, %v5350
    %v5352 = vpop.f32.mrf.mxu0
    %5353 = vmatprep.mubr.f32.mxu0 %v3553
    %5354 = vmatmul.mubr.f32.gmra.mxu0 %v3184
    %v5355 = vpop.f32.mrf.mxu0
    %v5356 = vadd.f32 %v4971, %v5355
    %v5357 = vpop.f32.mrf.mxu0
    %5358 = vmatprep.mubr.f32.mxu0 %v3555
    %5359 = vmatmul.mubr.f32.gmra.mxu0 %v3039
    %v5360 = vpop.f32.mrf.mxu0
    %v5361 = vadd.f32 %v4976, %v5360
    %v5362 = vpop.f32.mrf.mxu0
    %5363 = vmatprep.mubr.f32.mxu0 %v3558
    %5364 = vmatmul.mubr.f32.gmra.mxu0 %v3185
    %v5365 = vpop.f32.mrf.mxu0
    %v5366 = vadd.f32 %v4981, %v5365
    %v5367 = vpop.f32.mrf.mxu0
    %5368 = vmatprep.mubr.f32.mxu0 %v3560
    %5369 = vmatmul.mubr.f32.gmra.mxu0 %v3042
    %v5370 = vpop.f32.mrf.mxu0
    %v5371 = vadd.f32 %v4986, %v5370
    %v5372 = vpop.f32.mrf.mxu0
    %5373 = vmatprep.mubr.f32.mxu0 %v3563
    %5374 = vmatmul.mubr.f32.gmra.mxu0 %v3186
    %v5375 = vpop.f32.mrf.mxu0
    %v5376 = vadd.f32 %v4991, %v5375
    %v5377 = vpop.f32.mrf.mxu0
    %5378 = vmatprep.mubr.f32.mxu0 %v3565
    %5379 = vmatmul.mubr.f32.gmra.mxu0 %v3045
    %v5380 = vpop.f32.mrf.mxu0
    %v5381 = vadd.f32 %v4996, %v5380
    %v5382 = vpop.f32.mrf.mxu0
    %5383 = vmatprep.mubr.f32.mxu0 %v3568
    %5384 = vmatmul.mubr.f32.gmra.mxu0 %v3187
    %v5385 = vpop.f32.mrf.mxu0
    %v5386 = vadd.f32 %v5001, %v5385
    %v5387 = vpop.f32.mrf.mxu0
    %5388 = vmatprep.mubr.f32.mxu0 %v3570
    %5389 = vmatmul.mubr.f32.gmra.mxu0 %v3048
    %v5390 = vpop.f32.mrf.mxu0
    %v5391 = vadd.f32 %v5006, %v5390
    %v5392 = vpop.f32.mrf.mxu0
    %5393 = vmatprep.mubr.f32.mxu0 %v3573
    %5394 = vmatmul.mubr.f32.gmra.mxu0 %v3188
    %v5395 = vpop.f32.mrf.mxu0
    %v5396 = vadd.f32 %v5011, %v5395
    %v5397 = vpop.f32.mrf.mxu0
    %5398 = vmatprep.mubr.f32.mxu0 %v3575
    %5399 = vmatmul.mubr.f32.gmra.mxu0 %v3051
    %v5400 = vpop.f32.mrf.mxu0
    %v5401 = vadd.f32 %v5016, %v5400
    %v5402 = vpop.f32.mrf.mxu0
    %5403 = vmatprep.mubr.f32.mxu0 %v3578
    %5404 = vmatmul.mubr.f32.gmra.mxu0 %v3189
    %v5405 = vpop.f32.mrf.mxu0
    %v5406 = vadd.f32 %v5021, %v5405
    %v5407 = vpop.f32.mrf.mxu0
    %5408 = vmatprep.mubr.f32.mxu0 %v3580
    %5409 = vmatmul.mubr.f32.gmra.mxu0 %v3054
    %v5410 = vpop.f32.mrf.mxu0
    %v5411 = vadd.f32 %v5026, %v5410
    %v5412 = vpop.f32.mrf.mxu0
    %5413 = vmatprep.mubr.f32.mxu0 %v3583
    %5414 = vmatmul.mubr.f32.gmra.mxu0 %v3190
    %v5415 = vpop.f32.mrf.mxu0
    %v5416 = vadd.f32 %v5031, %v5415
    %v5417 = vpop.f32.mrf.mxu0
    %5418 = vmatprep.mubr.f32.mxu0 %v3585
    %5419 = vmatmul.mubr.f32.gmra.mxu0 %v3057
    %v5420 = vpop.f32.mrf.mxu0
    %v5421 = vadd.f32 %v5036, %v5420
    %v5422 = vpop.f32.mrf.mxu0
    %5423 = vmatprep.mubr.f32.mxu0 %v3876
    %5424 = vmatmul.mubr.f32.gmra.mxu0 %v3191
    %v5425 = vpop.f32.mrf.mxu0
    %v5426 = vadd.f32 %v5041, %v5425
    %v5427 = vpop.f32.mrf.mxu0
    %5428 = vmatprep.mubr.f32.mxu0 %v3878
    %5429 = vmatmul.mubr.f32.gmra.mxu0 %v3060
    %v5430 = vpop.f32.mrf.mxu0
    %v5431 = vadd.f32 %v5046, %v5430
    %v5432 = vpop.f32.mrf.mxu0
    %5433 = vmatprep.mubr.f32.mxu0 %v3433
    %5434 = vmatmul.mubr.f32.gmra.mxu0 %v3159
    %v5435 = vpop.f32.mrf.mxu0
    %v5436 = vadd.f32 %v5051, %v5435
    %v5437 = vpop.f32.mrf.mxu0
    %5438 = vmatprep.mubr.f32.mxu0 %v3435
    %5439 = vmatmul.mubr.f32.gmra.mxu0 %v2964
    %v5440 = vpop.f32.mrf.mxu0
    %v5441 = vadd.f32 %v5056, %v5440
    %v5442 = vpop.f32.mrf.mxu0
    %5443 = vdwg.mxu0
    %5444 = vmatprep.subr.mxu0 0.0
    %5445 = vmatpush1.msra.mxu0 %v3368
    %5446 = vmatprep.subr.mxu0 0.0
    %5447 = vmatpush1.msra.mxu0 %v3367
    %5448 = vmatprep.subr.mxu0 0.0
    %5449 = vmatpush1.msra.mxu0 %v3366
    %5450 = vmatprep.subr.mxu0 0.0
    %5451 = vmatpush1.msra.mxu0 %v3365
    %5452 = vmatprep.subr.mxu0 0.0
    %5453 = vmatpush1.msra.mxu0 %v3364
    %5454 = vmatprep.subr.mxu0 0.0
    %5455 = vmatpush1.msra.mxu0 %v3363
    %5456 = vmatprep.subr.mxu0 0.0
    %5457 = vmatpush1.msra.mxu0 %v3362
    %5458 = vmatprep.subr.mxu0 0.0
    %5459 = vmatpush1.msra.mxu0 %v3361
    %5460 = vmatprep.subr.mxu0 0.0
    %5461 = vmatpush1.msra.mxu0 %v3360
    %5462 = vmatprep.subr.mxu0 0.0
    %5463 = vmatpush1.msra.mxu0 %v3359
    %5464 = vmatprep.subr.mxu0 0.0
    %5465 = vmatpush1.msra.mxu0 %v3358
    %5466 = vmatprep.subr.mxu0 0.0
    %5467 = vmatpush1.msra.mxu0 %v3357
    %5468 = vmatprep.subr.mxu0 0.0
    %5469 = vmatpush1.msra.mxu0 %v3356
    %5470 = vmatprep.subr.mxu0 0.0
    %5471 = vmatpush1.msra.mxu0 %v3355
    %5472 = vmatprep.subr.mxu0 0.0
    %5473 = vmatpush1.msra.mxu0 %v3354
    %5474 = vmatprep.subr.mxu0 0.0
    %5475 = vmatpush1.msra.mxu0 %v3353
    %5476 = vmatprep.subr.mxu0 0.0
    %5477 = vmatpush2.msra.mxu0 0.0
    %5478 = vmatprep.subr.mxu0 0.0
    %5479 = vmatpush2.msra.mxu0 0.0
    %5480 = vmatprep.subr.mxu0 0.0
    %5481 = vmatpush2.msra.mxu0 0.0
    %5482 = vmatprep.subr.mxu0 0.0
    %5483 = vmatpush2.msra.mxu0 0.0
    %5484 = vmatprep.subr.mxu0 0.0
    %5485 = vmatpush2.msra.mxu0 0.0
    %5486 = vmatprep.subr.mxu0 0.0
    %5487 = vmatpush2.msra.mxu0 0.0
    %5488 = vmatprep.subr.mxu0 0.0
    %5489 = vmatpush2.msra.mxu0 0.0
    %5490 = vmatprep.subr.mxu0 0.0
    %5491 = vmatpush2.msra.mxu0 0.0
    %5492 = vmatprep.subr.mxu0 0.0
    %5493 = vmatpush2.msra.mxu0 0.0
    %5494 = vmatprep.subr.mxu0 0.0
    %5495 = vmatpush2.msra.mxu0 0.0
    %5496 = vmatprep.subr.mxu0 0.0
    %5497 = vmatpush2.msra.mxu0 0.0
    %5498 = vmatprep.subr.mxu0 0.0
    %5499 = vmatpush2.msra.mxu0 0.0
    %5500 = vmatprep.subr.mxu0 0.0
    %5501 = vmatpush2.msra.mxu0 0.0
    %5502 = vmatprep.subr.mxu0 0.0
    %5503 = vmatpush2.msra.mxu0 0.0
    %5504 = vmatprep.subr.mxu0 0.0
    %5505 = vmatpush2.msra.mxu0 0.0
    %5506 = vmatprep.subr.mxu0 0.0
    %5507 = vmatpush2.msra.mxu0 0.0
    %5508 = vmatprep.mubr.f32.mxu0 0.0
    %5509 = vmatmul.mubr.f32.gmra.mxu0 %v3660
    %v5510 = vpop.f32.mrf.mxu0
    %v5511 = vadd.f32 %v5126, %v5510
    %v5512 = vpop.f32.mrf.mxu0
    %5513 = vmatprep.mubr.f32.mxu0 0.0
    %5514 = vmatmul.mubr.f32.gmra.mxu0 %v3662
    %v5515 = vpop.f32.mrf.mxu0
    %v5516 = vadd.f32 %v5131, %v5515
    %v5517 = vpop.f32.mrf.mxu0
    %5518 = vmatprep.mubr.f32.mxu0 0.0
    %5519 = vmatmul.mubr.f32.gmra.mxu0 %v3665
    %v5520 = vpop.f32.mrf.mxu0
    %v5521 = vadd.f32 %v5136, %v5520
    %v5522 = vpop.f32.mrf.mxu0
    %5523 = vmatprep.mubr.f32.mxu0 0.0
    %5524 = vmatmul.mubr.f32.gmra.mxu0 %v3667
    %v5525 = vpop.f32.mrf.mxu0
    %v5526 = vadd.f32 %v5141, %v5525
    %v5527 = vpop.f32.mrf.mxu0
    %5528 = vmatprep.mubr.f32.mxu0 0.0
    %5529 = vmatmul.mubr.f32.gmra.mxu0 %v3670
    %v5530 = vpop.f32.mrf.mxu0
    %v5531 = vadd.f32 %v5146, %v5530
    %v5532 = vpop.f32.mrf.mxu0
    %5533 = vmatprep.mubr.f32.mxu0 0.0
    %5534 = vmatmul.mubr.f32.gmra.mxu0 %v3672
    %v5535 = vpop.f32.mrf.mxu0
    %v5536 = vadd.f32 %v5151, %v5535
    %v5537 = vpop.f32.mrf.mxu0
    %5538 = vmatprep.mubr.f32.mxu0 0.0
    %5539 = vmatmul.mubr.f32.gmra.mxu0 %v3675
    %v5540 = vpop.f32.mrf.mxu0
    %v5541 = vadd.f32 %v5156, %v5540
    %v5542 = vpop.f32.mrf.mxu0
    %5543 = vmatprep.mubr.f32.mxu0 0.0
    %5544 = vmatmul.mubr.f32.gmra.mxu0 %v3677
    %v5545 = vpop.f32.mrf.mxu0
    %v5546 = vadd.f32 %v5161, %v5545
    %v5547 = vpop.f32.mrf.mxu0
    %5548 = vmatprep.mubr.f32.mxu0 0.0
    %5549 = vmatmul.mubr.f32.gmra.mxu0 %v3680
    %v5550 = vpop.f32.mrf.mxu0
    %v5551 = vadd.f32 %v5166, %v5550
    %v5552 = vpop.f32.mrf.mxu0
    %5553 = vmatprep.mubr.f32.mxu0 0.0
    %5554 = vmatmul.mubr.f32.gmra.mxu0 %v3682
    %v5555 = vpop.f32.mrf.mxu0
    %v5556 = vadd.f32 %v5171, %v5555
    %v5557 = vpop.f32.mrf.mxu0
    %5558 = vmatprep.mubr.f32.mxu0 0.0
    %5559 = vmatmul.mubr.f32.gmra.mxu0 %v3685
    %v5560 = vpop.f32.mrf.mxu0
    %v5561 = vadd.f32 %v5176, %v5560
    %v5562 = vpop.f32.mrf.mxu0
    %5563 = vmatprep.mubr.f32.mxu0 0.0
    %5564 = vmatmul.mubr.f32.gmra.mxu0 %v3687
    %v5565 = vpop.f32.mrf.mxu0
    %v5566 = vadd.f32 %v5181, %v5565
    %v5567 = vpop.f32.mrf.mxu0
    %5568 = vmatprep.mubr.f32.mxu0 0.0
    %5569 = vmatmul.mubr.f32.gmra.mxu0 %v3690
    %v5570 = vpop.f32.mrf.mxu0
    %v5571 = vadd.f32 %v5186, %v5570
    %v5572 = vpop.f32.mrf.mxu0
    %5573 = vmatprep.mubr.f32.mxu0 0.0
    %5574 = vmatmul.mubr.f32.gmra.mxu0 %v3692
    %v5575 = vpop.f32.mrf.mxu0
    %v5576 = vadd.f32 %v5191, %v5575
    %v5577 = vpop.f32.mrf.mxu0
    %5578 = vmatprep.mubr.f32.mxu0 0.0
    %5579 = vmatmul.mubr.f32.gmra.mxu0 %v3695
    %v5580 = vpop.f32.mrf.mxu0
    %v5581 = vadd.f32 %v5196, %v5580
    %v5582 = vpop.f32.mrf.mxu0
    %5583 = vmatprep.mubr.f32.mxu0 0.0
    %5584 = vmatmul.mubr.f32.gmra.mxu0 %v3697
    %v5585 = vpop.f32.mrf.mxu0
    %v5586 = vadd.f32 %v5201, %v5585
    %v5587 = vpop.f32.mrf.mxu0
    %5588 = vmatprep.mubr.f32.mxu0 0.0
    %5589 = vmatmul.mubr.f32.gmra.mxu0 %v3700
    %v5590 = vpop.f32.mrf.mxu0
    %v5591 = vadd.f32 %v5206, %v5590
    %v5592 = vpop.f32.mrf.mxu0
    %5593 = vmatprep.mubr.f32.mxu0 0.0
    %5594 = vmatmul.mubr.f32.gmra.mxu0 %v3702
    %v5595 = vpop.f32.mrf.mxu0
    %v5596 = vadd.f32 %v5211, %v5595
    %v5597 = vpop.f32.mrf.mxu0
    %5598 = vmatprep.mubr.f32.mxu0 0.0
    %5599 = vmatmul.mubr.f32.gmra.mxu0 %v3705
    %v5600 = vpop.f32.mrf.mxu0
    %v5601 = vadd.f32 %v5216, %v5600
    %v5602 = vpop.f32.mrf.mxu0
    %5603 = vmatprep.mubr.f32.mxu0 0.0
    %5604 = vmatmul.mubr.f32.gmra.mxu0 %v3707
    %v5605 = vpop.f32.mrf.mxu0
    %v5606 = vadd.f32 %v5221, %v5605
    %v5607 = vpop.f32.mrf.mxu0
    %5608 = vmatprep.mubr.f32.mxu0 0.0
    %5609 = vmatmul.mubr.f32.gmra.mxu0 %v3710
    %v5610 = vpop.f32.mrf.mxu0
    %v5611 = vadd.f32 %v5226, %v5610
    %v5612 = vpop.f32.mrf.mxu0
    %5613 = vmatprep.mubr.f32.mxu0 0.0
    %5614 = vmatmul.mubr.f32.gmra.mxu0 %v3712
    %v5615 = vpop.f32.mrf.mxu0
    %v5616 = vadd.f32 %v5231, %v5615
    %v5617 = vpop.f32.mrf.mxu0
    %5618 = vmatprep.mubr.f32.mxu0 0.0
    %5619 = vmatmul.mubr.f32.gmra.mxu0 %v3715
    %v5620 = vpop.f32.mrf.mxu0
    %v5621 = vadd.f32 %v5236, %v5620
    %v5622 = vpop.f32.mrf.mxu0
    %5623 = vmatprep.mubr.f32.mxu0 0.0
    %5624 = vmatmul.mubr.f32.gmra.mxu0 %v3717
    %v5625 = vpop.f32.mrf.mxu0
    %v5626 = vadd.f32 %v5241, %v5625
    %v5627 = vpop.f32.mrf.mxu0
    %5628 = vmatprep.mubr.f32.mxu0 0.0
    %5629 = vmatmul.mubr.f32.gmra.mxu0 %v3720
    %v5630 = vpop.f32.mrf.mxu0
    %v5631 = vadd.f32 %v5246, %v5630
    %v5632 = vpop.f32.mrf.mxu0
    %5633 = vmatprep.mubr.f32.mxu0 0.0
    %5634 = vmatmul.mubr.f32.gmra.mxu0 %v3722
    %v5635 = vpop.f32.mrf.mxu0
    %v5636 = vadd.f32 %v5251, %v5635
    %v5637 = vpop.f32.mrf.mxu0
    %5638 = vmatprep.mubr.f32.mxu0 0.0
    %5639 = vmatmul.mubr.f32.gmra.mxu0 %v3725
    %v5640 = vpop.f32.mrf.mxu0
    %v5641 = vadd.f32 %v5256, %v5640
    %v5642 = vpop.f32.mrf.mxu0
    %5643 = vmatprep.mubr.f32.mxu0 0.0
    %5644 = vmatmul.mubr.f32.gmra.mxu0 %v3727
    %v5645 = vpop.f32.mrf.mxu0
    %v5646 = vadd.f32 %v5261, %v5645
    %v5647 = vpop.f32.mrf.mxu0
    %5648 = vmatprep.mubr.f32.mxu0 0.0
    %5649 = vmatmul.mubr.f32.gmra.mxu0 %v3885
    %v5650 = vpop.f32.mrf.mxu0
    %v5651 = vadd.f32 %v5266, %v5650
    %v5652 = vpop.f32.mrf.mxu0
    %5653 = vmatprep.mubr.f32.mxu0 0.0
    %5654 = vmatmul.mubr.f32.gmra.mxu0 %v3887
    %v5655 = vpop.f32.mrf.mxu0
    %v5656 = vadd.f32 %v5271, %v5655
    %v5657 = vpop.f32.mrf.mxu0
    %5658 = vmatprep.mubr.f32.mxu0 0.0
    %5659 = vmatmul.mubr.f32.gmra.mxu0 %v3650
    %v5660 = vpop.f32.mrf.mxu0
    %v5661 = vadd.f32 %v5276, %v5660
    %v5662 = vpop.f32.mrf.mxu0
    %5663 = vmatprep.mubr.f32.mxu0 0.0
    %5664 = vmatmul.mubr.f32.gmra.mxu0 %v3652
    %v5665 = vpop.f32.mrf.mxu0
    %v5666 = vadd.f32 %v5281, %v5665
    %v5667 = vpop.f32.mrf.mxu0
    %5668 = vmatprep.mubr.f32.mxu0 0.0
    %5669 = vmatmul.mubr.f32.gmra.mxu0 %v3735
    %v5670 = vpop.f32.mrf.mxu0
    %v5671 = vadd.f32 %v5286, %v5670
    %v5672 = vpop.f32.mrf.mxu0
    %5673 = vmatprep.mubr.f32.mxu0 0.0
    %5674 = vmatmul.mubr.f32.gmra.mxu0 %v3737
    %v5675 = vpop.f32.mrf.mxu0
    %v5676 = vadd.f32 %v5291, %v5675
    %v5677 = vpop.f32.mrf.mxu0
    %5678 = vmatprep.mubr.f32.mxu0 0.0
    %5679 = vmatmul.mubr.f32.gmra.mxu0 %v3740
    %v5680 = vpop.f32.mrf.mxu0
    %v5681 = vadd.f32 %v5296, %v5680
    %v5682 = vpop.f32.mrf.mxu0
    %5683 = vmatprep.mubr.f32.mxu0 0.0
    %5684 = vmatmul.mubr.f32.gmra.mxu0 %v3742
    %v5685 = vpop.f32.mrf.mxu0
    %v5686 = vadd.f32 %v5301, %v5685
    %v5687 = vpop.f32.mrf.mxu0
    %5688 = vmatprep.mubr.f32.mxu0 0.0
    %5689 = vmatmul.mubr.f32.gmra.mxu0 %v3745
    %v5690 = vpop.f32.mrf.mxu0
    %v5691 = vadd.f32 %v5306, %v5690
    %v5692 = vpop.f32.mrf.mxu0
    %5693 = vmatprep.mubr.f32.mxu0 0.0
    %5694 = vmatmul.mubr.f32.gmra.mxu0 %v3747
    %v5695 = vpop.f32.mrf.mxu0
    %v5696 = vadd.f32 %v5311, %v5695
    %v5697 = vpop.f32.mrf.mxu0
    %5698 = vmatprep.mubr.f32.mxu0 0.0
    %5699 = vmatmul.mubr.f32.gmra.mxu0 %v3750
    %v5700 = vpop.f32.mrf.mxu0
    %v5701 = vadd.f32 %v5316, %v5700
    %v5702 = vpop.f32.mrf.mxu0
    %5703 = vmatprep.mubr.f32.mxu0 0.0
    %5704 = vmatmul.mubr.f32.gmra.mxu0 %v3752
    %v5705 = vpop.f32.mrf.mxu0
    %v5706 = vadd.f32 %v5321, %v5705
    %v5707 = vpop.f32.mrf.mxu0
    %5708 = vmatprep.mubr.f32.mxu0 0.0
    %5709 = vmatmul.mubr.f32.gmra.mxu0 %v3755
    %v5710 = vpop.f32.mrf.mxu0
    %v5711 = vadd.f32 %v5326, %v5710
    %v5712 = vpop.f32.mrf.mxu0
    %5713 = vmatprep.mubr.f32.mxu0 0.0
    %5714 = vmatmul.mubr.f32.gmra.mxu0 %v3757
    %v5715 = vpop.f32.mrf.mxu0
    %v5716 = vadd.f32 %v5331, %v5715
    %v5717 = vpop.f32.mrf.mxu0
    %5718 = vmatprep.mubr.f32.mxu0 0.0
    %5719 = vmatmul.mubr.f32.gmra.mxu0 %v3760
    %v5720 = vpop.f32.mrf.mxu0
    %v5721 = vadd.f32 %v5336, %v5720
    %v5722 = vpop.f32.mrf.mxu0
    %5723 = vmatprep.mubr.f32.mxu0 0.0
    %5724 = vmatmul.mubr.f32.gmra.mxu0 %v3762
    %v5725 = vpop.f32.mrf.mxu0
    %v5726 = vadd.f32 %v5341, %v5725
    %v5727 = vpop.f32.mrf.mxu0
    %5728 = vmatprep.mubr.f32.mxu0 0.0
    %5729 = vmatmul.mubr.f32.gmra.mxu0 %v3765
    %v5730 = vpop.f32.mrf.mxu0
    %v5731 = vadd.f32 %v5346, %v5730
    %v5732 = vpop.f32.mrf.mxu0
    %5733 = vmatprep.mubr.f32.mxu0 0.0
    %5734 = vmatmul.mubr.f32.gmra.mxu0 %v3767
    %v5735 = vpop.f32.mrf.mxu0
    %v5736 = vadd.f32 %v5351, %v5735
    %v5737 = vpop.f32.mrf.mxu0
    %5738 = vmatprep.mubr.f32.mxu0 0.0
    %5739 = vmatmul.mubr.f32.gmra.mxu0 %v3770
    %v5740 = vpop.f32.mrf.mxu0
    %v5741 = vadd.f32 %v5356, %v5740
    %v5742 = vpop.f32.mrf.mxu0
    %5743 = vmatprep.mubr.f32.mxu0 0.0
    %5744 = vmatmul.mubr.f32.gmra.mxu0 %v3772
    %v5745 = vpop.f32.mrf.mxu0
    %v5746 = vadd.f32 %v5361, %v5745
    %v5747 = vpop.f32.mrf.mxu0
    %5748 = vmatprep.mubr.f32.mxu0 0.0
    %5749 = vmatmul.mubr.f32.gmra.mxu0 %v3775
    %v5750 = vpop.f32.mrf.mxu0
    %v5751 = vadd.f32 %v5366, %v5750
    %v5752 = vpop.f32.mrf.mxu0
    %5753 = vmatprep.mubr.f32.mxu0 0.0
    %5754 = vmatmul.mubr.f32.gmra.mxu0 %v3777
    %v5755 = vpop.f32.mrf.mxu0
    %v5756 = vadd.f32 %v5371, %v5755
    %v5757 = vpop.f32.mrf.mxu0
    %5758 = vmatprep.mubr.f32.mxu0 0.0
    %5759 = vmatmul.mubr.f32.gmra.mxu0 %v3780
    %v5760 = vpop.f32.mrf.mxu0
    %v5761 = vadd.f32 %v5376, %v5760
    %v5762 = vpop.f32.mrf.mxu0
    %5763 = vmatprep.mubr.f32.mxu0 0.0
    %5764 = vmatmul.mubr.f32.gmra.mxu0 %v3782
    %v5765 = vpop.f32.mrf.mxu0
    %v5766 = vadd.f32 %v5381, %v5765
    %v5767 = vpop.f32.mrf.mxu0
    %5768 = vmatprep.mubr.f32.mxu0 0.0
    %5769 = vmatmul.mubr.f32.gmra.mxu0 %v3785
    %v5770 = vpop.f32.mrf.mxu0
    %v5771 = vadd.f32 %v5386, %v5770
    %v5772 = vpop.f32.mrf.mxu0
    %5773 = vmatprep.mubr.f32.mxu0 0.0
    %5774 = vmatmul.mubr.f32.gmra.mxu0 %v3787
    %v5775 = vpop.f32.mrf.mxu0
    %v5776 = vadd.f32 %v5391, %v5775
    %v5777 = vpop.f32.mrf.mxu0
    %5778 = vmatprep.mubr.f32.mxu0 0.0
    %5779 = vmatmul.mubr.f32.gmra.mxu0 %v3790
    %v5780 = vpop.f32.mrf.mxu0
    %v5781 = vadd.f32 %v5396, %v5780
    %v5782 = vpop.f32.mrf.mxu0
    %5783 = vmatprep.mubr.f32.mxu0 0.0
    %5784 = vmatmul.mubr.f32.gmra.mxu0 %v3792
    %v5785 = vpop.f32.mrf.mxu0
    %v5786 = vadd.f32 %v5401, %v5785
    %v5787 = vpop.f32.mrf.mxu0
    %5788 = vmatprep.mubr.f32.mxu0 0.0
    %5789 = vmatmul.mubr.f32.gmra.mxu0 %v3795
    %v5790 = vpop.f32.mrf.mxu0
    %v5791 = vadd.f32 %v5406, %v5790
    %v5792 = vpop.f32.mrf.mxu0
    %5793 = vmatprep.mubr.f32.mxu0 0.0
    %5794 = vmatmul.mubr.f32.gmra.mxu0 %v3797
    %v5795 = vpop.f32.mrf.mxu0
    %v5796 = vadd.f32 %v5411, %v5795
    %v5797 = vpop.f32.mrf.mxu0
    %5798 = vmatprep.mubr.f32.mxu0 0.0
    %5799 = vmatmul.mubr.f32.gmra.mxu0 %v3800
    %v5800 = vpop.f32.mrf.mxu0
    %v5801 = vadd.f32 %v5416, %v5800
    %v5802 = vpop.f32.mrf.mxu0
    %5803 = vmatprep.mubr.f32.mxu0 0.0
    %5804 = vmatmul.mubr.f32.gmra.mxu0 %v3802
    %v5805 = vpop.f32.mrf.mxu0
    %v5806 = vadd.f32 %v5421, %v5805
    %v5807 = vpop.f32.mrf.mxu0
    %5808 = vmatprep.mubr.f32.mxu0 0.0
    %5809 = vmatmul.mubr.f32.gmra.mxu0 %v3890
    %v5810 = vpop.f32.mrf.mxu0
    %v5811 = vadd.f32 %v5426, %v5810
    %v5812 = vpop.f32.mrf.mxu0
    %5813 = vmatprep.mubr.f32.mxu0 0.0
    %5814 = vmatmul.mubr.f32.gmra.mxu0 %v3892
    %v5815 = vpop.f32.mrf.mxu0
    %v5816 = vadd.f32 %v5431, %v5815
    %v5817 = vpop.f32.mrf.mxu0
    %5818 = vmatprep.mubr.f32.mxu0 0.0
    %5819 = vmatmul.mubr.f32.gmra.mxu0 %v3650
    %v5820 = vpop.f32.mrf.mxu0
    %v5821 = vadd.f32 %v5436, %v5820
    %v5822 = vpop.f32.mrf.mxu0
    %5823 = vmatprep.mubr.f32.mxu0 0.0
    %5824 = vmatmul.mubr.f32.gmra.mxu0 %v3652
    %v5825 = vpop.f32.mrf.mxu0
    %v5826 = vadd.f32 %v5441, %v5825
    %v5827 = vpop.f32.mrf.mxu0
    %5828 = vdwg.mxu0
    %v5829 = vmax.f32 %v5511, 0.0
    %v5830 = vmax.f32 %v5516, 0.0
    %v5831 = vmax.f32 %v5521, 0.0
    %v5832 = vmax.f32 %v5526, 0.0
    %v5833 = vmax.f32 %v5531, 0.0
    %v5834 = vmax.f32 %v5536, 0.0
    %v5835 = vmax.f32 %v5541, 0.0
    %v5836 = vmax.f32 %v5546, 0.0
    %v5837 = vmax.f32 %v5551, 0.0
    %v5838 = vmax.f32 %v5556, 0.0
    %v5839 = vmax.f32 %v5561, 0.0
    %v5840 = vmax.f32 %v5566, 0.0
    %v5841 = vmax.f32 %v5571, 0.0
    %v5842 = vmax.f32 %v5576, 0.0
    %v5843 = vmax.f32 %v5581, 0.0
    %v5844 = vmax.f32 %v5586, 0.0
    %v5845 = vmax.f32 %v5591, 0.0
    %v5846 = vmax.f32 %v5596, 0.0
    %v5847 = vmax.f32 %v5601, 0.0
    %v5848 = vmax.f32 %v5606, 0.0
    %v5849 = vmax.f32 %v5611, 0.0
    %v5850 = vmax.f32 %v5616, 0.0
    %v5851 = vmax.f32 %v5621, 0.0
    %v5852 = vmax.f32 %v5626, 0.0
    %v5853 = vmax.f32 %v5631, 0.0
    %v5854 = vmax.f32 %v5636, 0.0
    %v5855 = vmax.f32 %v5641, 0.0
    %v5856 = vmax.f32 %v5646, 0.0
    %v5857 = vmax.f32 %v5651, 0.0
    %v5858 = vmax.f32 %v5656, 0.0
    %v5859 = vmax.f32 %v5661, 0.0
    %v5860 = vmax.f32 %v5666, 0.0
    %v5861 = vmax.f32 %v5671, 0.0
    %v5862 = vmax.f32 %v5676, 0.0
    %v5863 = vmax.f32 %v5681, 0.0
    %v5864 = vmax.f32 %v5686, 0.0
    %v5865 = vmax.f32 %v5691, 0.0
    %v5866 = vmax.f32 %v5696, 0.0
    %v5867 = vmax.f32 %v5701, 0.0
    %v5868 = vmax.f32 %v5706, 0.0
    %v5869 = vmax.f32 %v5711, 0.0
    %v5870 = vmax.f32 %v5716, 0.0
    %v5871 = vmax.f32 %v5721, 0.0
    %v5872 = vmax.f32 %v5726, 0.0
    %v5873 = vmax.f32 %v5731, 0.0
    %v5874 = vmax.f32 %v5736, 0.0
    %v5875 = vmax.f32 %v5741, 0.0
    %v5876 = vmax.f32 %v5746, 0.0
    %v5877 = vmax.f32 %v5751, 0.0
    %v5878 = vmax.f32 %v5756, 0.0
    %v5879 = vmax.f32 %v5761, 0.0
    %v5880 = vmax.f32 %v5766, 0.0
    %v5881 = vmax.f32 %v5771, 0.0
    %v5882 = vmax.f32 %v5776, 0.0
    %v5883 = vmax.f32 %v5781, 0.0
    %v5884 = vmax.f32 %v5786, 0.0
    %v5885 = vmax.f32 %v5791, 0.0
    %v5886 = vmax.f32 %v5796, 0.0
    %v5887 = vmax.f32 %v5801, 0.0
    %v5888 = vmax.f32 %v5806, 0.0
    %v5889 = vmax.f32 %v5811, 0.0
    %v5890 = vmax.f32 %v5816, 0.0
    %v5891 = vmax.f32 %v5821, 0.0
    %v5892 = vmax.f32 %v5826, 0.0
    %5893 = vst [vmem:[#allocation5] sm:$0xff] %v5829
    %5894 = vst [vmem:[#allocation5 + $0x8] sm:$0xff] %v5830
    %5895 = vst [vmem:[#allocation5 + $0x10] sm:$0xff] %v5831
    %5896 = vst [vmem:[#allocation5 + $0x18] sm:$0xff] %v5832
    %5897 = vst [vmem:[#allocation5 + $0x20] sm:$0xff] %v5833
    %5898 = vst [vmem:[#allocation5 + $0x28] sm:$0xff] %v5834
    %5899 = vst [vmem:[#allocation5 + $0x30] sm:$0xff] %v5835
    %5900 = vst [vmem:[#allocation5 + $0x38] sm:$0xff] %v5836
    %5901 = vst [vmem:[#allocation5 + $0x40] sm:$0xff] %v5837
    %5902 = vst [vmem:[#allocation5 + $0x48] sm:$0xff] %v5838
    %5903 = vst [vmem:[#allocation5 + $0x50] sm:$0xff] %v5839
    %5904 = vst [vmem:[#allocation5 + $0x58] sm:$0xff] %v5840
    %5905 = vst [vmem:[#allocation5 + $0x60] sm:$0xff] %v5841
    %5906 = vst [vmem:[#allocation5 + $0x68] sm:$0xff] %v5842
    %5907 = vst [vmem:[#allocation5 + $0x70] sm:$0xff] %v5843
    %5908 = vst [vmem:[#allocation5 + $0x78] sm:$0xff] %v5844
    %5909 = vst [vmem:[#allocation5 + $0x80] sm:$0xff] %v5845
    %5910 = vst [vmem:[#allocation5 + $0x88] sm:$0xff] %v5846
    %5911 = vst [vmem:[#allocation5 + $0x90] sm:$0xff] %v5847
    %5912 = vst [vmem:[#allocation5 + $0x98] sm:$0xff] %v5848
    %5913 = vst [vmem:[#allocation5 + $0xa0] sm:$0xff] %v5849
    %5914 = vst [vmem:[#allocation5 + $0xa8] sm:$0xff] %v5850
    %5915 = vst [vmem:[#allocation5 + $0xb0] sm:$0xff] %v5851
    %5916 = vst [vmem:[#allocation5 + $0xb8] sm:$0xff] %v5852
    %5917 = vst [vmem:[#allocation5 + $0xc0] sm:$0xff] %v5853
    %5918 = vst [vmem:[#allocation5 + $0xc8] sm:$0xff] %v5854
    %5919 = vst [vmem:[#allocation5 + $0xd0] sm:$0xff] %v5855
    %5920 = vst [vmem:[#allocation5 + $0xd8] sm:$0xff] %v5856
    %5921 = vst [vmem:[#allocation5 + $0xe0] sm:$0xff] %v5857
    %5922 = vst [vmem:[#allocation5 + $0xe8] sm:$0xff] %v5858
    %5923 = vst [vmem:[#allocation5 + $0xf0] sm:$0xff] %v5859
    %5924 = vst [vmem:[#allocation5 + $0xf8] sm:$0xff] %v5860
    %5925 = vst [vmem:[#allocation5 + $0x100] sm:$0xff] %v5861
    %5926 = vst [vmem:[#allocation5 + $0x108] sm:$0xff] %v5862
    %5927 = vst [vmem:[#allocation5 + $0x110] sm:$0xff] %v5863
    %5928 = vst [vmem:[#allocation5 + $0x118] sm:$0xff] %v5864
    %5929 = vst [vmem:[#allocation5 + $0x120] sm:$0xff] %v5865
    %5930 = vst [vmem:[#allocation5 + $0x128] sm:$0xff] %v5866
    %5931 = vst [vmem:[#allocation5 + $0x130] sm:$0xff] %v5867
    %5932 = vst [vmem:[#allocation5 + $0x138] sm:$0xff] %v5868
    %5933 = vst [vmem:[#allocation5 + $0x140] sm:$0xff] %v5869
    %5934 = vst [vmem:[#allocation5 + $0x148] sm:$0xff] %v5870
    %5935 = vst [vmem:[#allocation5 + $0x150] sm:$0xff] %v5871
    %5936 = vst [vmem:[#allocation5 + $0x158] sm:$0xff] %v5872
    %5937 = vst [vmem:[#allocation5 + $0x160] sm:$0xff] %v5873
    %5938 = vst [vmem:[#allocation5 + $0x168] sm:$0xff] %v5874
    %5939 = vst [vmem:[#allocation5 + $0x170] sm:$0xff] %v5875
    %5940 = vst [vmem:[#allocation5 + $0x178] sm:$0xff] %v5876
    %5941 = vst [vmem:[#allocation5 + $0x180] sm:$0xff] %v5877
    %5942 = vst [vmem:[#allocation5 + $0x188] sm:$0xff] %v5878
    %5943 = vst [vmem:[#allocation5 + $0x190] sm:$0xff] %v5879
    %5944 = vst [vmem:[#allocation5 + $0x198] sm:$0xff] %v5880
    %5945 = vst [vmem:[#allocation5 + $0x1a0] sm:$0xff] %v5881
    %5946 = vst [vmem:[#allocation5 + $0x1a8] sm:$0xff] %v5882
    %5947 = vst [vmem:[#allocation5 + $0x1b0] sm:$0xff] %v5883
    %5948 = vst [vmem:[#allocation5 + $0x1b8] sm:$0xff] %v5884
    %5949 = vst [vmem:[#allocation5 + $0x1c0] sm:$0xff] %v5885
    %5950 = vst [vmem:[#allocation5 + $0x1c8] sm:$0xff] %v5886
    %5951 = vst [vmem:[#allocation5 + $0x1d0] sm:$0xff] %v5887
    %5952 = vst [vmem:[#allocation5 + $0x1d8] sm:$0xff] %v5888
    %5953 = vst [vmem:[#allocation5 + $0x1e0] sm:$0xff] %v5889
    %5954 = vst [vmem:[#allocation5 + $0x1e8] sm:$0xff] %v5890
    %5955 = vst [vmem:[#allocation5 + $0x1f0] sm:$0xff] %v5891
    %5956 = vst [vmem:[#allocation5 + $0x1f8] sm:$0xff] %v5892
    // Predicated region
    $region26: #{tpu_custom_call.1} parent=1 // pred_check
      _
    $region27: #{tpu_custom_call.1} parent=1 // pred_check_branch
      %5958 = sbr.rel (0) target = $region29
    $region28: #{tpu_custom_call.1} parent=1 // pred_region
      %s5960 = ssub.s32 8192, 8192
      %5961 = vsyncadd [#allocation4], %s5960
      %s5962 = sshll.u32 [#allocation5], 4
      %s5963 = int_to_ptr.vmem [resolvable:$true] %s5962
      %5968 = dma.vmem_to_hbm [thread:$0]  %s5963, 8192, %s5, [#allocation4], 128, 128, 8
    $region29: #{tpu_custom_call.1} parent=1 // pred_fallthru
      _
    // Predicated region
    $region30: #{tpu_custom_call.1} parent=1 // pred_check
      _
    $region31: #{tpu_custom_call.1} parent=1 // pred_check_branch
      %5970 = sbr.rel (0) target = $region33
    $region32: #{tpu_custom_call.1} parent=1 // pred_region
      %5971 = dma.done [#allocation4], 8192
    $region33: #{tpu_custom_call.1} parent=1 // pred_fallthru
      _
    %5972 = vsyncpa [#allocation3], 1
    %5973 = vsyncpa [#allocation4], 1

</llo_original>
